<compile_context>
chip_gen: v5e
topology: v5e:2x2
jax: 0.10.0
libtpu: 0.0.40
codegen_flags: <defaults>
</compile_context>

<pallas_src>
import functools

import jax
import jax.numpy as jnp
import numpy as np
from jax import lax
from jax.experimental import pallas as pl
from jax.experimental.pallas import tpu as pltpu


def _fast_sigmoid(x):
  # One transcendental per element (tanh), instead of a possible exp + reciprocal pair.
  return 0.5 * (jnp.tanh(0.5 * x) + 1.0)


def _bilstm_kernel(gx_ref, whh_ref, out_ref, h_ref, c_ref, *, hidden_dim, time_block):
  """One block of Tt timesteps for BOTH directions (interleaved recurrence streams).

  gx_ref : (2, Tt, B, 4H)  precomputed x@W_ih + b.  Direction 0 is natural time order,
                           direction 1 was reversed along time in the wrapper, so the
                           kernel always walks rows 0..Tt-1 with static indices.
  whh_ref: (2, H, 4H)      recurrent weights, gate order [i, f, o, g].
  out_ref: (2, Tt, B, H)   time-major output slab (same ordering convention as gx).
  h_ref/c_ref: (2, B, H)   f32 state carried across time blocks.
  """
  H = hidden_dim

  @pl.when(pl.program_id(0) == 0)
  def _():
    h_ref[...] = jnp.zeros_like(h_ref)
    c_ref[...] = jnp.zeros_like(c_ref)

  # Load carried state + weights once per block; the loop below keeps them in registers.
  h_f = h_ref[0]
  c_f = c_ref[0]
  h_b = h_ref[1]
  c_b = c_ref[1]
  w_f = whh_ref[0]  # (H, 4H)
  w_b = whh_ref[1]
  mm_dtype = whh_ref.dtype

  for s in range(time_block):  # unrolled; two independent streams interleaved per step
    g_f = gx_ref[0, s].astype(jnp.float32) + jnp.dot(
        h_f.astype(mm_dtype), w_f, preferred_element_type=jnp.float32)
    g_b = gx_ref[1, s].astype(jnp.float32) + jnp.dot(
        h_b.astype(mm_dtype), w_b, preferred_element_type=jnp.float32)

    # Forward-direction gates. Order [i, f, o, g]: one sigmoid slab (3H) + one tanh (H).
    sig_f = _fast_sigmoid(g_f[:, :3 * H])
    gg_f = jnp.tanh(g_f[:, 3 * H:])
    c_f = sig_f[:, H:2 * H] * c_f + sig_f[:, :H] * gg_f
    h_f = sig_f[:, 2 * H:3 * H] * jnp.tanh(c_f)
    out_ref[0, s] = h_f.astype(out_ref.dtype)  # immediate full-tile store

    # Backward-direction gates (independent stream; overlaps with the other's matmul).
    sig_b = _fast_sigmoid(g_b[:, :3 * H])
    gg_b = jnp.tanh(g_b[:, 3 * H:])
    c_b = sig_b[:, H:2 * H] * c_b + sig_b[:, :H] * gg_b
    h_b = sig_b[:, 2 * H:3 * H] * jnp.tanh(c_b)
    out_ref[1, s] = h_b.astype(out_ref.dtype)

  h_ref[0] = h_f
  c_ref[0] = c_f
  h_ref[1] = h_b
  c_ref[1] = c_b


def bilstm_forward(x_bse, params, hidden_dim, *, time_block=8,
                   compute_dtype=jnp.float32):
  """x_bse: (batch, seq, embed).  Returns (batch, seq, 2*hidden_dim) float32.

  compute_dtype controls only the MXU operands (gx stream + W_hh) inside the kernel;
  gate math, accumulation, and the cell state stay f32.  Keep it f32 off-TPU.
  """
  B, T, E = x_bse.shape
  H = hidden_dim
  wih_f, whh_f, b_f, wih_b, whh_b, b_b = params  # PyTorch gate order [i, f, g, o]

  # Permute gate columns [i,f,g,o] -> [i,f,o,g] so sigmoid covers one contiguous 3H slab.
  def perm(w):
    return jnp.concatenate(
        [w[..., 0:H], w[..., H:2 * H], w[..., 3 * H:4 * H], w[..., 2 * H:3 * H]],
        axis=-1)

  # Hoisted, time-independent input projection (f32 operands -> portable everywhere),
  # one big matmul per direction with the bias folded in.
  x32 = x_bse.astype(jnp.float32)
  gx_f = jnp.einsum("bte,eg->tbg", x32, perm(wih_f).astype(jnp.float32)) + perm(b_f)
  gx_b = jnp.einsum("bte,eg->tbg", x32, perm(wih_b).astype(jnp.float32)) + perm(b_b)

  # Pre-reverse the backward direction so the kernel always walks forward with static
  # indices; the wrapper un-reverses the corresponding output below.
  gx_b = gx_b[::-1]

  # Time blocking: pad T up to a multiple of Tt instead of fully unrolling the sequence.
  Tt = T if (time_block is None or time_block <= 0) else min(time_block, T)
  Tb = -(-T // Tt)
  T_pad = Tb * Tt
  if T_pad != T:
    pad = ((0, T_pad - T), (0, 0), (0, 0))
    gx_f = jnp.pad(gx_f, pad)
    gx_b = jnp.pad(gx_b, pad)  # padded steps run AFTER all real steps -> harmless

  gx = jnp.stack([gx_f, gx_b], axis=0).astype(compute_dtype)      # (2, T_pad, B, 4H)
  whh = jnp.stack([perm(whh_f), perm(whh_b)], axis=0).astype(compute_dtype)  # (2, H, 4H)

  out = pl.pallas_call(
      functools.partial(_bilstm_kernel, hidden_dim=H, time_block=Tt),
      out_shape=jax.ShapeDtypeStruct((2, T_pad, B, H), jnp.float32),
      grid_spec=pltpu.PrefetchScalarGridSpec(
          num_scalar_prefetch=0,
          grid=(Tb,),  # time-block axis only; both directions handled per step
          in_specs=[
              pl.BlockSpec((2, Tt, B, 4 * H), lambda tb: (0, tb, 0, 0)),
              pl.BlockSpec((2, H, 4 * H), lambda tb: (0, 0, 0)),
          ],
          out_specs=pl.BlockSpec((2, Tt, B, H), lambda tb: (0, tb, 0, 0)),
          scratch_shapes=[
              pltpu.VMEM((2, B, H), jnp.float32),  # h state (both directions)
              pltpu.VMEM((2, B, H), jnp.float32),  # c state
          ],
      ),
      compiler_params=pltpu.CompilerParams(
          # Time recurrence is sequential.  Default scoped VMEM limit is ample for these
          # block sizes; for large (B, H, Tt) re-derive the gx double-buffer footprint
          # (2 * 2 * Tt * B * 4H * itemsize) against the chip's VMEM and cap Tt.
          dimension_semantics=("arbitrary",),
      ),
  )(gx, whh)

  out_f = out[0, :T]        # (T, B, H), natural time order
  out_b = out[1, :T][::-1]  # un-reverse the backward direction
  # Dropout (eval mode) == identity.
  return jnp.transpose(jnp.concatenate([out_f, out_b], axis=-1), (1, 0, 2))  # (B, T, 2H)


def _reference_bilstm(x_bse, params, hidden_dim):
  """Pure-JAX reference (lax.scan), PyTorch nn.LSTM semantics, gate order [i,f,g,o]."""
  H = hidden_dim
  wih_f, whh_f, b_f, wih_b, whh_b, b_b = params
  x_tbe = jnp.transpose(x_bse, (1, 0, 2))
  B = x_tbe.shape[1]

  def run_dir(xs, wih, whh, b, reverse):
    xs_d = xs[::-1] if reverse else xs

    def step(carry, xt):
      h, c = carry
      gates = xt @ wih + h @ whh + b
      i = jax.nn.sigmoid(gates[:, 0 * H:1 * H])
      f = jax.nn.sigmoid(gates[:, 1 * H:2 * H])
      g = jnp.tanh(gates[:, 2 * H:3 * H])
      o = jax.nn.sigmoid(gates[:, 3 * H:4 * H])
      c_new = f * c + i * g
      h_new = o * jnp.tanh(c_new)
      return (h_new, c_new), h_new

    h0 = jnp.zeros((B, H), jnp.float32)
    c0 = jnp.zeros((B, H), jnp.float32)
    _, hs = lax.scan(step, (h0, c0), xs_d)
    return hs[::-1] if reverse else hs

  hs_f = run_dir(x_tbe, wih_f, whh_f, b_f, reverse=False)
  hs_b = run_dir(x_tbe, wih_b, whh_b, b_b, reverse=True)
  return jnp.transpose(jnp.concatenate([hs_f, hs_b], axis=-1), (1, 0, 2))


def init_params(key, embed_dim, hidden_dim):
  """PyTorch-style uniform init; weights pre-transposed: W_ih^T (E,4H), W_hh^T (H,4H);
  biases combined (b_ih + b_hh), shape (1,4H). Gate order is PyTorch's [i, f, g, o]."""
  H, E = hidden_dim, embed_dim
  bound = 1.0 / np.sqrt(H)
  ks = jax.random.split(key, 8)
  u = lambda k, shape: jax.random.uniform(k, shape, jnp.float32, -bound, bound)
  wih_f = u(ks[0], (E, 4 * H))
  whh_f = u(ks[1], (H, 4 * H))
  b_f = u(ks[2], (1, 4 * H)) + u(ks[3], (1, 4 * H))
  wih_b = u(ks[4], (E, 4 * H))
  whh_b = u(ks[5], (H, 4 * H))
  b_b = u(ks[6], (1, 4 * H)) + u(ks[7], (1, 4 * H))
  return (wih_f, whh_f, b_f, wih_b, whh_b, b_b)


if __name__ == "__main__":
  # Small but TPU-friendly shapes: batch multiple of 8 (sublane), hidden multiple of 128
  # (lane).  x is (batch, seq, embed), like the module's forward input.
  BATCH, SEQ, EMBED, HIDDEN = 8, 16, 128, 128

  key = jax.random.PRNGKey(0)
  k_x, k_p = jax.random.split(key)
  x = jax.random.normal(k_x, (BATCH, SEQ, EMBED), jnp.float32)
  params = init_params(k_p, EMBED, HIDDEN)

  fwd = jax.jit(functools.partial(bilstm_forward, hidden_dim=HIDDEN))
  out = jax.block_until_ready(fwd(x, params))
  assert out.shape == (BATCH, SEQ, 2 * HIDDEN), out.shape

  ref = jax.block_until_ready(_reference_bilstm(x, params, HIDDEN))
  np.testing.assert_allclose(np.asarray(out), np.asarray(ref), rtol=2e-4, atol=2e-4)

  print("KERNEL_OK")
</pallas_src>

<mosaic_0001>
module attributes {stable_mosaic.version = 11 : i64} {
  func.func @_bilstm_kernel(%arg0: i32, %arg1: memref<2x8x8x512xf32, #tpu.memory_space<vmem>>, %arg2: memref<2x128x512xf32, #tpu.memory_space<vmem>>, %arg3: memref<2x8x8x128xf32, #tpu.memory_space<vmem>>, %arg4: memref<2x8x128xf32, #tpu.memory_space<vmem>>, %arg5: memref<2x8x128xf32, #tpu.memory_space<vmem>>) attributes {dimension_semantics = [#tpu.dimension_semantics<arbitrary>], iteration_bounds = array<i64: 2>, scalar_prefetch = 0 : i64, scratch_operands = 2 : i64, tpu.core_type = #tpu.core_type<tc>, window_params = [{transform_indices = @transform_0, window_bounds = array<i64: 2, 8, 8, 512>}, {pipeline_mode = #tpu.pipeline_mode<synchronous>, transform_indices = @transform_1, window_bounds = array<i64: 2, 128, 512>}, {transform_indices = @transform_2, window_bounds = array<i64: 2, 8, 8, 128>}]} {
    %c0_i32 = arith.constant 0 : i32
    %0 = arith.cmpi eq, %arg0, %c0_i32 : i32
    %1 = arith.extui %0 : i1 to i32
    %c0_i32_0 = arith.constant 0 : i32
    %2 = arith.cmpi ne, %1, %c0_i32_0 : i32
    scf.if %2 {
      %cst_214 = arith.constant 0.000000e+00 : f32
      %427 = vector.broadcast %cst_214 : f32 to vector<2x8x128xf32>
      %c0_215 = arith.constant 0 : index
      %c0_216 = arith.constant 0 : index
      %c0_217 = arith.constant 0 : index
      %428 = vector.load %arg4[%c0_215, %c0_216, %c0_217] : memref<2x8x128xf32, #tpu.memory_space<vmem>>, vector<2x8x128xf32>
      tpu.vector_store %arg4[%c0_215, %c0_216, %c0_217], %427 {strides = array<i32>} : memref<2x8x128xf32, #tpu.memory_space<vmem>>, vector<2x8x128xf32>,
      %cst_218 = arith.constant 0.000000e+00 : f32
      %429 = vector.broadcast %cst_218 : f32 to vector<2x8x128xf32>
      %c0_219 = arith.constant 0 : index
      %c0_220 = arith.constant 0 : index
      %c0_221 = arith.constant 0 : index
      %430 = vector.load %arg5[%c0_219, %c0_220, %c0_221] : memref<2x8x128xf32, #tpu.memory_space<vmem>>, vector<2x8x128xf32>
      tpu.vector_store %arg5[%c0_219, %c0_220, %c0_221], %429 {strides = array<i32>} : memref<2x8x128xf32, #tpu.memory_space<vmem>>, vector<2x8x128xf32>,
    } else {
    }
    %c0 = arith.constant 0 : index
    %c0_1 = arith.constant 0 : index
    %c0_2 = arith.constant 0 : index
    %3 = vector.load %arg4[%c0, %c0_1, %c0_2] : memref<2x8x128xf32, #tpu.memory_space<vmem>>, vector<1x8x128xf32>
    %4 = vector.shape_cast %3 : vector<1x8x128xf32> to vector<8x128xf32>
    %c0_3 = arith.constant 0 : index
    %c0_4 = arith.constant 0 : index
    %c0_5 = arith.constant 0 : index
    %5 = vector.load %arg5[%c0_3, %c0_4, %c0_5] : memref<2x8x128xf32, #tpu.memory_space<vmem>>, vector<1x8x128xf32>
    %6 = vector.shape_cast %5 : vector<1x8x128xf32> to vector<8x128xf32>
    %c1 = arith.constant 1 : index
    %c0_6 = arith.constant 0 : index
    %c0_7 = arith.constant 0 : index
    %7 = vector.load %arg4[%c1, %c0_6, %c0_7] : memref<2x8x128xf32, #tpu.memory_space<vmem>>, vector<1x8x128xf32>
    %8 = vector.shape_cast %7 : vector<1x8x128xf32> to vector<8x128xf32>
    %c1_8 = arith.constant 1 : index
    %c0_9 = arith.constant 0 : index
    %c0_10 = arith.constant 0 : index
    %9 = vector.load %arg5[%c1_8, %c0_9, %c0_10] : memref<2x8x128xf32, #tpu.memory_space<vmem>>, vector<1x8x128xf32>
    %10 = vector.shape_cast %9 : vector<1x8x128xf32> to vector<8x128xf32>
    %c0_11 = arith.constant 0 : index
    %c0_12 = arith.constant 0 : index
    %c0_13 = arith.constant 0 : index
    %11 = vector.load %arg2[%c0_11, %c0_12, %c0_13] : memref<2x128x512xf32, #tpu.memory_space<vmem>>, vector<1x128x512xf32>
    %12 = vector.shape_cast %11 : vector<1x128x512xf32> to vector<128x512xf32>
    %c1_14 = arith.constant 1 : index
    %c0_15 = arith.constant 0 : index
    %c0_16 = arith.constant 0 : index
    %13 = vector.load %arg2[%c1_14, %c0_15, %c0_16] : memref<2x128x512xf32, #tpu.memory_space<vmem>>, vector<1x128x512xf32>
    %14 = vector.shape_cast %13 : vector<1x128x512xf32> to vector<128x512xf32>
    %c0_17 = arith.constant 0 : index
    %c0_18 = arith.constant 0 : index
    %c0_19 = arith.constant 0 : index
    %c0_20 = arith.constant 0 : index
    %15 = vector.load %arg1[%c0_17, %c0_18, %c0_19, %c0_20] : memref<2x8x8x512xf32, #tpu.memory_space<vmem>>, vector<1x1x8x512xf32>
    %16 = vector.shape_cast %15 : vector<1x1x8x512xf32> to vector<8x512xf32>
    %cst = arith.constant dense<0.000000e+00> : vector<8x512xf32>
    %17 = tpu.matmul %4, %12, %cst {dimension_numbers = #tpu.dot_dimension_numbers<[1], [0], [0], [1], [0, 0, 1, 1], [], []>} : vector<8x128xf32>, vector<128x512xf32>, vector<8x512xf32> -> vector<8x512xf32>
    %18 = arith.addf %16, %17 : vector<8x512xf32>
    %c1_21 = arith.constant 1 : index
    %c0_22 = arith.constant 0 : index
    %c0_23 = arith.constant 0 : index
    %c0_24 = arith.constant 0 : index
    %19 = vector.load %arg1[%c1_21, %c0_22, %c0_23, %c0_24] : memref<2x8x8x512xf32, #tpu.memory_space<vmem>>, vector<1x1x8x512xf32>
    %20 = vector.shape_cast %19 : vector<1x1x8x512xf32> to vector<8x512xf32>
    %cst_25 = arith.constant dense<0.000000e+00> : vector<8x512xf32>
    %21 = tpu.matmul %8, %14, %cst_25 {dimension_numbers = #tpu.dot_dimension_numbers<[1], [0], [0], [1], [0, 0, 1, 1], [], []>} : vector<8x128xf32>, vector<128x512xf32>, vector<8x512xf32> -> vector<8x512xf32>
    %22 = arith.addf %20, %21 : vector<8x512xf32>
    %23 = vector.extract_strided_slice %18 {offsets = [0, 0], sizes = [8, 384], strides = [1, 1]} : vector<8x512xf32> to vector<8x384xf32>
    %cst_26 = arith.constant 5.000000e-01 : f32
    %24 = vector.broadcast %cst_26 : f32 to vector<8x384xf32>
    %25 = arith.mulf %24, %23 : vector<8x384xf32>
    %26 = math.tanh %25 : vector<8x384xf32>
    %cst_27 = arith.constant 1.000000e+00 : f32
    %27 = vector.broadcast %cst_27 : f32 to vector<8x384xf32>
    %28 = arith.addf %26, %27 : vector<8x384xf32>
    %cst_28 = arith.constant 5.000000e-01 : f32
    %29 = vector.broadcast %cst_28 : f32 to vector<8x384xf32>
    %30 = arith.mulf %29, %28 : vector<8x384xf32>
    %31 = vector.extract_strided_slice %18 {offsets = [0, 384], sizes = [8, 128], strides = [1, 1]} : vector<8x512xf32> to vector<8x128xf32>
    %32 = math.tanh %31 : vector<8x128xf32>
    %33 = vector.extract_strided_slice %30 {offsets = [0, 128], sizes = [8, 128], strides = [1, 1]} : vector<8x384xf32> to vector<8x128xf32>
    %34 = arith.mulf %33, %6 : vector<8x128xf32>
    %35 = vector.extract_strided_slice %30 {offsets = [0, 0], sizes = [8, 128], strides = [1, 1]} : vector<8x384xf32> to vector<8x128xf32>
    %36 = arith.mulf %35, %32 : vector<8x128xf32>
    %37 = arith.addf %34, %36 : vector<8x128xf32>
    %38 = vector.extract_strided_slice %30 {offsets = [0, 256], sizes = [8, 128], strides = [1, 1]} : vector<8x384xf32> to vector<8x128xf32>
    %39 = math.tanh %37 : vector<8x128xf32>
    %40 = arith.mulf %38, %39 : vector<8x128xf32>
    %c0_29 = arith.constant 0 : index
    %c0_30 = arith.constant 0 : index
    %c0_31 = arith.constant 0 : index
    %c0_32 = arith.constant 0 : index
    %41 = vector.load %arg3[%c0_29, %c0_30, %c0_31, %c0_32] : memref<2x8x8x128xf32, #tpu.memory_space<vmem>>, vector<1x1x8x128xf32>
    %42 = vector.shape_cast %41 : vector<1x1x8x128xf32> to vector<8x128xf32>
    %43 = vector.shape_cast %40 : vector<8x128xf32> to vector<1x1x8x128xf32>
    tpu.vector_store %arg3[%c0_29, %c0_30, %c0_31, %c0_32], %43 {strides = array<i32>} : memref<2x8x8x128xf32, #tpu.memory_space<vmem>>, vector<1x1x8x128xf32>,
    %44 = vector.extract_strided_slice %22 {offsets = [0, 0], sizes = [8, 384], strides = [1, 1]} : vector<8x512xf32> to vector<8x384xf32>
    %cst_33 = arith.constant 5.000000e-01 : f32
    %45 = vector.broadcast %cst_33 : f32 to vector<8x384xf32>
    %46 = arith.mulf %45, %44 : vector<8x384xf32>
    %47 = math.tanh %46 : vector<8x384xf32>
    %cst_34 = arith.constant 1.000000e+00 : f32
    %48 = vector.broadcast %cst_34 : f32 to vector<8x384xf32>
    %49 = arith.addf %47, %48 : vector<8x384xf32>
    %cst_35 = arith.constant 5.000000e-01 : f32
    %50 = vector.broadcast %cst_35 : f32 to vector<8x384xf32>
    %51 = arith.mulf %50, %49 : vector<8x384xf32>
    %52 = vector.extract_strided_slice %22 {offsets = [0, 384], sizes = [8, 128], strides = [1, 1]} : vector<8x512xf32> to vector<8x128xf32>
    %53 = math.tanh %52 : vector<8x128xf32>
    %54 = vector.extract_strided_slice %51 {offsets = [0, 128], sizes = [8, 128], strides = [1, 1]} : vector<8x384xf32> to vector<8x128xf32>
    %55 = arith.mulf %54, %10 : vector<8x128xf32>
    %56 = vector.extract_strided_slice %51 {offsets = [0, 0], sizes = [8, 128], strides = [1, 1]} : vector<8x384xf32> to vector<8x128xf32>
    %57 = arith.mulf %56, %53 : vector<8x128xf32>
    %58 = arith.addf %55, %57 : vector<8x128xf32>
    %59 = vector.extract_strided_slice %51 {offsets = [0, 256], sizes = [8, 128], strides = [1, 1]} : vector<8x384xf32> to vector<8x128xf32>
    %60 = math.tanh %58 : vector<8x128xf32>
    %61 = arith.mulf %59, %60 : vector<8x128xf32>
    %c1_36 = arith.constant 1 : index
    %c0_37 = arith.constant 0 : index
    %c0_38 = arith.constant 0 : index
    %c0_39 = arith.constant 0 : index
    %62 = vector.load %arg3[%c1_36, %c0_37, %c0_38, %c0_39] : memref<2x8x8x128xf32, #tpu.memory_space<vmem>>, vector<1x1x8x128xf32>
    %63 = vector.shape_cast %62 : vector<1x1x8x128xf32> to vector<8x128xf32>
    %64 = vector.shape_cast %61 : vector<8x128xf32> to vector<1x1x8x128xf32>
    tpu.vector_store %arg3[%c1_36, %c0_37, %c0_38, %c0_39], %64 {strides = array<i32>} : memref<2x8x8x128xf32, #tpu.memory_space<vmem>>, vector<1x1x8x128xf32>,
    %c0_40 = arith.constant 0 : index
    %c1_41 = arith.constant 1 : index
    %c0_42 = arith.constant 0 : index
    %c0_43 = arith.constant 0 : index
    %65 = vector.load %arg1[%c0_40, %c1_41, %c0_42, %c0_43] : memref<2x8x8x512xf32, #tpu.memory_space<vmem>>, vector<1x1x8x512xf32>
    %66 = vector.shape_cast %65 : vector<1x1x8x512xf32> to vector<8x512xf32>
    %cst_44 = arith.constant dense<0.000000e+00> : vector<8x512xf32>
    %67 = tpu.matmul %40, %12, %cst_44 {dimension_numbers = #tpu.dot_dimension_numbers<[1], [0], [0], [1], [0, 0, 1, 1], [], []>} : vector<8x128xf32>, vector<128x512xf32>, vector<8x512xf32> -> vector<8x512xf32>
    %68 = arith.addf %66, %67 : vector<8x512xf32>
    %c1_45 = arith.constant 1 : index
    %c1_46 = arith.constant 1 : index
    %c0_47 = arith.constant 0 : index
    %c0_48 = arith.constant 0 : index
    %69 = vector.load %arg1[%c1_45, %c1_46, %c0_47, %c0_48] : memref<2x8x8x512xf32, #tpu.memory_space<vmem>>, vector<1x1x8x512xf32>
    %70 = vector.shape_cast %69 : vector<1x1x8x512xf32> to vector<8x512xf32>
    %cst_49 = arith.constant dense<0.000000e+00> : vector<8x512xf32>
    %71 = tpu.matmul %61, %14, %cst_49 {dimension_numbers = #tpu.dot_dimension_numbers<[1], [0], [0], [1], [0, 0, 1, 1], [], []>} : vector<8x128xf32>, vector<128x512xf32>, vector<8x512xf32> -> vector<8x512xf32>
    %72 = arith.addf %70, %71 : vector<8x512xf32>
    %73 = vector.extract_strided_slice %68 {offsets = [0, 0], sizes = [8, 384], strides = [1, 1]} : vector<8x512xf32> to vector<8x384xf32>
    %cst_50 = arith.constant 5.000000e-01 : f32
    %74 = vector.broadcast %cst_50 : f32 to vector<8x384xf32>
    %75 = arith.mulf %74, %73 : vector<8x384xf32>
    %76 = math.tanh %75 : vector<8x384xf32>
    %cst_51 = arith.constant 1.000000e+00 : f32
    %77 = vector.broadcast %cst_51 : f32 to vector<8x384xf32>
    %78 = arith.addf %76, %77 : vector<8x384xf32>
    %cst_52 = arith.constant 5.000000e-01 : f32
    %79 = vector.broadcast %cst_52 : f32 to vector<8x384xf32>
    %80 = arith.mulf %79, %78 : vector<8x384xf32>
    %81 = vector.extract_strided_slice %68 {offsets = [0, 384], sizes = [8, 128], strides = [1, 1]} : vector<8x512xf32> to vector<8x128xf32>
    %82 = math.tanh %81 : vector<8x128xf32>
    %83 = vector.extract_strided_slice %80 {offsets = [0, 128], sizes = [8, 128], strides = [1, 1]} : vector<8x384xf32> to vector<8x128xf32>
    %84 = arith.mulf %83, %37 : vector<8x128xf32>
    %85 = vector.extract_strided_slice %80 {offsets = [0, 0], sizes = [8, 128], strides = [1, 1]} : vector<8x384xf32> to vector<8x128xf32>
    %86 = arith.mulf %85, %82 : vector<8x128xf32>
    %87 = arith.addf %84, %86 : vector<8x128xf32>
    %88 = vector.extract_strided_slice %80 {offsets = [0, 256], sizes = [8, 128], strides = [1, 1]} : vector<8x384xf32> to vector<8x128xf32>
    %89 = math.tanh %87 : vector<8x128xf32>
    %90 = arith.mulf %88, %89 : vector<8x128xf32>
    %c0_53 = arith.constant 0 : index
    %c1_54 = arith.constant 1 : index
    %c0_55 = arith.constant 0 : index
    %c0_56 = arith.constant 0 : index
    %91 = vector.load %arg3[%c0_53, %c1_54, %c0_55, %c0_56] : memref<2x8x8x128xf32, #tpu.memory_space<vmem>>, vector<1x1x8x128xf32>
    %92 = vector.shape_cast %91 : vector<1x1x8x128xf32> to vector<8x128xf32>
    %93 = vector.shape_cast %90 : vector<8x128xf32> to vector<1x1x8x128xf32>
    tpu.vector_store %arg3[%c0_53, %c1_54, %c0_55, %c0_56], %93 {strides = array<i32>} : memref<2x8x8x128xf32, #tpu.memory_space<vmem>>, vector<1x1x8x128xf32>,
    %94 = vector.extract_strided_slice %72 {offsets = [0, 0], sizes = [8, 384], strides = [1, 1]} : vector<8x512xf32> to vector<8x384xf32>
    %cst_57 = arith.constant 5.000000e-01 : f32
    %95 = vector.broadcast %cst_57 : f32 to vector<8x384xf32>
    %96 = arith.mulf %95, %94 : vector<8x384xf32>
    %97 = math.tanh %96 : vector<8x384xf32>
    %cst_58 = arith.constant 1.000000e+00 : f32
    %98 = vector.broadcast %cst_58 : f32 to vector<8x384xf32>
    %99 = arith.addf %97, %98 : vector<8x384xf32>
    %cst_59 = arith.constant 5.000000e-01 : f32
    %100 = vector.broadcast %cst_59 : f32 to vector<8x384xf32>
    %101 = arith.mulf %100, %99 : vector<8x384xf32>
    %102 = vector.extract_strided_slice %72 {offsets = [0, 384], sizes = [8, 128], strides = [1, 1]} : vector<8x512xf32> to vector<8x128xf32>
    %103 = math.tanh %102 : vector<8x128xf32>
    %104 = vector.extract_strided_slice %101 {offsets = [0, 128], sizes = [8, 128], strides = [1, 1]} : vector<8x384xf32> to vector<8x128xf32>
    %105 = arith.mulf %104, %58 : vector<8x128xf32>
    %106 = vector.extract_strided_slice %101 {offsets = [0, 0], sizes = [8, 128], strides = [1, 1]} : vector<8x384xf32> to vector<8x128xf32>
    %107 = arith.mulf %106, %103 : vector<8x128xf32>
    %108 = arith.addf %105, %107 : vector<8x128xf32>
    %109 = vector.extract_strided_slice %101 {offsets = [0, 256], sizes = [8, 128], strides = [1, 1]} : vector<8x384xf32> to vector<8x128xf32>
    %110 = math.tanh %108 : vector<8x128xf32>
    %111 = arith.mulf %109, %110 : vector<8x128xf32>
    %c1_60 = arith.constant 1 : index
    %c1_61 = arith.constant 1 : index
    %c0_62 = arith.constant 0 : index
    %c0_63 = arith.constant 0 : index
    %112 = vector.load %arg3[%c1_60, %c1_61, %c0_62, %c0_63] : memref<2x8x8x128xf32, #tpu.memory_space<vmem>>, vector<1x1x8x128xf32>
    %113 = vector.shape_cast %112 : vector<1x1x8x128xf32> to vector<8x128xf32>
    %114 = vector.shape_cast %111 : vector<8x128xf32> to vector<1x1x8x128xf32>
    tpu.vector_store %arg3[%c1_60, %c1_61, %c0_62, %c0_63], %114 {strides = array<i32>} : memref<2x8x8x128xf32, #tpu.memory_space<vmem>>, vector<1x1x8x128xf32>,
    %c0_64 = arith.constant 0 : index
    %c2 = arith.constant 2 : index
    %c0_65 = arith.constant 0 : index
    %c0_66 = arith.constant 0 : index
    %115 = vector.load %arg1[%c0_64, %c2, %c0_65, %c0_66] : memref<2x8x8x512xf32, #tpu.memory_space<vmem>>, vector<1x1x8x512xf32>
    %116 = vector.shape_cast %115 : vector<1x1x8x512xf32> to vector<8x512xf32>
    %cst_67 = arith.constant dense<0.000000e+00> : vector<8x512xf32>
    %117 = tpu.matmul %90, %12, %cst_67 {dimension_numbers = #tpu.dot_dimension_numbers<[1], [0], [0], [1], [0, 0, 1, 1], [], []>} : vector<8x128xf32>, vector<128x512xf32>, vector<8x512xf32> -> vector<8x512xf32>
    %118 = arith.addf %116, %117 : vector<8x512xf32>
    %c1_68 = arith.constant 1 : index
    %c2_69 = arith.constant 2 : index
    %c0_70 = arith.constant 0 : index
    %c0_71 = arith.constant 0 : index
    %119 = vector.load %arg1[%c1_68, %c2_69, %c0_70, %c0_71] : memref<2x8x8x512xf32, #tpu.memory_space<vmem>>, vector<1x1x8x512xf32>
    %120 = vector.shape_cast %119 : vector<1x1x8x512xf32> to vector<8x512xf32>
    %cst_72 = arith.constant dense<0.000000e+00> : vector<8x512xf32>
    %121 = tpu.matmul %111, %14, %cst_72 {dimension_numbers = #tpu.dot_dimension_numbers<[1], [0], [0], [1], [0, 0, 1, 1], [], []>} : vector<8x128xf32>, vector<128x512xf32>, vector<8x512xf32> -> vector<8x512xf32>
    %122 = arith.addf %120, %121 : vector<8x512xf32>
    %123 = vector.extract_strided_slice %118 {offsets = [0, 0], sizes = [8, 384], strides = [1, 1]} : vector<8x512xf32> to vector<8x384xf32>
    %cst_73 = arith.constant 5.000000e-01 : f32
    %124 = vector.broadcast %cst_73 : f32 to vector<8x384xf32>
    %125 = arith.mulf %124, %123 : vector<8x384xf32>
    %126 = math.tanh %125 : vector<8x384xf32>
    %cst_74 = arith.constant 1.000000e+00 : f32
    %127 = vector.broadcast %cst_74 : f32 to vector<8x384xf32>
    %128 = arith.addf %126, %127 : vector<8x384xf32>
    %cst_75 = arith.constant 5.000000e-01 : f32
    %129 = vector.broadcast %cst_75 : f32 to vector<8x384xf32>
    %130 = arith.mulf %129, %128 : vector<8x384xf32>
    %131 = vector.extract_strided_slice %118 {offsets = [0, 384], sizes = [8, 128], strides = [1, 1]} : vector<8x512xf32> to vector<8x128xf32>
    %132 = math.tanh %131 : vector<8x128xf32>
    %133 = vector.extract_strided_slice %130 {offsets = [0, 128], sizes = [8, 128], strides = [1, 1]} : vector<8x384xf32> to vector<8x128xf32>
    %134 = arith.mulf %133, %87 : vector<8x128xf32>
    %135 = vector.extract_strided_slice %130 {offsets = [0, 0], sizes = [8, 128], strides = [1, 1]} : vector<8x384xf32> to vector<8x128xf32>
    %136 = arith.mulf %135, %132 : vector<8x128xf32>
    %137 = arith.addf %134, %136 : vector<8x128xf32>
    %138 = vector.extract_strided_slice %130 {offsets = [0, 256], sizes = [8, 128], strides = [1, 1]} : vector<8x384xf32> to vector<8x128xf32>
    %139 = math.tanh %137 : vector<8x128xf32>
    %140 = arith.mulf %138, %139 : vector<8x128xf32>
    %c0_76 = arith.constant 0 : index
    %c2_77 = arith.constant 2 : index
    %c0_78 = arith.constant 0 : index
    %c0_79 = arith.constant 0 : index
    %141 = vector.load %arg3[%c0_76, %c2_77, %c0_78, %c0_79] : memref<2x8x8x128xf32, #tpu.memory_space<vmem>>, vector<1x1x8x128xf32>
    %142 = vector.shape_cast %141 : vector<1x1x8x128xf32> to vector<8x128xf32>
    %143 = vector.shape_cast %140 : vector<8x128xf32> to vector<1x1x8x128xf32>
    tpu.vector_store %arg3[%c0_76, %c2_77, %c0_78, %c0_79], %143 {strides = array<i32>} : memref<2x8x8x128xf32, #tpu.memory_space<vmem>>, vector<1x1x8x128xf32>,
    %144 = vector.extract_strided_slice %122 {offsets = [0, 0], sizes = [8, 384], strides = [1, 1]} : vector<8x512xf32> to vector<8x384xf32>
    %cst_80 = arith.constant 5.000000e-01 : f32
    %145 = vector.broadcast %cst_80 : f32 to vector<8x384xf32>
    %146 = arith.mulf %145, %144 : vector<8x384xf32>
    %147 = math.tanh %146 : vector<8x384xf32>
    %cst_81 = arith.constant 1.000000e+00 : f32
    %148 = vector.broadcast %cst_81 : f32 to vector<8x384xf32>
    %149 = arith.addf %147, %148 : vector<8x384xf32>
    %cst_82 = arith.constant 5.000000e-01 : f32
    %150 = vector.broadcast %cst_82 : f32 to vector<8x384xf32>
    %151 = arith.mulf %150, %149 : vector<8x384xf32>
    %152 = vector.extract_strided_slice %122 {offsets = [0, 384], sizes = [8, 128], strides = [1, 1]} : vector<8x512xf32> to vector<8x128xf32>
    %153 = math.tanh %152 : vector<8x128xf32>
    %154 = vector.extract_strided_slice %151 {offsets = [0, 128], sizes = [8, 128], strides = [1, 1]} : vector<8x384xf32> to vector<8x128xf32>
    %155 = arith.mulf %154, %108 : vector<8x128xf32>
    %156 = vector.extract_strided_slice %151 {offsets = [0, 0], sizes = [8, 128], strides = [1, 1]} : vector<8x384xf32> to vector<8x128xf32>
    %157 = arith.mulf %156, %153 : vector<8x128xf32>
    %158 = arith.addf %155, %157 : vector<8x128xf32>
    %159 = vector.extract_strided_slice %151 {offsets = [0, 256], sizes = [8, 128], strides = [1, 1]} : vector<8x384xf32> to vector<8x128xf32>
    %160 = math.tanh %158 : vector<8x128xf32>
    %161 = arith.mulf %159, %160 : vector<8x128xf32>
    %c1_83 = arith.constant 1 : index
    %c2_84 = arith.constant 2 : index
    %c0_85 = arith.constant 0 : index
    %c0_86 = arith.constant 0 : index
    %162 = vector.load %arg3[%c1_83, %c2_84, %c0_85, %c0_86] : memref<2x8x8x128xf32, #tpu.memory_space<vmem>>, vector<1x1x8x128xf32>
    %163 = vector.shape_cast %162 : vector<1x1x8x128xf32> to vector<8x128xf32>
    %164 = vector.shape_cast %161 : vector<8x128xf32> to vector<1x1x8x128xf32>
    tpu.vector_store %arg3[%c1_83, %c2_84, %c0_85, %c0_86], %164 {strides = array<i32>} : memref<2x8x8x128xf32, #tpu.memory_space<vmem>>, vector<1x1x8x128xf32>,
    %c0_87 = arith.constant 0 : index
    %c3 = arith.constant 3 : index
    %c0_88 = arith.constant 0 : index
    %c0_89 = arith.constant 0 : index
    %165 = vector.load %arg1[%c0_87, %c3, %c0_88, %c0_89] : memref<2x8x8x512xf32, #tpu.memory_space<vmem>>, vector<1x1x8x512xf32>
    %166 = vector.shape_cast %165 : vector<1x1x8x512xf32> to vector<8x512xf32>
    %cst_90 = arith.constant dense<0.000000e+00> : vector<8x512xf32>
    %167 = tpu.matmul %140, %12, %cst_90 {dimension_numbers = #tpu.dot_dimension_numbers<[1], [0], [0], [1], [0, 0, 1, 1], [], []>} : vector<8x128xf32>, vector<128x512xf32>, vector<8x512xf32> -> vector<8x512xf32>
    %168 = arith.addf %166, %167 : vector<8x512xf32>
    %c1_91 = arith.constant 1 : index
    %c3_92 = arith.constant 3 : index
    %c0_93 = arith.constant 0 : index
    %c0_94 = arith.constant 0 : index
    %169 = vector.load %arg1[%c1_91, %c3_92, %c0_93, %c0_94] : memref<2x8x8x512xf32, #tpu.memory_space<vmem>>, vector<1x1x8x512xf32>
    %170 = vector.shape_cast %169 : vector<1x1x8x512xf32> to vector<8x512xf32>
    %cst_95 = arith.constant dense<0.000000e+00> : vector<8x512xf32>
    %171 = tpu.matmul %161, %14, %cst_95 {dimension_numbers = #tpu.dot_dimension_numbers<[1], [0], [0], [1], [0, 0, 1, 1], [], []>} : vector<8x128xf32>, vector<128x512xf32>, vector<8x512xf32> -> vector<8x512xf32>
    %172 = arith.addf %170, %171 : vector<8x512xf32>
    %173 = vector.extract_strided_slice %168 {offsets = [0, 0], sizes = [8, 384], strides = [1, 1]} : vector<8x512xf32> to vector<8x384xf32>
    %cst_96 = arith.constant 5.000000e-01 : f32
    %174 = vector.broadcast %cst_96 : f32 to vector<8x384xf32>
    %175 = arith.mulf %174, %173 : vector<8x384xf32>
    %176 = math.tanh %175 : vector<8x384xf32>
    %cst_97 = arith.constant 1.000000e+00 : f32
    %177 = vector.broadcast %cst_97 : f32 to vector<8x384xf32>
    %178 = arith.addf %176, %177 : vector<8x384xf32>
    %cst_98 = arith.constant 5.000000e-01 : f32
    %179 = vector.broadcast %cst_98 : f32 to vector<8x384xf32>
    %180 = arith.mulf %179, %178 : vector<8x384xf32>
    %181 = vector.extract_strided_slice %168 {offsets = [0, 384], sizes = [8, 128], strides = [1, 1]} : vector<8x512xf32> to vector<8x128xf32>
    %182 = math.tanh %181 : vector<8x128xf32>
    %183 = vector.extract_strided_slice %180 {offsets = [0, 128], sizes = [8, 128], strides = [1, 1]} : vector<8x384xf32> to vector<8x128xf32>
    %184 = arith.mulf %183, %137 : vector<8x128xf32>
    %185 = vector.extract_strided_slice %180 {offsets = [0, 0], sizes = [8, 128], strides = [1, 1]} : vector<8x384xf32> to vector<8x128xf32>
    %186 = arith.mulf %185, %182 : vector<8x128xf32>
    %187 = arith.addf %184, %186 : vector<8x128xf32>
    %188 = vector.extract_strided_slice %180 {offsets = [0, 256], sizes = [8, 128], strides = [1, 1]} : vector<8x384xf32> to vector<8x128xf32>
    %189 = math.tanh %187 : vector<8x128xf32>
    %190 = arith.mulf %188, %189 : vector<8x128xf32>
    %c0_99 = arith.constant 0 : index
    %c3_100 = arith.constant 3 : index
    %c0_101 = arith.constant 0 : index
    %c0_102 = arith.constant 0 : index
    %191 = vector.load %arg3[%c0_99, %c3_100, %c0_101, %c0_102] : memref<2x8x8x128xf32, #tpu.memory_space<vmem>>, vector<1x1x8x128xf32>
    %192 = vector.shape_cast %191 : vector<1x1x8x128xf32> to vector<8x128xf32>
    %193 = vector.shape_cast %190 : vector<8x128xf32> to vector<1x1x8x128xf32>
    tpu.vector_store %arg3[%c0_99, %c3_100, %c0_101, %c0_102], %193 {strides = array<i32>} : memref<2x8x8x128xf32, #tpu.memory_space<vmem>>, vector<1x1x8x128xf32>,
    %194 = vector.extract_strided_slice %172 {offsets = [0, 0], sizes = [8, 384], strides = [1, 1]} : vector<8x512xf32> to vector<8x384xf32>
    %cst_103 = arith.constant 5.000000e-01 : f32
    %195 = vector.broadcast %cst_103 : f32 to vector<8x384xf32>
    %196 = arith.mulf %195, %194 : vector<8x384xf32>
    %197 = math.tanh %196 : vector<8x384xf32>
    %cst_104 = arith.constant 1.000000e+00 : f32
    %198 = vector.broadcast %cst_104 : f32 to vector<8x384xf32>
    %199 = arith.addf %197, %198 : vector<8x384xf32>
    %cst_105 = arith.constant 5.000000e-01 : f32
    %200 = vector.broadcast %cst_105 : f32 to vector<8x384xf32>
    %201 = arith.mulf %200, %199 : vector<8x384xf32>
    %202 = vector.extract_strided_slice %172 {offsets = [0, 384], sizes = [8, 128], strides = [1, 1]} : vector<8x512xf32> to vector<8x128xf32>
    %203 = math.tanh %202 : vector<8x128xf32>
    %204 = vector.extract_strided_slice %201 {offsets = [0, 128], sizes = [8, 128], strides = [1, 1]} : vector<8x384xf32> to vector<8x128xf32>
    %205 = arith.mulf %204, %158 : vector<8x128xf32>
    %206 = vector.extract_strided_slice %201 {offsets = [0, 0], sizes = [8, 128], strides = [1, 1]} : vector<8x384xf32> to vector<8x128xf32>
    %207 = arith.mulf %206, %203 : vector<8x128xf32>
    %208 = arith.addf %205, %207 : vector<8x128xf32>
    %209 = vector.extract_strided_slice %201 {offsets = [0, 256], sizes = [8, 128], strides = [1, 1]} : vector<8x384xf32> to vector<8x128xf32>
    %210 = math.tanh %208 : vector<8x128xf32>
    %211 = arith.mulf %209, %210 : vector<8x128xf32>
    %c1_106 = arith.constant 1 : index
    %c3_107 = arith.constant 3 : index
    %c0_108 = arith.constant 0 : index
    %c0_109 = arith.constant 0 : index
    %212 = vector.load %arg3[%c1_106, %c3_107, %c0_108, %c0_109] : memref<2x8x8x128xf32, #tpu.memory_space<vmem>>, vector<1x1x8x128xf32>
    %213 = vector.shape_cast %212 : vector<1x1x8x128xf32> to vector<8x128xf32>
    %214 = vector.shape_cast %211 : vector<8x128xf32> to vector<1x1x8x128xf32>
    tpu.vector_store %arg3[%c1_106, %c3_107, %c0_108, %c0_109], %214 {strides = array<i32>} : memref<2x8x8x128xf32, #tpu.memory_space<vmem>>, vector<1x1x8x128xf32>,
    %c0_110 = arith.constant 0 : index
    %c4 = arith.constant 4 : index
    %c0_111 = arith.constant 0 : index
    %c0_112 = arith.constant 0 : index
    %215 = vector.load %arg1[%c0_110, %c4, %c0_111, %c0_112] : memref<2x8x8x512xf32, #tpu.memory_space<vmem>>, vector<1x1x8x512xf32>
    %216 = vector.shape_cast %215 : vector<1x1x8x512xf32> to vector<8x512xf32>
    %cst_113 = arith.constant dense<0.000000e+00> : vector<8x512xf32>
    %217 = tpu.matmul %190, %12, %cst_113 {dimension_numbers = #tpu.dot_dimension_numbers<[1], [0], [0], [1], [0, 0, 1, 1], [], []>} : vector<8x128xf32>, vector<128x512xf32>, vector<8x512xf32> -> vector<8x512xf32>
    %218 = arith.addf %216, %217 : vector<8x512xf32>
    %c1_114 = arith.constant 1 : index
    %c4_115 = arith.constant 4 : index
    %c0_116 = arith.constant 0 : index
    %c0_117 = arith.constant 0 : index
    %219 = vector.load %arg1[%c1_114, %c4_115, %c0_116, %c0_117] : memref<2x8x8x512xf32, #tpu.memory_space<vmem>>, vector<1x1x8x512xf32>
    %220 = vector.shape_cast %219 : vector<1x1x8x512xf32> to vector<8x512xf32>
    %cst_118 = arith.constant dense<0.000000e+00> : vector<8x512xf32>
    %221 = tpu.matmul %211, %14, %cst_118 {dimension_numbers = #tpu.dot_dimension_numbers<[1], [0], [0], [1], [0, 0, 1, 1], [], []>} : vector<8x128xf32>, vector<128x512xf32>, vector<8x512xf32> -> vector<8x512xf32>
    %222 = arith.addf %220, %221 : vector<8x512xf32>
    %223 = vector.extract_strided_slice %218 {offsets = [0, 0], sizes = [8, 384], strides = [1, 1]} : vector<8x512xf32> to vector<8x384xf32>
    %cst_119 = arith.constant 5.000000e-01 : f32
    %224 = vector.broadcast %cst_119 : f32 to vector<8x384xf32>
    %225 = arith.mulf %224, %223 : vector<8x384xf32>
    %226 = math.tanh %225 : vector<8x384xf32>
    %cst_120 = arith.constant 1.000000e+00 : f32
    %227 = vector.broadcast %cst_120 : f32 to vector<8x384xf32>
    %228 = arith.addf %226, %227 : vector<8x384xf32>
    %cst_121 = arith.constant 5.000000e-01 : f32
    %229 = vector.broadcast %cst_121 : f32 to vector<8x384xf32>
    %230 = arith.mulf %229, %228 : vector<8x384xf32>
    %231 = vector.extract_strided_slice %218 {offsets = [0, 384], sizes = [8, 128], strides = [1, 1]} : vector<8x512xf32> to vector<8x128xf32>
    %232 = math.tanh %231 : vector<8x128xf32>
    %233 = vector.extract_strided_slice %230 {offsets = [0, 128], sizes = [8, 128], strides = [1, 1]} : vector<8x384xf32> to vector<8x128xf32>
    %234 = arith.mulf %233, %187 : vector<8x128xf32>
    %235 = vector.extract_strided_slice %230 {offsets = [0, 0], sizes = [8, 128], strides = [1, 1]} : vector<8x384xf32> to vector<8x128xf32>
    %236 = arith.mulf %235, %232 : vector<8x128xf32>
    %237 = arith.addf %234, %236 : vector<8x128xf32>
    %238 = vector.extract_strided_slice %230 {offsets = [0, 256], sizes = [8, 128], strides = [1, 1]} : vector<8x384xf32> to vector<8x128xf32>
    %239 = math.tanh %237 : vector<8x128xf32>
    %240 = arith.mulf %238, %239 : vector<8x128xf32>
    %c0_122 = arith.constant 0 : index
    %c4_123 = arith.constant 4 : index
    %c0_124 = arith.constant 0 : index
    %c0_125 = arith.constant 0 : index
    %241 = vector.load %arg3[%c0_122, %c4_123, %c0_124, %c0_125] : memref<2x8x8x128xf32, #tpu.memory_space<vmem>>, vector<1x1x8x128xf32>
    %242 = vector.shape_cast %241 : vector<1x1x8x128xf32> to vector<8x128xf32>
    %243 = vector.shape_cast %240 : vector<8x128xf32> to vector<1x1x8x128xf32>
    tpu.vector_store %arg3[%c0_122, %c4_123, %c0_124, %c0_125], %243 {strides = array<i32>} : memref<2x8x8x128xf32, #tpu.memory_space<vmem>>, vector<1x1x8x128xf32>,
    %244 = vector.extract_strided_slice %222 {offsets = [0, 0], sizes = [8, 384], strides = [1, 1]} : vector<8x512xf32> to vector<8x384xf32>
    %cst_126 = arith.constant 5.000000e-01 : f32
    %245 = vector.broadcast %cst_126 : f32 to vector<8x384xf32>
    %246 = arith.mulf %245, %244 : vector<8x384xf32>
    %247 = math.tanh %246 : vector<8x384xf32>
    %cst_127 = arith.constant 1.000000e+00 : f32
    %248 = vector.broadcast %cst_127 : f32 to vector<8x384xf32>
    %249 = arith.addf %247, %248 : vector<8x384xf32>
    %cst_128 = arith.constant 5.000000e-01 : f32
    %250 = vector.broadcast %cst_128 : f32 to vector<8x384xf32>
    %251 = arith.mulf %250, %249 : vector<8x384xf32>
    %252 = vector.extract_strided_slice %222 {offsets = [0, 384], sizes = [8, 128], strides = [1, 1]} : vector<8x512xf32> to vector<8x128xf32>
    %253 = math.tanh %252 : vector<8x128xf32>
    %254 = vector.extract_strided_slice %251 {offsets = [0, 128], sizes = [8, 128], strides = [1, 1]} : vector<8x384xf32> to vector<8x128xf32>
    %255 = arith.mulf %254, %208 : vector<8x128xf32>
    %256 = vector.extract_strided_slice %251 {offsets = [0, 0], sizes = [8, 128], strides = [1, 1]} : vector<8x384xf32> to vector<8x128xf32>
    %257 = arith.mulf %256, %253 : vector<8x128xf32>
    %258 = arith.addf %255, %257 : vector<8x128xf32>
    %259 = vector.extract_strided_slice %251 {offsets = [0, 256], sizes = [8, 128], strides = [1, 1]} : vector<8x384xf32> to vector<8x128xf32>
    %260 = math.tanh %258 : vector<8x128xf32>
    %261 = arith.mulf %259, %260 : vector<8x128xf32>
    %c1_129 = arith.constant 1 : index
    %c4_130 = arith.constant 4 : index
    %c0_131 = arith.constant 0 : index
    %c0_132 = arith.constant 0 : index
    %262 = vector.load %arg3[%c1_129, %c4_130, %c0_131, %c0_132] : memref<2x8x8x128xf32, #tpu.memory_space<vmem>>, vector<1x1x8x128xf32>
    %263 = vector.shape_cast %262 : vector<1x1x8x128xf32> to vector<8x128xf32>
    %264 = vector.shape_cast %261 : vector<8x128xf32> to vector<1x1x8x128xf32>
    tpu.vector_store %arg3[%c1_129, %c4_130, %c0_131, %c0_132], %264 {strides = array<i32>} : memref<2x8x8x128xf32, #tpu.memory_space<vmem>>, vector<1x1x8x128xf32>,
    %c0_133 = arith.constant 0 : index
    %c5 = arith.constant 5 : index
    %c0_134 = arith.constant 0 : index
    %c0_135 = arith.constant 0 : index
    %265 = vector.load %arg1[%c0_133, %c5, %c0_134, %c0_135] : memref<2x8x8x512xf32, #tpu.memory_space<vmem>>, vector<1x1x8x512xf32>
    %266 = vector.shape_cast %265 : vector<1x1x8x512xf32> to vector<8x512xf32>
    %cst_136 = arith.constant dense<0.000000e+00> : vector<8x512xf32>
    %267 = tpu.matmul %240, %12, %cst_136 {dimension_numbers = #tpu.dot_dimension_numbers<[1], [0], [0], [1], [0, 0, 1, 1], [], []>} : vector<8x128xf32>, vector<128x512xf32>, vector<8x512xf32> -> vector<8x512xf32>
    %268 = arith.addf %266, %267 : vector<8x512xf32>
    %c1_137 = arith.constant 1 : index
    %c5_138 = arith.constant 5 : index
    %c0_139 = arith.constant 0 : index
    %c0_140 = arith.constant 0 : index
    %269 = vector.load %arg1[%c1_137, %c5_138, %c0_139, %c0_140] : memref<2x8x8x512xf32, #tpu.memory_space<vmem>>, vector<1x1x8x512xf32>
    %270 = vector.shape_cast %269 : vector<1x1x8x512xf32> to vector<8x512xf32>
    %cst_141 = arith.constant dense<0.000000e+00> : vector<8x512xf32>
    %271 = tpu.matmul %261, %14, %cst_141 {dimension_numbers = #tpu.dot_dimension_numbers<[1], [0], [0], [1], [0, 0, 1, 1], [], []>} : vector<8x128xf32>, vector<128x512xf32>, vector<8x512xf32> -> vector<8x512xf32>
    %272 = arith.addf %270, %271 : vector<8x512xf32>
    %273 = vector.extract_strided_slice %268 {offsets = [0, 0], sizes = [8, 384], strides = [1, 1]} : vector<8x512xf32> to vector<8x384xf32>
    %cst_142 = arith.constant 5.000000e-01 : f32
    %274 = vector.broadcast %cst_142 : f32 to vector<8x384xf32>
    %275 = arith.mulf %274, %273 : vector<8x384xf32>
    %276 = math.tanh %275 : vector<8x384xf32>
    %cst_143 = arith.constant 1.000000e+00 : f32
    %277 = vector.broadcast %cst_143 : f32 to vector<8x384xf32>
    %278 = arith.addf %276, %277 : vector<8x384xf32>
    %cst_144 = arith.constant 5.000000e-01 : f32
    %279 = vector.broadcast %cst_144 : f32 to vector<8x384xf32>
    %280 = arith.mulf %279, %278 : vector<8x384xf32>
    %281 = vector.extract_strided_slice %268 {offsets = [0, 384], sizes = [8, 128], strides = [1, 1]} : vector<8x512xf32> to vector<8x128xf32>
    %282 = math.tanh %281 : vector<8x128xf32>
    %283 = vector.extract_strided_slice %280 {offsets = [0, 128], sizes = [8, 128], strides = [1, 1]} : vector<8x384xf32> to vector<8x128xf32>
    %284 = arith.mulf %283, %237 : vector<8x128xf32>
    %285 = vector.extract_strided_slice %280 {offsets = [0, 0], sizes = [8, 128], strides = [1, 1]} : vector<8x384xf32> to vector<8x128xf32>
    %286 = arith.mulf %285, %282 : vector<8x128xf32>
    %287 = arith.addf %284, %286 : vector<8x128xf32>
    %288 = vector.extract_strided_slice %280 {offsets = [0, 256], sizes = [8, 128], strides = [1, 1]} : vector<8x384xf32> to vector<8x128xf32>
    %289 = math.tanh %287 : vector<8x128xf32>
    %290 = arith.mulf %288, %289 : vector<8x128xf32>
    %c0_145 = arith.constant 0 : index
    %c5_146 = arith.constant 5 : index
    %c0_147 = arith.constant 0 : index
    %c0_148 = arith.constant 0 : index
    %291 = vector.load %arg3[%c0_145, %c5_146, %c0_147, %c0_148] : memref<2x8x8x128xf32, #tpu.memory_space<vmem>>, vector<1x1x8x128xf32>
    %292 = vector.shape_cast %291 : vector<1x1x8x128xf32> to vector<8x128xf32>
    %293 = vector.shape_cast %290 : vector<8x128xf32> to vector<1x1x8x128xf32>
    tpu.vector_store %arg3[%c0_145, %c5_146, %c0_147, %c0_148], %293 {strides = array<i32>} : memref<2x8x8x128xf32, #tpu.memory_space<vmem>>, vector<1x1x8x128xf32>,
    %294 = vector.extract_strided_slice %272 {offsets = [0, 0], sizes = [8, 384], strides = [1, 1]} : vector<8x512xf32> to vector<8x384xf32>
    %cst_149 = arith.constant 5.000000e-01 : f32
    %295 = vector.broadcast %cst_149 : f32 to vector<8x384xf32>
    %296 = arith.mulf %295, %294 : vector<8x384xf32>
    %297 = math.tanh %296 : vector<8x384xf32>
    %cst_150 = arith.constant 1.000000e+00 : f32
    %298 = vector.broadcast %cst_150 : f32 to vector<8x384xf32>
    %299 = arith.addf %297, %298 : vector<8x384xf32>
    %cst_151 = arith.constant 5.000000e-01 : f32
    %300 = vector.broadcast %cst_151 : f32 to vector<8x384xf32>
    %301 = arith.mulf %300, %299 : vector<8x384xf32>
    %302 = vector.extract_strided_slice %272 {offsets = [0, 384], sizes = [8, 128], strides = [1, 1]} : vector<8x512xf32> to vector<8x128xf32>
    %303 = math.tanh %302 : vector<8x128xf32>
    %304 = vector.extract_strided_slice %301 {offsets = [0, 128], sizes = [8, 128], strides = [1, 1]} : vector<8x384xf32> to vector<8x128xf32>
    %305 = arith.mulf %304, %258 : vector<8x128xf32>
    %306 = vector.extract_strided_slice %301 {offsets = [0, 0], sizes = [8, 128], strides = [1, 1]} : vector<8x384xf32> to vector<8x128xf32>
    %307 = arith.mulf %306, %303 : vector<8x128xf32>
    %308 = arith.addf %305, %307 : vector<8x128xf32>
    %309 = vector.extract_strided_slice %301 {offsets = [0, 256], sizes = [8, 128], strides = [1, 1]} : vector<8x384xf32> to vector<8x128xf32>
    %310 = math.tanh %308 : vector<8x128xf32>
    %311 = arith.mulf %309, %310 : vector<8x128xf32>
    %c1_152 = arith.constant 1 : index
    %c5_153 = arith.constant 5 : index
    %c0_154 = arith.constant 0 : index
    %c0_155 = arith.constant 0 : index
    %312 = vector.load %arg3[%c1_152, %c5_153, %c0_154, %c0_155] : memref<2x8x8x128xf32, #tpu.memory_space<vmem>>, vector<1x1x8x128xf32>
    %313 = vector.shape_cast %312 : vector<1x1x8x128xf32> to vector<8x128xf32>
    %314 = vector.shape_cast %311 : vector<8x128xf32> to vector<1x1x8x128xf32>
    tpu.vector_store %arg3[%c1_152, %c5_153, %c0_154, %c0_155], %314 {strides = array<i32>} : memref<2x8x8x128xf32, #tpu.memory_space<vmem>>, vector<1x1x8x128xf32>,
    %c0_156 = arith.constant 0 : index
    %c6 = arith.constant 6 : index
    %c0_157 = arith.constant 0 : index
    %c0_158 = arith.constant 0 : index
    %315 = vector.load %arg1[%c0_156, %c6, %c0_157, %c0_158] : memref<2x8x8x512xf32, #tpu.memory_space<vmem>>, vector<1x1x8x512xf32>
    %316 = vector.shape_cast %315 : vector<1x1x8x512xf32> to vector<8x512xf32>
    %cst_159 = arith.constant dense<0.000000e+00> : vector<8x512xf32>
    %317 = tpu.matmul %290, %12, %cst_159 {dimension_numbers = #tpu.dot_dimension_numbers<[1], [0], [0], [1], [0, 0, 1, 1], [], []>} : vector<8x128xf32>, vector<128x512xf32>, vector<8x512xf32> -> vector<8x512xf32>
    %318 = arith.addf %316, %317 : vector<8x512xf32>
    %c1_160 = arith.constant 1 : index
    %c6_161 = arith.constant 6 : index
    %c0_162 = arith.constant 0 : index
    %c0_163 = arith.constant 0 : index
    %319 = vector.load %arg1[%c1_160, %c6_161, %c0_162, %c0_163] : memref<2x8x8x512xf32, #tpu.memory_space<vmem>>, vector<1x1x8x512xf32>
    %320 = vector.shape_cast %319 : vector<1x1x8x512xf32> to vector<8x512xf32>
    %cst_164 = arith.constant dense<0.000000e+00> : vector<8x512xf32>
    %321 = tpu.matmul %311, %14, %cst_164 {dimension_numbers = #tpu.dot_dimension_numbers<[1], [0], [0], [1], [0, 0, 1, 1], [], []>} : vector<8x128xf32>, vector<128x512xf32>, vector<8x512xf32> -> vector<8x512xf32>
    %322 = arith.addf %320, %321 : vector<8x512xf32>
    %323 = vector.extract_strided_slice %318 {offsets = [0, 0], sizes = [8, 384], strides = [1, 1]} : vector<8x512xf32> to vector<8x384xf32>
    %cst_165 = arith.constant 5.000000e-01 : f32
    %324 = vector.broadcast %cst_165 : f32 to vector<8x384xf32>
    %325 = arith.mulf %324, %323 : vector<8x384xf32>
    %326 = math.tanh %325 : vector<8x384xf32>
    %cst_166 = arith.constant 1.000000e+00 : f32
    %327 = vector.broadcast %cst_166 : f32 to vector<8x384xf32>
    %328 = arith.addf %326, %327 : vector<8x384xf32>
    %cst_167 = arith.constant 5.000000e-01 : f32
    %329 = vector.broadcast %cst_167 : f32 to vector<8x384xf32>
    %330 = arith.mulf %329, %328 : vector<8x384xf32>
    %331 = vector.extract_strided_slice %318 {offsets = [0, 384], sizes = [8, 128], strides = [1, 1]} : vector<8x512xf32> to vector<8x128xf32>
    %332 = math.tanh %331 : vector<8x128xf32>
    %333 = vector.extract_strided_slice %330 {offsets = [0, 128], sizes = [8, 128], strides = [1, 1]} : vector<8x384xf32> to vector<8x128xf32>
    %334 = arith.mulf %333, %287 : vector<8x128xf32>
    %335 = vector.extract_strided_slice %330 {offsets = [0, 0], sizes = [8, 128], strides = [1, 1]} : vector<8x384xf32> to vector<8x128xf32>
    %336 = arith.mulf %335, %332 : vector<8x128xf32>
    %337 = arith.addf %334, %336 : vector<8x128xf32>
    %338 = vector.extract_strided_slice %330 {offsets = [0, 256], sizes = [8, 128], strides = [1, 1]} : vector<8x384xf32> to vector<8x128xf32>
    %339 = math.tanh %337 : vector<8x128xf32>
    %340 = arith.mulf %338, %339 : vector<8x128xf32>
    %c0_168 = arith.constant 0 : index
    %c6_169 = arith.constant 6 : index
    %c0_170 = arith.constant 0 : index
    %c0_171 = arith.constant 0 : index
    %341 = vector.load %arg3[%c0_168, %c6_169, %c0_170, %c0_171] : memref<2x8x8x128xf32, #tpu.memory_space<vmem>>, vector<1x1x8x128xf32>
    %342 = vector.shape_cast %341 : vector<1x1x8x128xf32> to vector<8x128xf32>
    %343 = vector.shape_cast %340 : vector<8x128xf32> to vector<1x1x8x128xf32>
    tpu.vector_store %arg3[%c0_168, %c6_169, %c0_170, %c0_171], %343 {strides = array<i32>} : memref<2x8x8x128xf32, #tpu.memory_space<vmem>>, vector<1x1x8x128xf32>,
    %344 = vector.extract_strided_slice %322 {offsets = [0, 0], sizes = [8, 384], strides = [1, 1]} : vector<8x512xf32> to vector<8x384xf32>
    %cst_172 = arith.constant 5.000000e-01 : f32
    %345 = vector.broadcast %cst_172 : f32 to vector<8x384xf32>
    %346 = arith.mulf %345, %344 : vector<8x384xf32>
    %347 = math.tanh %346 : vector<8x384xf32>
    %cst_173 = arith.constant 1.000000e+00 : f32
    %348 = vector.broadcast %cst_173 : f32 to vector<8x384xf32>
    %349 = arith.addf %347, %348 : vector<8x384xf32>
    %cst_174 = arith.constant 5.000000e-01 : f32
    %350 = vector.broadcast %cst_174 : f32 to vector<8x384xf32>
    %351 = arith.mulf %350, %349 : vector<8x384xf32>
    %352 = vector.extract_strided_slice %322 {offsets = [0, 384], sizes = [8, 128], strides = [1, 1]} : vector<8x512xf32> to vector<8x128xf32>
    %353 = math.tanh %352 : vector<8x128xf32>
    %354 = vector.extract_strided_slice %351 {offsets = [0, 128], sizes = [8, 128], strides = [1, 1]} : vector<8x384xf32> to vector<8x128xf32>
    %355 = arith.mulf %354, %308 : vector<8x128xf32>
    %356 = vector.extract_strided_slice %351 {offsets = [0, 0], sizes = [8, 128], strides = [1, 1]} : vector<8x384xf32> to vector<8x128xf32>
    %357 = arith.mulf %356, %353 : vector<8x128xf32>
    %358 = arith.addf %355, %357 : vector<8x128xf32>
    %359 = vector.extract_strided_slice %351 {offsets = [0, 256], sizes = [8, 128], strides = [1, 1]} : vector<8x384xf32> to vector<8x128xf32>
    %360 = math.tanh %358 : vector<8x128xf32>
    %361 = arith.mulf %359, %360 : vector<8x128xf32>
    %c1_175 = arith.constant 1 : index
    %c6_176 = arith.constant 6 : index
    %c0_177 = arith.constant 0 : index
    %c0_178 = arith.constant 0 : index
    %362 = vector.load %arg3[%c1_175, %c6_176, %c0_177, %c0_178] : memref<2x8x8x128xf32, #tpu.memory_space<vmem>>, vector<1x1x8x128xf32>
    %363 = vector.shape_cast %362 : vector<1x1x8x128xf32> to vector<8x128xf32>
    %364 = vector.shape_cast %361 : vector<8x128xf32> to vector<1x1x8x128xf32>
    tpu.vector_store %arg3[%c1_175, %c6_176, %c0_177, %c0_178], %364 {strides = array<i32>} : memref<2x8x8x128xf32, #tpu.memory_space<vmem>>, vector<1x1x8x128xf32>,
    %c0_179 = arith.constant 0 : index
    %c7 = arith.constant 7 : index
    %c0_180 = arith.constant 0 : index
    %c0_181 = arith.constant 0 : index
    %365 = vector.load %arg1[%c0_179, %c7, %c0_180, %c0_181] : memref<2x8x8x512xf32, #tpu.memory_space<vmem>>, vector<1x1x8x512xf32>
    %366 = vector.shape_cast %365 : vector<1x1x8x512xf32> to vector<8x512xf32>
    %cst_182 = arith.constant dense<0.000000e+00> : vector<8x512xf32>
    %367 = tpu.matmul %340, %12, %cst_182 {dimension_numbers = #tpu.dot_dimension_numbers<[1], [0], [0], [1], [0, 0, 1, 1], [], []>} : vector<8x128xf32>, vector<128x512xf32>, vector<8x512xf32> -> vector<8x512xf32>
    %368 = arith.addf %366, %367 : vector<8x512xf32>
    %c1_183 = arith.constant 1 : index
    %c7_184 = arith.constant 7 : index
    %c0_185 = arith.constant 0 : index
    %c0_186 = arith.constant 0 : index
    %369 = vector.load %arg1[%c1_183, %c7_184, %c0_185, %c0_186] : memref<2x8x8x512xf32, #tpu.memory_space<vmem>>, vector<1x1x8x512xf32>
    %370 = vector.shape_cast %369 : vector<1x1x8x512xf32> to vector<8x512xf32>
    %cst_187 = arith.constant dense<0.000000e+00> : vector<8x512xf32>
    %371 = tpu.matmul %361, %14, %cst_187 {dimension_numbers = #tpu.dot_dimension_numbers<[1], [0], [0], [1], [0, 0, 1, 1], [], []>} : vector<8x128xf32>, vector<128x512xf32>, vector<8x512xf32> -> vector<8x512xf32>
    %372 = arith.addf %370, %371 : vector<8x512xf32>
    %373 = vector.extract_strided_slice %368 {offsets = [0, 0], sizes = [8, 384], strides = [1, 1]} : vector<8x512xf32> to vector<8x384xf32>
    %cst_188 = arith.constant 5.000000e-01 : f32
    %374 = vector.broadcast %cst_188 : f32 to vector<8x384xf32>
    %375 = arith.mulf %374, %373 : vector<8x384xf32>
    %376 = math.tanh %375 : vector<8x384xf32>
    %cst_189 = arith.constant 1.000000e+00 : f32
    %377 = vector.broadcast %cst_189 : f32 to vector<8x384xf32>
    %378 = arith.addf %376, %377 : vector<8x384xf32>
    %cst_190 = arith.constant 5.000000e-01 : f32
    %379 = vector.broadcast %cst_190 : f32 to vector<8x384xf32>
    %380 = arith.mulf %379, %378 : vector<8x384xf32>
    %381 = vector.extract_strided_slice %368 {offsets = [0, 384], sizes = [8, 128], strides = [1, 1]} : vector<8x512xf32> to vector<8x128xf32>
    %382 = math.tanh %381 : vector<8x128xf32>
    %383 = vector.extract_strided_slice %380 {offsets = [0, 128], sizes = [8, 128], strides = [1, 1]} : vector<8x384xf32> to vector<8x128xf32>
    %384 = arith.mulf %383, %337 : vector<8x128xf32>
    %385 = vector.extract_strided_slice %380 {offsets = [0, 0], sizes = [8, 128], strides = [1, 1]} : vector<8x384xf32> to vector<8x128xf32>
    %386 = arith.mulf %385, %382 : vector<8x128xf32>
    %387 = arith.addf %384, %386 : vector<8x128xf32>
    %388 = vector.extract_strided_slice %380 {offsets = [0, 256], sizes = [8, 128], strides = [1, 1]} : vector<8x384xf32> to vector<8x128xf32>
    %389 = math.tanh %387 : vector<8x128xf32>
    %390 = arith.mulf %388, %389 : vector<8x128xf32>
    %c0_191 = arith.constant 0 : index
    %c7_192 = arith.constant 7 : index
    %c0_193 = arith.constant 0 : index
    %c0_194 = arith.constant 0 : index
    %391 = vector.load %arg3[%c0_191, %c7_192, %c0_193, %c0_194] : memref<2x8x8x128xf32, #tpu.memory_space<vmem>>, vector<1x1x8x128xf32>
    %392 = vector.shape_cast %391 : vector<1x1x8x128xf32> to vector<8x128xf32>
    %393 = vector.shape_cast %390 : vector<8x128xf32> to vector<1x1x8x128xf32>
    tpu.vector_store %arg3[%c0_191, %c7_192, %c0_193, %c0_194], %393 {strides = array<i32>} : memref<2x8x8x128xf32, #tpu.memory_space<vmem>>, vector<1x1x8x128xf32>,
    %394 = vector.extract_strided_slice %372 {offsets = [0, 0], sizes = [8, 384], strides = [1, 1]} : vector<8x512xf32> to vector<8x384xf32>
    %cst_195 = arith.constant 5.000000e-01 : f32
    %395 = vector.broadcast %cst_195 : f32 to vector<8x384xf32>
    %396 = arith.mulf %395, %394 : vector<8x384xf32>
    %397 = math.tanh %396 : vector<8x384xf32>
    %cst_196 = arith.constant 1.000000e+00 : f32
    %398 = vector.broadcast %cst_196 : f32 to vector<8x384xf32>
    %399 = arith.addf %397, %398 : vector<8x384xf32>
    %cst_197 = arith.constant 5.000000e-01 : f32
    %400 = vector.broadcast %cst_197 : f32 to vector<8x384xf32>
    %401 = arith.mulf %400, %399 : vector<8x384xf32>
    %402 = vector.extract_strided_slice %372 {offsets = [0, 384], sizes = [8, 128], strides = [1, 1]} : vector<8x512xf32> to vector<8x128xf32>
    %403 = math.tanh %402 : vector<8x128xf32>
    %404 = vector.extract_strided_slice %401 {offsets = [0, 128], sizes = [8, 128], strides = [1, 1]} : vector<8x384xf32> to vector<8x128xf32>
    %405 = arith.mulf %404, %358 : vector<8x128xf32>
    %406 = vector.extract_strided_slice %401 {offsets = [0, 0], sizes = [8, 128], strides = [1, 1]} : vector<8x384xf32> to vector<8x128xf32>
    %407 = arith.mulf %406, %403 : vector<8x128xf32>
    %408 = arith.addf %405, %407 : vector<8x128xf32>
    %409 = vector.extract_strided_slice %401 {offsets = [0, 256], sizes = [8, 128], strides = [1, 1]} : vector<8x384xf32> to vector<8x128xf32>
    %410 = math.tanh %408 : vector<8x128xf32>
    %411 = arith.mulf %409, %410 : vector<8x128xf32>
    %c1_198 = arith.constant 1 : index
    %c7_199 = arith.constant 7 : index
    %c0_200 = arith.constant 0 : index
    %c0_201 = arith.constant 0 : index
    %412 = vector.load %arg3[%c1_198, %c7_199, %c0_200, %c0_201] : memref<2x8x8x128xf32, #tpu.memory_space<vmem>>, vector<1x1x8x128xf32>
    %413 = vector.shape_cast %412 : vector<1x1x8x128xf32> to vector<8x128xf32>
    %414 = vector.shape_cast %411 : vector<8x128xf32> to vector<1x1x8x128xf32>
    tpu.vector_store %arg3[%c1_198, %c7_199, %c0_200, %c0_201], %414 {strides = array<i32>} : memref<2x8x8x128xf32, #tpu.memory_space<vmem>>, vector<1x1x8x128xf32>,
    %c0_202 = arith.constant 0 : index
    %c0_203 = arith.constant 0 : index
    %c0_204 = arith.constant 0 : index
    %415 = vector.load %arg4[%c0_202, %c0_203, %c0_204] : memref<2x8x128xf32, #tpu.memory_space<vmem>>, vector<1x8x128xf32>
    %416 = vector.shape_cast %415 : vector<1x8x128xf32> to vector<8x128xf32>
    %417 = vector.shape_cast %390 : vector<8x128xf32> to vector<1x8x128xf32>
    tpu.vector_store %arg4[%c0_202, %c0_203, %c0_204], %417 {strides = array<i32>} : memref<2x8x128xf32, #tpu.memory_space<vmem>>, vector<1x8x128xf32>,
    %c0_205 = arith.constant 0 : index
    %c0_206 = arith.constant 0 : index
    %c0_207 = arith.constant 0 : index
    %418 = vector.load %arg5[%c0_205, %c0_206, %c0_207] : memref<2x8x128xf32, #tpu.memory_space<vmem>>, vector<1x8x128xf32>
    %419 = vector.shape_cast %418 : vector<1x8x128xf32> to vector<8x128xf32>
    %420 = vector.shape_cast %387 : vector<8x128xf32> to vector<1x8x128xf32>
    tpu.vector_store %arg5[%c0_205, %c0_206, %c0_207], %420 {strides = array<i32>} : memref<2x8x128xf32, #tpu.memory_space<vmem>>, vector<1x8x128xf32>,
    %c1_208 = arith.constant 1 : index
    %c0_209 = arith.constant 0 : index
    %c0_210 = arith.constant 0 : index
    %421 = vector.load %arg4[%c1_208, %c0_209, %c0_210] : memref<2x8x128xf32, #tpu.memory_space<vmem>>, vector<1x8x128xf32>
    %422 = vector.shape_cast %421 : vector<1x8x128xf32> to vector<8x128xf32>
    %423 = vector.shape_cast %411 : vector<8x128xf32> to vector<1x8x128xf32>
    tpu.vector_store %arg4[%c1_208, %c0_209, %c0_210], %423 {strides = array<i32>} : memref<2x8x128xf32, #tpu.memory_space<vmem>>, vector<1x8x128xf32>,
    %c1_211 = arith.constant 1 : index
    %c0_212 = arith.constant 0 : index
    %c0_213 = arith.constant 0 : index
    %424 = vector.load %arg5[%c1_211, %c0_212, %c0_213] : memref<2x8x128xf32, #tpu.memory_space<vmem>>, vector<1x8x128xf32>
    %425 = vector.shape_cast %424 : vector<1x8x128xf32> to vector<8x128xf32>
    %426 = vector.shape_cast %408 : vector<8x128xf32> to vector<1x8x128xf32>
    tpu.vector_store %arg5[%c1_211, %c0_212, %c0_213], %426 {strides = array<i32>} : memref<2x8x128xf32, #tpu.memory_space<vmem>>, vector<1x8x128xf32>,
    return
  }
  func.func @transform_0(%arg0: i32) -> (i32, i32, i32, i32) {
    %c0_i32 = arith.constant 0 : i32
    %c0_i32_0 = arith.constant 0 : i32
    %c0_i32_1 = arith.constant 0 : i32
    %c0_i32_2 = arith.constant 0 : i32
    return %c0_i32, %arg0, %c0_i32_0, %c0_i32_1 : i32, i32, i32, i32
  }
  func.func @transform_1(%arg0: i32) -> (i32, i32, i32) {
    %c0_i32 = arith.constant 0 : i32
    %c0_i32_0 = arith.constant 0 : i32
    %c0_i32_1 = arith.constant 0 : i32
    %c0_i32_2 = arith.constant 0 : i32
    return %c0_i32, %c0_i32_0, %c0_i32_1 : i32, i32, i32
  }
  func.func @transform_2(%arg0: i32) -> (i32, i32, i32, i32) {
    %c0_i32 = arith.constant 0 : i32
    %c0_i32_0 = arith.constant 0 : i32
    %c0_i32_1 = arith.constant 0 : i32
    %c0_i32_2 = arith.constant 0 : i32
    return %c0_i32, %arg0, %c0_i32_0, %c0_i32_1 : i32, i32, i32, i32
  }
}

</mosaic_0001>

<llo_original>
// kernel: bilstm_forward.1
$region0: #{bilstm_forward.1}
  #allocation0 [shape = 'u32[]', space=smem, size = 0x4, offset = 0x4, fixed_abs, tag = 'smem constant byte address 0x4 - core index']
  #allocation1 [shape = 'u32[72,128]{1,0:T(1,128)}', space=vmem, size = 0x9000, scoped, tag = 'internal scratch']
  #allocation2 [shape = 'f32[2,8,128]{2,1,0:T(8,128)}', space=vmem, size = 0x2000, scoped, tag = 'scratch operand']
  #allocation3 [shape = 'f32[2,8,128]{2,1,0:T(8,128)}', space=vmem, size = 0x2000, scoped, tag = 'scratch operand']
  %s0 = inlined_call_operand.vmem [shape: f32[2,16,8,512], index: 0, kind: input, shape index: {}]
  %s1 = inlined_call_operand.vmem [shape: f32[2,128,512], index: 1, kind: input, shape index: {}]
  %s2 = inlined_call_operand.vmem [shape: f32[2,16,8,128], index: 2, kind: output, shape index: {}]
  %s3 = sld [smem:[#allocation0]]
  $region102: #{bilstm_forward.1} parent=0
    _
  %s5 = ssub.s32 1, %s3
  %s6 = scalar_select 0, %s5, %s3
  $region1: #{bilstm_forward.1} parent=0
    #allocation4 [shape = 'u8[524288]{0}', space=vmem, size = 0x80000, scoped, tag = 'input window, operand 0']
    #allocation5 [shape = 'u8[131072]{0}', space=vmem, size = 0x20000, scoped, tag = 'output window, operand 0']
    loop: start=0, step=1, limit=4
    $region2: #{bilstm_forward.1} parent=1 // loop_pre_header
      _
    $region3: #{bilstm_forward.1} parent=1 // loop_header
      %s8 = sphi 0, %s12
      %p9 = scmp.ge.s32.totalorder %s8, 4
      %s18 = sphi 0, %s20
      %s21 = sphi 0, %s18
      %s22 = sphi 0, %s21
      %s38 = sphi 0, %s22
      %s42 = sphi 0, %s42
      %s44 = sphi 0, %s42
      %s45 = sphi 0, %s44
      %s59 = sphi 0, %s45
      %s65 = sphi 0, %s67
      %s68 = sphi 0, %s65
      %s69 = sphi 0, %s68
      %s85 = sphi 0, %s69
    $region4: #{bilstm_forward.1} parent=1 // loop_header_branch
      %11 = sbr.rel (%p9) target = $region8
    $region5: #{bilstm_forward.1} parent=1 // loop_body
      %s13 = ssub.s32 %s8, 1
      %s14 = ssub.s32 %s8, 2
      %s15 = sadd.s32 %s8, 1
      %s16 = ssub.s32 %s8, %s15
      %p17 = scmp.eq.s32.totalorder %s16, 0
      %s19 = sadd.s32 %s18, 1
      %s20 = scalar_select %p17, %s18, %s19
      %p23 = pneg %p17
      %p24 = scmp.eq.s32.totalorder %s8, 1
      %p25 = por %p23, %p24
      %p26 = scmp.ne.s32.totalorder %s18, %s21
      %p27 = scmp.eq.s32.totalorder %s8, 0
      %p28 = por %p26, %p27
      %p29 = scmp.ne.s32.totalorder %s18, %s21
      %p30 = scmp.eq.s32.totalorder %s13, 1
      %p31 = por %p29, %p30
      %p32 = scmp.ne.s32.totalorder %s21, %s22
      %p33 = scmp.eq.s32.totalorder %s13, 0
      %p34 = por %p32, %p33
      %p35 = scmp.ne.s32.totalorder %s21, %s22
      %p36 = scmp.eq.s32.totalorder %s14, 1
      %p37 = por %p35, %p36
      %p39 = scmp.ne.s32.totalorder %s22, %s38
      %p40 = scmp.eq.s32.totalorder %s14, 0
      %p41 = por %p39, %p40
      %s43 = sadd.s32 %s42, 1
      %p46 = scmp.eq.s32.totalorder %s8, 1
      %p47 = scmp.ne.s32.totalorder %s42, %s44
      %p48 = scmp.eq.s32.totalorder %s8, 0
      %p49 = por %p47, %p48
      %p50 = scmp.ne.s32.totalorder %s42, %s44
      %p51 = scmp.eq.s32.totalorder %s13, 1
      %p52 = por %p50, %p51
      %p53 = scmp.ne.s32.totalorder %s44, %s45
      %p54 = scmp.eq.s32.totalorder %s13, 0
      %p55 = por %p53, %p54
      %p56 = scmp.ne.s32.totalorder %s44, %s45
      %p57 = scmp.eq.s32.totalorder %s14, 1
      %p58 = por %p56, %p57
      %p60 = scmp.ne.s32.totalorder %s45, %s59
      %p61 = scmp.eq.s32.totalorder %s14, 0
      %p62 = por %p60, %p61
      %s63 = ssub.s32 %s8, %s15
      %p64 = scmp.eq.s32.totalorder %s63, 0
      %s66 = sadd.s32 %s65, 1
      %s67 = scalar_select %p64, %s65, %s66
      %p70 = pneg %p64
      %p71 = scmp.eq.s32.totalorder %s8, 1
      %p72 = por %p70, %p71
      %p73 = scmp.ne.s32.totalorder %s65, %s68
      %p74 = scmp.eq.s32.totalorder %s8, 0
      %p75 = por %p73, %p74
      %p76 = scmp.ne.s32.totalorder %s65, %s68
      %p77 = scmp.eq.s32.totalorder %s13, 1
      %p78 = por %p76, %p77
      %p79 = scmp.ne.s32.totalorder %s68, %s69
      %p80 = scmp.eq.s32.totalorder %s13, 0
      %p81 = por %p79, %p80
      %p82 = scmp.ne.s32.totalorder %s68, %s69
      %p83 = scmp.eq.s32.totalorder %s14, 1
      %p84 = por %p82, %p83
      %p86 = scmp.ne.s32.totalorder %s69, %s85
      %p87 = scmp.eq.s32.totalorder %s14, 0
      %p88 = por %p86, %p87
      %p89 = scmp.le.s32.totalorder 1, %s8
      %p90 = scmp.lt.s32.totalorder %s8, 3
      %p91 = pnand %p89, %p90
      %p92 = pneg %p91
      // Predicated region
      $region9: #{bilstm_forward.1} parent=5 // pred_check
        _
      $region10: #{bilstm_forward.1} parent=5 // pred_check_branch
        %94 = sbr.rel (%p91) target = $region12
      $region11: #{bilstm_forward.1} parent=5 // pred_region
        %s95 = ssub.s32 %s8, 1
        // Predicated region
        $region13: #{bilstm_forward.1} parent=11 // pred_check
          %p96 = pneg %p55
        $region14: #{bilstm_forward.1} parent=11 // pred_check_branch
          %98 = sbr.rel (%p96) target = $region16
        $region15: #{bilstm_forward.1} parent=11 // pred_region
          _
        $region16: #{bilstm_forward.1} parent=11 // pred_fallthru
          _
      $region12: #{bilstm_forward.1} parent=5 // pred_fallthru
        _
      %p99 = scmp.lt.s32.totalorder %s8, 2
      // Predicated region
      $region17: #{bilstm_forward.1} parent=5 // pred_check
        %p100 = pneg %p99
      $region18: #{bilstm_forward.1} parent=5 // pred_check_branch
        %102 = sbr.rel (%p100) target = $region20
      $region19: #{bilstm_forward.1} parent=5 // pred_region
        // Predicated region
        $region21: #{bilstm_forward.1} parent=19 // pred_check
          %p103 = pneg %p28
        $region22: #{bilstm_forward.1} parent=19 // pred_check_branch
          %105 = sbr.rel (%p103) target = $region24
        $region23: #{bilstm_forward.1} parent=19 // pred_region
          %s106 = sand.u32 %s18, 1
          %s107 = sand.u32 %s18, 1
          %s108 = smul.addr %s107, 512
          %s109 = scalar_lea.vmem [#allocation4], %s108
          %s110 = smul.u32 8, %s8
          %s111 = smul.addr %s110, 4
          %s112 = smul.addr %s111, 8
          %s113 = scalar_lea.vmem %s0, %s112
          // Predicated region
          $region25: #{bilstm_forward.1} parent=23 // pred_check
            _
          $region26: #{bilstm_forward.1} parent=23 // pred_check_branch
            %115 = sbr.rel (0) target = $region28
          $region27: #{bilstm_forward.1} parent=23 // pred_region
            // Predicated region
            $region29: #{bilstm_forward.1} parent=27 // pred_check
              _
            $region30: #{bilstm_forward.1} parent=27 // pred_check_branch
              %117 = sbr.rel (0) target = $region32
            $region31: #{bilstm_forward.1} parent=27 // pred_region
              loop: start=0, step=1, limit=1
              $region33: #{bilstm_forward.1} parent=31 // loop_pre_header
                _
              $region34: #{bilstm_forward.1} parent=31 // loop_header
                %s119 = sphi 0, %s123
                %p120 = scmp.ge.s32.totalorder %s119, 1
                %s124 = sphi %s113, %s113
                %s125 = sphi %s109, %s109
              $region35: #{bilstm_forward.1} parent=31 // loop_header_branch
                %122 = sbr.rel (%p120) target = $region39
              $region36: #{bilstm_forward.1} parent=31 // loop_body
                %v126 = vld [vmem:[%s124] sm:$0xff]
                %127 = vst [vmem:[%s125] sm:$0xff] %v126
                %v128 = vld [vmem:[%s124 + $0x8] sm:$0xff]
                %129 = vst [vmem:[%s125 + $0x8] sm:$0xff] %v128
                %v130 = vld [vmem:[%s124 + $0x10] sm:$0xff]
                %131 = vst [vmem:[%s125 + $0x10] sm:$0xff] %v130
                %v132 = vld [vmem:[%s124 + $0x18] sm:$0xff]
                %133 = vst [vmem:[%s125 + $0x18] sm:$0xff] %v132
                %v134 = vld [vmem:[%s124 + $0x20] sm:$0xff]
                %135 = vst [vmem:[%s125 + $0x20] sm:$0xff] %v134
                %v136 = vld [vmem:[%s124 + $0x28] sm:$0xff]
                %137 = vst [vmem:[%s125 + $0x28] sm:$0xff] %v136
                %v138 = vld [vmem:[%s124 + $0x30] sm:$0xff]
                %139 = vst [vmem:[%s125 + $0x30] sm:$0xff] %v138
                %v140 = vld [vmem:[%s124 + $0x38] sm:$0xff]
                %141 = vst [vmem:[%s125 + $0x38] sm:$0xff] %v140
                %v142 = vld [vmem:[%s124 + $0x40] sm:$0xff]
                %143 = vst [vmem:[%s125 + $0x40] sm:$0xff] %v142
                %v144 = vld [vmem:[%s124 + $0x48] sm:$0xff]
                %145 = vst [vmem:[%s125 + $0x48] sm:$0xff] %v144
                %v146 = vld [vmem:[%s124 + $0x50] sm:$0xff]
                %147 = vst [vmem:[%s125 + $0x50] sm:$0xff] %v146
                %v148 = vld [vmem:[%s124 + $0x58] sm:$0xff]
                %149 = vst [vmem:[%s125 + $0x58] sm:$0xff] %v148
                %v150 = vld [vmem:[%s124 + $0x60] sm:$0xff]
                %151 = vst [vmem:[%s125 + $0x60] sm:$0xff] %v150
                %v152 = vld [vmem:[%s124 + $0x68] sm:$0xff]
                %153 = vst [vmem:[%s125 + $0x68] sm:$0xff] %v152
                %v154 = vld [vmem:[%s124 + $0x70] sm:$0xff]
                %155 = vst [vmem:[%s125 + $0x70] sm:$0xff] %v154
                %v156 = vld [vmem:[%s124 + $0x78] sm:$0xff]
                %157 = vst [vmem:[%s125 + $0x78] sm:$0xff] %v156
                %v158 = vld [vmem:[%s124 + $0x80] sm:$0xff]
                %159 = vst [vmem:[%s125 + $0x80] sm:$0xff] %v158
                %v160 = vld [vmem:[%s124 + $0x88] sm:$0xff]
                %161 = vst [vmem:[%s125 + $0x88] sm:$0xff] %v160
                %v162 = vld [vmem:[%s124 + $0x90] sm:$0xff]
                %163 = vst [vmem:[%s125 + $0x90] sm:$0xff] %v162
                %v164 = vld [vmem:[%s124 + $0x98] sm:$0xff]
                %165 = vst [vmem:[%s125 + $0x98] sm:$0xff] %v164
                %v166 = vld [vmem:[%s124 + $0xa0] sm:$0xff]
                %167 = vst [vmem:[%s125 + $0xa0] sm:$0xff] %v166
                %v168 = vld [vmem:[%s124 + $0xa8] sm:$0xff]
                %169 = vst [vmem:[%s125 + $0xa8] sm:$0xff] %v168
                %v170 = vld [vmem:[%s124 + $0xb0] sm:$0xff]
                %171 = vst [vmem:[%s125 + $0xb0] sm:$0xff] %v170
                %v172 = vld [vmem:[%s124 + $0xb8] sm:$0xff]
                %173 = vst [vmem:[%s125 + $0xb8] sm:$0xff] %v172
                %v174 = vld [vmem:[%s124 + $0xc0] sm:$0xff]
                %175 = vst [vmem:[%s125 + $0xc0] sm:$0xff] %v174
                %v176 = vld [vmem:[%s124 + $0xc8] sm:$0xff]
                %177 = vst [vmem:[%s125 + $0xc8] sm:$0xff] %v176
                %v178 = vld [vmem:[%s124 + $0xd0] sm:$0xff]
                %179 = vst [vmem:[%s125 + $0xd0] sm:$0xff] %v178
                %v180 = vld [vmem:[%s124 + $0xd8] sm:$0xff]
                %181 = vst [vmem:[%s125 + $0xd8] sm:$0xff] %v180
                %v182 = vld [vmem:[%s124 + $0xe0] sm:$0xff]
                %183 = vst [vmem:[%s125 + $0xe0] sm:$0xff] %v182
                %v184 = vld [vmem:[%s124 + $0xe8] sm:$0xff]
                %185 = vst [vmem:[%s125 + $0xe8] sm:$0xff] %v184
                %v186 = vld [vmem:[%s124 + $0xf0] sm:$0xff]
                %187 = vst [vmem:[%s125 + $0xf0] sm:$0xff] %v186
                %v188 = vld [vmem:[%s124 + $0xf8] sm:$0xff]
                %189 = vst [vmem:[%s125 + $0xf8] sm:$0xff] %v188
                %v190 = vld [vmem:[%s124 + $0x200] sm:$0xff]
                %191 = vst [vmem:[%s125 + $0x100] sm:$0xff] %v190
                %v192 = vld [vmem:[%s124 + $0x208] sm:$0xff]
                %193 = vst [vmem:[%s125 + $0x108] sm:$0xff] %v192
                %v194 = vld [vmem:[%s124 + $0x210] sm:$0xff]
                %195 = vst [vmem:[%s125 + $0x110] sm:$0xff] %v194
                %v196 = vld [vmem:[%s124 + $0x218] sm:$0xff]
                %197 = vst [vmem:[%s125 + $0x118] sm:$0xff] %v196
                %v198 = vld [vmem:[%s124 + $0x220] sm:$0xff]
                %199 = vst [vmem:[%s125 + $0x120] sm:$0xff] %v198
                %v200 = vld [vmem:[%s124 + $0x228] sm:$0xff]
                %201 = vst [vmem:[%s125 + $0x128] sm:$0xff] %v200
                %v202 = vld [vmem:[%s124 + $0x230] sm:$0xff]
                %203 = vst [vmem:[%s125 + $0x130] sm:$0xff] %v202
                %v204 = vld [vmem:[%s124 + $0x238] sm:$0xff]
                %205 = vst [vmem:[%s125 + $0x138] sm:$0xff] %v204
                %v206 = vld [vmem:[%s124 + $0x240] sm:$0xff]
                %207 = vst [vmem:[%s125 + $0x140] sm:$0xff] %v206
                %v208 = vld [vmem:[%s124 + $0x248] sm:$0xff]
                %209 = vst [vmem:[%s125 + $0x148] sm:$0xff] %v208
                %v210 = vld [vmem:[%s124 + $0x250] sm:$0xff]
                %211 = vst [vmem:[%s125 + $0x150] sm:$0xff] %v210
                %v212 = vld [vmem:[%s124 + $0x258] sm:$0xff]
                %213 = vst [vmem:[%s125 + $0x158] sm:$0xff] %v212
                %v214 = vld [vmem:[%s124 + $0x260] sm:$0xff]
                %215 = vst [vmem:[%s125 + $0x160] sm:$0xff] %v214
                %v216 = vld [vmem:[%s124 + $0x268] sm:$0xff]
                %217 = vst [vmem:[%s125 + $0x168] sm:$0xff] %v216
                %v218 = vld [vmem:[%s124 + $0x270] sm:$0xff]
                %219 = vst [vmem:[%s125 + $0x170] sm:$0xff] %v218
                %v220 = vld [vmem:[%s124 + $0x278] sm:$0xff]
                %221 = vst [vmem:[%s125 + $0x178] sm:$0xff] %v220
                %v222 = vld [vmem:[%s124 + $0x280] sm:$0xff]
                %223 = vst [vmem:[%s125 + $0x180] sm:$0xff] %v222
                %v224 = vld [vmem:[%s124 + $0x288] sm:$0xff]
                %225 = vst [vmem:[%s125 + $0x188] sm:$0xff] %v224
                %v226 = vld [vmem:[%s124 + $0x290] sm:$0xff]
                %227 = vst [vmem:[%s125 + $0x190] sm:$0xff] %v226
                %v228 = vld [vmem:[%s124 + $0x298] sm:$0xff]
                %229 = vst [vmem:[%s125 + $0x198] sm:$0xff] %v228
                %v230 = vld [vmem:[%s124 + $0x2a0] sm:$0xff]
                %231 = vst [vmem:[%s125 + $0x1a0] sm:$0xff] %v230
                %v232 = vld [vmem:[%s124 + $0x2a8] sm:$0xff]
                %233 = vst [vmem:[%s125 + $0x1a8] sm:$0xff] %v232
                %v234 = vld [vmem:[%s124 + $0x2b0] sm:$0xff]
                %235 = vst [vmem:[%s125 + $0x1b0] sm:$0xff] %v234
                %v236 = vld [vmem:[%s124 + $0x2b8] sm:$0xff]
                %237 = vst [vmem:[%s125 + $0x1b8] sm:$0xff] %v236
                %v238 = vld [vmem:[%s124 + $0x2c0] sm:$0xff]
                %239 = vst [vmem:[%s125 + $0x1c0] sm:$0xff] %v238
                %v240 = vld [vmem:[%s124 + $0x2c8] sm:$0xff]
                %241 = vst [vmem:[%s125 + $0x1c8] sm:$0xff] %v240
                %v242 = vld [vmem:[%s124 + $0x2d0] sm:$0xff]
                %243 = vst [vmem:[%s125 + $0x1d0] sm:$0xff] %v242
                %v244 = vld [vmem:[%s124 + $0x2d8] sm:$0xff]
                %245 = vst [vmem:[%s125 + $0x1d8] sm:$0xff] %v244
                %v246 = vld [vmem:[%s124 + $0x2e0] sm:$0xff]
                %247 = vst [vmem:[%s125 + $0x1e0] sm:$0xff] %v246
                %v248 = vld [vmem:[%s124 + $0x2e8] sm:$0xff]
                %249 = vst [vmem:[%s125 + $0x1e8] sm:$0xff] %v248
                %v250 = vld [vmem:[%s124 + $0x2f0] sm:$0xff]
                %251 = vst [vmem:[%s125 + $0x1f0] sm:$0xff] %v250
                %v252 = vld [vmem:[%s124 + $0x2f8] sm:$0xff]
                %253 = vst [vmem:[%s125 + $0x1f8] sm:$0xff] %v252
              $region37: #{bilstm_forward.1} parent=31 // loop_footer
                %s123 = sadd.s32 1, %s119
              $region38: #{bilstm_forward.1} parent=31 // loop_footer_branch
                %118 = sbr.rel target = $region34
              $region39: #{bilstm_forward.1} parent=31 // loop_exit
                _
            $region32: #{bilstm_forward.1} parent=27 // pred_fallthru
              _
            // Predicated region
            $region40: #{bilstm_forward.1} parent=27 // pred_check
              _
            $region41: #{bilstm_forward.1} parent=27 // pred_check_branch
              %255 = sbr.rel target = $region43
            $region42: #{bilstm_forward.1} parent=27 // pred_region
              _
            $region43: #{bilstm_forward.1} parent=27 // pred_fallthru
              _
          $region28: #{bilstm_forward.1} parent=23 // pred_fallthru
            _
          %256 = vnop
        $region24: #{bilstm_forward.1} parent=19 // pred_fallthru
          _
      $region20: #{bilstm_forward.1} parent=5 // pred_fallthru
        _
      %p257 = scmp.le.s32.totalorder 1, %s8
      %p258 = scmp.lt.s32.totalorder %s8, 3
      %p259 = pnand %p257, %p258
      %p260 = pneg %p259
      // Predicated region
      $region44: #{bilstm_forward.1} parent=5 // pred_check
        _
      $region45: #{bilstm_forward.1} parent=5 // pred_check_branch
        %262 = sbr.rel (%p259) target = $region47
      $region46: #{bilstm_forward.1} parent=5 // pred_region
        %s263 = ssub.s32 %s8, 1
        %s264 = sand.u32 %s21, 1
        %s265 = sand.u32 %s21, 1
        %s266 = smul.addr %s265, 512
        %s267 = scalar_lea.vmem [#allocation4], %s266
        // Predicated region
        $region48: #{bilstm_forward.1} parent=46 // pred_check
          %p268 = pneg %p34
        $region49: #{bilstm_forward.1} parent=46 // pred_check_branch
          %270 = sbr.rel (%p268) target = $region51
        $region50: #{bilstm_forward.1} parent=46 // pred_region
          _
        $region51: #{bilstm_forward.1} parent=46 // pred_fallthru
          _
        %s271 = sand.u32 %s21, 1
        %s272 = sand.u32 %s21, 1
        %s273 = smul.addr %s272, 512
        %s274 = scalar_lea.vmem [#allocation4], %s273
        %p275 = pneg %p34
        %p276 = pneg %p31
        %p277 = pneg %p55
        %p278 = pneg %p52
        %p279 = pneg %p81
        %p280 = pneg %p78
        %s281 = sand.u32 %s68, 1
        %s282 = sand.u32 %s68, 1
        %s283 = smul.addr %s282, 128
        %s284 = scalar_lea.vmem [#allocation5], %s283
        %s285 = smul.u32 8, %s13
        %s286 = smul.u32 8, %s13
        %p287 = scmp.eq.s32.totalorder %s13, 0
        // Predicated region
        $region52: #{bilstm_forward.1} parent=46 // pred_check
          %p288 = pneg %p287
        $region53: #{bilstm_forward.1} parent=46 // pred_check_branch
          %290 = sbr.rel (%p288) target = $region55
        $region54: #{bilstm_forward.1} parent=46 // pred_region
          %291 = vst [vmem:[#allocation2] sm:$0xff] 0.0
          %292 = vst [vmem:[#allocation2 + $0x8] sm:$0xff] 0.0
          %293 = vst [vmem:[#allocation3] sm:$0xff] 0.0
          %294 = vst [vmem:[#allocation3 + $0x8] sm:$0xff] 0.0
        $region55: #{bilstm_forward.1} parent=46 // pred_fallthru
          _
        %v295 = vld [vmem:[#allocation2] sm:$0xff]
        %v296 = vld [vmem:[#allocation3] sm:$0xff]
        %s297 = scalar_lea.vmem [#allocation2], 8
        %v298 = vld [vmem:[%s297] sm:$0xff]
        %s299 = scalar_lea.vmem [#allocation3], 8
        %v300 = vld [vmem:[%s299] sm:$0xff]
        %v301 = vld [vmem:[%s1] sm:$0xff]
        %v302 = vld [vmem:[%s1 + $0x8] sm:$0xff]
        %v303 = vld [vmem:[%s1 + $0x10] sm:$0xff]
        %v304 = vld [vmem:[%s1 + $0x18] sm:$0xff]
        %v305 = vld [vmem:[%s1 + $0x20] sm:$0xff]
        %v306 = vld [vmem:[%s1 + $0x28] sm:$0xff]
        %v307 = vld [vmem:[%s1 + $0x30] sm:$0xff]
        %v308 = vld [vmem:[%s1 + $0x38] sm:$0xff]
        %v309 = vld [vmem:[%s1 + $0x40] sm:$0xff]
        %v310 = vld [vmem:[%s1 + $0x48] sm:$0xff]
        %v311 = vld [vmem:[%s1 + $0x50] sm:$0xff]
        %v312 = vld [vmem:[%s1 + $0x58] sm:$0xff]
        %v313 = vld [vmem:[%s1 + $0x60] sm:$0xff]
        %v314 = vld [vmem:[%s1 + $0x68] sm:$0xff]
        %v315 = vld [vmem:[%s1 + $0x70] sm:$0xff]
        %v316 = vld [vmem:[%s1 + $0x78] sm:$0xff]
        %v317 = vld [vmem:[%s1 + $0x80] sm:$0xff]
        %v318 = vld [vmem:[%s1 + $0x88] sm:$0xff]
        %v319 = vld [vmem:[%s1 + $0x90] sm:$0xff]
        %v320 = vld [vmem:[%s1 + $0x98] sm:$0xff]
        %v321 = vld [vmem:[%s1 + $0xa0] sm:$0xff]
        %v322 = vld [vmem:[%s1 + $0xa8] sm:$0xff]
        %v323 = vld [vmem:[%s1 + $0xb0] sm:$0xff]
        %v324 = vld [vmem:[%s1 + $0xb8] sm:$0xff]
        %v325 = vld [vmem:[%s1 + $0xc0] sm:$0xff]
        %v326 = vld [vmem:[%s1 + $0xc8] sm:$0xff]
        %v327 = vld [vmem:[%s1 + $0xd0] sm:$0xff]
        %v328 = vld [vmem:[%s1 + $0xd8] sm:$0xff]
        %v329 = vld [vmem:[%s1 + $0xe0] sm:$0xff]
        %v330 = vld [vmem:[%s1 + $0xe8] sm:$0xff]
        %v331 = vld [vmem:[%s1 + $0xf0] sm:$0xff]
        %v332 = vld [vmem:[%s1 + $0xf8] sm:$0xff]
        %v333 = vld [vmem:[%s1 + $0x100] sm:$0xff]
        %v334 = vld [vmem:[%s1 + $0x108] sm:$0xff]
        %v335 = vld [vmem:[%s1 + $0x110] sm:$0xff]
        %v336 = vld [vmem:[%s1 + $0x118] sm:$0xff]
        %v337 = vld [vmem:[%s1 + $0x120] sm:$0xff]
        %v338 = vld [vmem:[%s1 + $0x128] sm:$0xff]
        %v339 = vld [vmem:[%s1 + $0x130] sm:$0xff]
        %v340 = vld [vmem:[%s1 + $0x138] sm:$0xff]
        %v341 = vld [vmem:[%s1 + $0x140] sm:$0xff]
        %v342 = vld [vmem:[%s1 + $0x148] sm:$0xff]
        %v343 = vld [vmem:[%s1 + $0x150] sm:$0xff]
        %v344 = vld [vmem:[%s1 + $0x158] sm:$0xff]
        %v345 = vld [vmem:[%s1 + $0x160] sm:$0xff]
        %v346 = vld [vmem:[%s1 + $0x168] sm:$0xff]
        %v347 = vld [vmem:[%s1 + $0x170] sm:$0xff]
        %v348 = vld [vmem:[%s1 + $0x178] sm:$0xff]
        %v349 = vld [vmem:[%s1 + $0x180] sm:$0xff]
        %v350 = vld [vmem:[%s1 + $0x188] sm:$0xff]
        %v351 = vld [vmem:[%s1 + $0x190] sm:$0xff]
        %v352 = vld [vmem:[%s1 + $0x198] sm:$0xff]
        %v353 = vld [vmem:[%s1 + $0x1a0] sm:$0xff]
        %v354 = vld [vmem:[%s1 + $0x1a8] sm:$0xff]
        %v355 = vld [vmem:[%s1 + $0x1b0] sm:$0xff]
        %v356 = vld [vmem:[%s1 + $0x1b8] sm:$0xff]
        %v357 = vld [vmem:[%s1 + $0x1c0] sm:$0xff]
        %v358 = vld [vmem:[%s1 + $0x1c8] sm:$0xff]
        %v359 = vld [vmem:[%s1 + $0x1d0] sm:$0xff]
        %v360 = vld [vmem:[%s1 + $0x1d8] sm:$0xff]
        %v361 = vld [vmem:[%s1 + $0x1e0] sm:$0xff]
        %v362 = vld [vmem:[%s1 + $0x1e8] sm:$0xff]
        %v363 = vld [vmem:[%s1 + $0x1f0] sm:$0xff]
        %v364 = vld [vmem:[%s1 + $0x1f8] sm:$0xff]
        %s365 = scalar_lea.vmem %s1, 512
        %v366 = vld [vmem:[%s365] sm:$0xff]
        %v367 = vld [vmem:[%s365 + $0x8] sm:$0xff]
        %v368 = vld [vmem:[%s365 + $0x10] sm:$0xff]
        %v369 = vld [vmem:[%s365 + $0x18] sm:$0xff]
        %v370 = vld [vmem:[%s365 + $0x20] sm:$0xff]
        %v371 = vld [vmem:[%s365 + $0x28] sm:$0xff]
        %v372 = vld [vmem:[%s365 + $0x30] sm:$0xff]
        %v373 = vld [vmem:[%s365 + $0x38] sm:$0xff]
        %v374 = vld [vmem:[%s365 + $0x40] sm:$0xff]
        %v375 = vld [vmem:[%s365 + $0x48] sm:$0xff]
        %v376 = vld [vmem:[%s365 + $0x50] sm:$0xff]
        %v377 = vld [vmem:[%s365 + $0x58] sm:$0xff]
        %v378 = vld [vmem:[%s365 + $0x60] sm:$0xff]
        %v379 = vld [vmem:[%s365 + $0x68] sm:$0xff]
        %v380 = vld [vmem:[%s365 + $0x70] sm:$0xff]
        %v381 = vld [vmem:[%s365 + $0x78] sm:$0xff]
        %v382 = vld [vmem:[%s365 + $0x80] sm:$0xff]
        %v383 = vld [vmem:[%s365 + $0x88] sm:$0xff]
        %v384 = vld [vmem:[%s365 + $0x90] sm:$0xff]
        %v385 = vld [vmem:[%s365 + $0x98] sm:$0xff]
        %v386 = vld [vmem:[%s365 + $0xa0] sm:$0xff]
        %v387 = vld [vmem:[%s365 + $0xa8] sm:$0xff]
        %v388 = vld [vmem:[%s365 + $0xb0] sm:$0xff]
        %v389 = vld [vmem:[%s365 + $0xb8] sm:$0xff]
        %v390 = vld [vmem:[%s365 + $0xc0] sm:$0xff]
        %v391 = vld [vmem:[%s365 + $0xc8] sm:$0xff]
        %v392 = vld [vmem:[%s365 + $0xd0] sm:$0xff]
        %v393 = vld [vmem:[%s365 + $0xd8] sm:$0xff]
        %v394 = vld [vmem:[%s365 + $0xe0] sm:$0xff]
        %v395 = vld [vmem:[%s365 + $0xe8] sm:$0xff]
        %v396 = vld [vmem:[%s365 + $0xf0] sm:$0xff]
        %v397 = vld [vmem:[%s365 + $0xf8] sm:$0xff]
        %v398 = vld [vmem:[%s365 + $0x100] sm:$0xff]
        %v399 = vld [vmem:[%s365 + $0x108] sm:$0xff]
        %v400 = vld [vmem:[%s365 + $0x110] sm:$0xff]
        %v401 = vld [vmem:[%s365 + $0x118] sm:$0xff]
        %v402 = vld [vmem:[%s365 + $0x120] sm:$0xff]
        %v403 = vld [vmem:[%s365 + $0x128] sm:$0xff]
        %v404 = vld [vmem:[%s365 + $0x130] sm:$0xff]
        %v405 = vld [vmem:[%s365 + $0x138] sm:$0xff]
        %v406 = vld [vmem:[%s365 + $0x140] sm:$0xff]
        %v407 = vld [vmem:[%s365 + $0x148] sm:$0xff]
        %v408 = vld [vmem:[%s365 + $0x150] sm:$0xff]
        %v409 = vld [vmem:[%s365 + $0x158] sm:$0xff]
        %v410 = vld [vmem:[%s365 + $0x160] sm:$0xff]
        %v411 = vld [vmem:[%s365 + $0x168] sm:$0xff]
        %v412 = vld [vmem:[%s365 + $0x170] sm:$0xff]
        %v413 = vld [vmem:[%s365 + $0x178] sm:$0xff]
        %v414 = vld [vmem:[%s365 + $0x180] sm:$0xff]
        %v415 = vld [vmem:[%s365 + $0x188] sm:$0xff]
        %v416 = vld [vmem:[%s365 + $0x190] sm:$0xff]
        %v417 = vld [vmem:[%s365 + $0x198] sm:$0xff]
        %v418 = vld [vmem:[%s365 + $0x1a0] sm:$0xff]
        %v419 = vld [vmem:[%s365 + $0x1a8] sm:$0xff]
        %v420 = vld [vmem:[%s365 + $0x1b0] sm:$0xff]
        %v421 = vld [vmem:[%s365 + $0x1b8] sm:$0xff]
        %v422 = vld [vmem:[%s365 + $0x1c0] sm:$0xff]
        %v423 = vld [vmem:[%s365 + $0x1c8] sm:$0xff]
        %v424 = vld [vmem:[%s365 + $0x1d0] sm:$0xff]
        %v425 = vld [vmem:[%s365 + $0x1d8] sm:$0xff]
        %v426 = vld [vmem:[%s365 + $0x1e0] sm:$0xff]
        %v427 = vld [vmem:[%s365 + $0x1e8] sm:$0xff]
        %v428 = vld [vmem:[%s365 + $0x1f0] sm:$0xff]
        %v429 = vld [vmem:[%s365 + $0x1f8] sm:$0xff]
        %v430 = vld [vmem:[%s267] sm:$0xff]
        %v431 = vld [vmem:[%s267 + $0x8] sm:$0xff]
        %v432 = vld [vmem:[%s267 + $0x10] sm:$0xff]
        %v433 = vld [vmem:[%s267 + $0x18] sm:$0xff]
        %434 = vmatpush.msra.mxu0 %v361
        %435 = vmatpush.msra.mxu0 %v357
        %436 = vmatpush.msra.mxu0 %v353
        %437 = vmatpush.msra.mxu0 %v349
        %438 = vmatpush.msra.mxu0 %v345
        %439 = vmatpush.msra.mxu0 %v341
        %440 = vmatpush.msra.mxu0 %v337
        %441 = vmatpush.msra.mxu0 %v333
        %442 = vmatpush.msra.mxu0 %v329
        %443 = vmatpush.msra.mxu0 %v325
        %444 = vmatpush.msra.mxu0 %v321
        %445 = vmatpush.msra.mxu0 %v317
        %446 = vmatpush.msra.mxu0 %v313
        %447 = vmatpush.msra.mxu0 %v309
        %448 = vmatpush.msra.mxu0 %v305
        %449 = vmatpush.msra.mxu0 %v301
        %450 = vmatmul.f32.gmra.mxu0 %v295
        %v451 = vpop.f32.mrf.mxu0
        %v452 = vadd.f32 0.0, %v451
        %453 = vdwg.mxu0
        %454 = vmatpush.msra.mxu0 %v362
        %455 = vmatpush.msra.mxu0 %v358
        %456 = vmatpush.msra.mxu0 %v354
        %457 = vmatpush.msra.mxu0 %v350
        %458 = vmatpush.msra.mxu0 %v346
        %459 = vmatpush.msra.mxu0 %v342
        %460 = vmatpush.msra.mxu0 %v338
        %461 = vmatpush.msra.mxu0 %v334
        %462 = vmatpush.msra.mxu0 %v330
        %463 = vmatpush.msra.mxu0 %v326
        %464 = vmatpush.msra.mxu0 %v322
        %465 = vmatpush.msra.mxu0 %v318
        %466 = vmatpush.msra.mxu0 %v314
        %467 = vmatpush.msra.mxu0 %v310
        %468 = vmatpush.msra.mxu0 %v306
        %469 = vmatpush.msra.mxu0 %v302
        %470 = vmatmul.f32.gmra.mxu0 %v295
        %v471 = vpop.f32.mrf.mxu0
        %v472 = vadd.f32 0.0, %v471
        %473 = vdwg.mxu0
        %474 = vmatpush.msra.mxu0 %v363
        %475 = vmatpush.msra.mxu0 %v359
        %476 = vmatpush.msra.mxu0 %v355
        %477 = vmatpush.msra.mxu0 %v351
        %478 = vmatpush.msra.mxu0 %v347
        %479 = vmatpush.msra.mxu0 %v343
        %480 = vmatpush.msra.mxu0 %v339
        %481 = vmatpush.msra.mxu0 %v335
        %482 = vmatpush.msra.mxu0 %v331
        %483 = vmatpush.msra.mxu0 %v327
        %484 = vmatpush.msra.mxu0 %v323
        %485 = vmatpush.msra.mxu0 %v319
        %486 = vmatpush.msra.mxu0 %v315
        %487 = vmatpush.msra.mxu0 %v311
        %488 = vmatpush.msra.mxu0 %v307
        %489 = vmatpush.msra.mxu0 %v303
        %490 = vmatmul.f32.gmra.mxu0 %v295
        %v491 = vpop.f32.mrf.mxu0
        %v492 = vadd.f32 0.0, %v491
        %493 = vdwg.mxu0
        %494 = vmatpush.msra.mxu0 %v364
        %495 = vmatpush.msra.mxu0 %v360
        %496 = vmatpush.msra.mxu0 %v356
        %497 = vmatpush.msra.mxu0 %v352
        %498 = vmatpush.msra.mxu0 %v348
        %499 = vmatpush.msra.mxu0 %v344
        %500 = vmatpush.msra.mxu0 %v340
        %501 = vmatpush.msra.mxu0 %v336
        %502 = vmatpush.msra.mxu0 %v332
        %503 = vmatpush.msra.mxu0 %v328
        %504 = vmatpush.msra.mxu0 %v324
        %505 = vmatpush.msra.mxu0 %v320
        %506 = vmatpush.msra.mxu0 %v316
        %507 = vmatpush.msra.mxu0 %v312
        %508 = vmatpush.msra.mxu0 %v308
        %509 = vmatpush.msra.mxu0 %v304
        %510 = vmatmul.f32.gmra.mxu0 %v295
        %v511 = vpop.f32.mrf.mxu0
        %v512 = vadd.f32 0.0, %v511
        %513 = vdwg.mxu0
        %v514 = vadd.f32 %v430, %v452
        %v515 = vadd.f32 %v431, %v472
        %v516 = vadd.f32 %v432, %v492
        %v517 = vadd.f32 %v433, %v512
        %s518 = scalar_lea.vmem %s267, 256 [#allocation4]
        %v519 = vld [vmem:[%s518] sm:$0xff]
        %v520 = vld [vmem:[%s518 + $0x8] sm:$0xff]
        %v521 = vld [vmem:[%s518 + $0x10] sm:$0xff]
        %v522 = vld [vmem:[%s518 + $0x18] sm:$0xff]
        %523 = vmatpush.msra.mxu0 %v426
        %524 = vmatpush.msra.mxu0 %v422
        %525 = vmatpush.msra.mxu0 %v418
        %526 = vmatpush.msra.mxu0 %v414
        %527 = vmatpush.msra.mxu0 %v410
        %528 = vmatpush.msra.mxu0 %v406
        %529 = vmatpush.msra.mxu0 %v402
        %530 = vmatpush.msra.mxu0 %v398
        %531 = vmatpush.msra.mxu0 %v394
        %532 = vmatpush.msra.mxu0 %v390
        %533 = vmatpush.msra.mxu0 %v386
        %534 = vmatpush.msra.mxu0 %v382
        %535 = vmatpush.msra.mxu0 %v378
        %536 = vmatpush.msra.mxu0 %v374
        %537 = vmatpush.msra.mxu0 %v370
        %538 = vmatpush.msra.mxu0 %v366
        %539 = vmatmul.f32.gmra.mxu0 %v298
        %v540 = vpop.f32.mrf.mxu0
        %v541 = vadd.f32 0.0, %v540
        %542 = vdwg.mxu0
        %543 = vmatpush.msra.mxu0 %v427
        %544 = vmatpush.msra.mxu0 %v423
        %545 = vmatpush.msra.mxu0 %v419
        %546 = vmatpush.msra.mxu0 %v415
        %547 = vmatpush.msra.mxu0 %v411
        %548 = vmatpush.msra.mxu0 %v407
        %549 = vmatpush.msra.mxu0 %v403
        %550 = vmatpush.msra.mxu0 %v399
        %551 = vmatpush.msra.mxu0 %v395
        %552 = vmatpush.msra.mxu0 %v391
        %553 = vmatpush.msra.mxu0 %v387
        %554 = vmatpush.msra.mxu0 %v383
        %555 = vmatpush.msra.mxu0 %v379
        %556 = vmatpush.msra.mxu0 %v375
        %557 = vmatpush.msra.mxu0 %v371
        %558 = vmatpush.msra.mxu0 %v367
        %559 = vmatmul.f32.gmra.mxu0 %v298
        %v560 = vpop.f32.mrf.mxu0
        %v561 = vadd.f32 0.0, %v560
        %562 = vdwg.mxu0
        %563 = vmatpush.msra.mxu0 %v428
        %564 = vmatpush.msra.mxu0 %v424
        %565 = vmatpush.msra.mxu0 %v420
        %566 = vmatpush.msra.mxu0 %v416
        %567 = vmatpush.msra.mxu0 %v412
        %568 = vmatpush.msra.mxu0 %v408
        %569 = vmatpush.msra.mxu0 %v404
        %570 = vmatpush.msra.mxu0 %v400
        %571 = vmatpush.msra.mxu0 %v396
        %572 = vmatpush.msra.mxu0 %v392
        %573 = vmatpush.msra.mxu0 %v388
        %574 = vmatpush.msra.mxu0 %v384
        %575 = vmatpush.msra.mxu0 %v380
        %576 = vmatpush.msra.mxu0 %v376
        %577 = vmatpush.msra.mxu0 %v372
        %578 = vmatpush.msra.mxu0 %v368
        %579 = vmatmul.f32.gmra.mxu0 %v298
        %v580 = vpop.f32.mrf.mxu0
        %v581 = vadd.f32 0.0, %v580
        %582 = vdwg.mxu0
        %583 = vmatpush.msra.mxu0 %v429
        %584 = vmatpush.msra.mxu0 %v425
        %585 = vmatpush.msra.mxu0 %v421
        %586 = vmatpush.msra.mxu0 %v417
        %587 = vmatpush.msra.mxu0 %v413
        %588 = vmatpush.msra.mxu0 %v409
        %589 = vmatpush.msra.mxu0 %v405
        %590 = vmatpush.msra.mxu0 %v401
        %591 = vmatpush.msra.mxu0 %v397
        %592 = vmatpush.msra.mxu0 %v393
        %593 = vmatpush.msra.mxu0 %v389
        %594 = vmatpush.msra.mxu0 %v385
        %595 = vmatpush.msra.mxu0 %v381
        %596 = vmatpush.msra.mxu0 %v377
        %597 = vmatpush.msra.mxu0 %v373
        %598 = vmatpush.msra.mxu0 %v369
        %599 = vmatmul.f32.gmra.mxu0 %v298
        %v600 = vpop.f32.mrf.mxu0
        %v601 = vadd.f32 0.0, %v600
        %602 = vdwg.mxu0
        %v603 = vadd.f32 %v519, %v541
        %v604 = vadd.f32 %v520, %v561
        %v605 = vadd.f32 %v521, %v581
        %v606 = vadd.f32 %v522, %v601
        %v607 = vmul.f32 %v514, 0.5
        %v608 = vmul.f32 %v515, 0.5
        %v609 = vmul.f32 %v516, 0.5
        %v610 = vtanh.pop %v607
        %v611 = vtanh.pop %v608
        %v612 = vtanh.pop %v609
        %v613 = vadd.f32 %v610, 1.0
        %v614 = vadd.f32 %v611, 1.0
        %v615 = vadd.f32 %v612, 1.0
        %v616 = vmul.f32 %v613, 0.5
        %v617 = vmul.f32 %v614, 0.5
        %v618 = vmul.f32 %v615, 0.5
        %v619 = vtanh.pop %v517
        %v620 = vmul.f32 %v617, %v296
        %v621 = vmul.f32 %v616, %v619
        %v622 = vadd.f32 %v620, %v621
        %v623 = vtanh.pop %v622
        %v624 = vmul.f32 %v618, %v623
        %625 = vst [vmem:[%s284] sm:$0xff] %v624
        %v626 = vmul.f32 %v603, 0.5
        %v627 = vmul.f32 %v604, 0.5
        %v628 = vmul.f32 %v605, 0.5
        %v629 = vtanh.pop %v626
        %v630 = vtanh.pop %v627
        %v631 = vtanh.pop %v628
        %v632 = vadd.f32 %v629, 1.0
        %v633 = vadd.f32 %v630, 1.0
        %v634 = vadd.f32 %v631, 1.0
        %v635 = vmul.f32 %v632, 0.5
        %v636 = vmul.f32 %v633, 0.5
        %v637 = vmul.f32 %v634, 0.5
        %v638 = vtanh.pop %v606
        %v639 = vmul.f32 %v636, %v300
        %v640 = vmul.f32 %v635, %v638
        %v641 = vadd.f32 %v639, %v640
        %v642 = vtanh.pop %v641
        %v643 = vmul.f32 %v637, %v642
        %s644 = scalar_lea.vmem %s284, 64 [#allocation5]
        %645 = vst [vmem:[%s644] sm:$0xff] %v643
        %s646 = scalar_lea.vmem %s267, 32 [#allocation4]
        %v647 = vld [vmem:[%s646] sm:$0xff]
        %v648 = vld [vmem:[%s646 + $0x8] sm:$0xff]
        %v649 = vld [vmem:[%s646 + $0x10] sm:$0xff]
        %v650 = vld [vmem:[%s646 + $0x18] sm:$0xff]
        %651 = vmatpush.msra.mxu0 %v361
        %652 = vmatpush.msra.mxu0 %v357
        %653 = vmatpush.msra.mxu0 %v353
        %654 = vmatpush.msra.mxu0 %v349
        %655 = vmatpush.msra.mxu0 %v345
        %656 = vmatpush.msra.mxu0 %v341
        %657 = vmatpush.msra.mxu0 %v337
        %658 = vmatpush.msra.mxu0 %v333
        %659 = vmatpush.msra.mxu0 %v329
        %660 = vmatpush.msra.mxu0 %v325
        %661 = vmatpush.msra.mxu0 %v321
        %662 = vmatpush.msra.mxu0 %v317
        %663 = vmatpush.msra.mxu0 %v313
        %664 = vmatpush.msra.mxu0 %v309
        %665 = vmatpush.msra.mxu0 %v305
        %666 = vmatpush.msra.mxu0 %v301
        %667 = vmatmul.f32.gmra.mxu0 %v624
        %v668 = vpop.f32.mrf.mxu0
        %v669 = vadd.f32 0.0, %v668
        %670 = vdwg.mxu0
        %671 = vmatpush.msra.mxu0 %v362
        %672 = vmatpush.msra.mxu0 %v358
        %673 = vmatpush.msra.mxu0 %v354
        %674 = vmatpush.msra.mxu0 %v350
        %675 = vmatpush.msra.mxu0 %v346
        %676 = vmatpush.msra.mxu0 %v342
        %677 = vmatpush.msra.mxu0 %v338
        %678 = vmatpush.msra.mxu0 %v334
        %679 = vmatpush.msra.mxu0 %v330
        %680 = vmatpush.msra.mxu0 %v326
        %681 = vmatpush.msra.mxu0 %v322
        %682 = vmatpush.msra.mxu0 %v318
        %683 = vmatpush.msra.mxu0 %v314
        %684 = vmatpush.msra.mxu0 %v310
        %685 = vmatpush.msra.mxu0 %v306
        %686 = vmatpush.msra.mxu0 %v302
        %687 = vmatmul.f32.gmra.mxu0 %v624
        %v688 = vpop.f32.mrf.mxu0
        %v689 = vadd.f32 0.0, %v688
        %690 = vdwg.mxu0
        %691 = vmatpush.msra.mxu0 %v363
        %692 = vmatpush.msra.mxu0 %v359
        %693 = vmatpush.msra.mxu0 %v355
        %694 = vmatpush.msra.mxu0 %v351
        %695 = vmatpush.msra.mxu0 %v347
        %696 = vmatpush.msra.mxu0 %v343
        %697 = vmatpush.msra.mxu0 %v339
        %698 = vmatpush.msra.mxu0 %v335
        %699 = vmatpush.msra.mxu0 %v331
        %700 = vmatpush.msra.mxu0 %v327
        %701 = vmatpush.msra.mxu0 %v323
        %702 = vmatpush.msra.mxu0 %v319
        %703 = vmatpush.msra.mxu0 %v315
        %704 = vmatpush.msra.mxu0 %v311
        %705 = vmatpush.msra.mxu0 %v307
        %706 = vmatpush.msra.mxu0 %v303
        %707 = vmatmul.f32.gmra.mxu0 %v624
        %v708 = vpop.f32.mrf.mxu0
        %v709 = vadd.f32 0.0, %v708
        %710 = vdwg.mxu0
        %711 = vmatpush.msra.mxu0 %v364
        %712 = vmatpush.msra.mxu0 %v360
        %713 = vmatpush.msra.mxu0 %v356
        %714 = vmatpush.msra.mxu0 %v352
        %715 = vmatpush.msra.mxu0 %v348
        %716 = vmatpush.msra.mxu0 %v344
        %717 = vmatpush.msra.mxu0 %v340
        %718 = vmatpush.msra.mxu0 %v336
        %719 = vmatpush.msra.mxu0 %v332
        %720 = vmatpush.msra.mxu0 %v328
        %721 = vmatpush.msra.mxu0 %v324
        %722 = vmatpush.msra.mxu0 %v320
        %723 = vmatpush.msra.mxu0 %v316
        %724 = vmatpush.msra.mxu0 %v312
        %725 = vmatpush.msra.mxu0 %v308
        %726 = vmatpush.msra.mxu0 %v304
        %727 = vmatmul.f32.gmra.mxu0 %v624
        %v728 = vpop.f32.mrf.mxu0
        %v729 = vadd.f32 0.0, %v728
        %730 = vdwg.mxu0
        %v731 = vadd.f32 %v647, %v669
        %v732 = vadd.f32 %v648, %v689
        %v733 = vadd.f32 %v649, %v709
        %v734 = vadd.f32 %v650, %v729
        %s735 = scalar_lea.vmem %s267, 288 [#allocation4]
        %v736 = vld [vmem:[%s735] sm:$0xff]
        %v737 = vld [vmem:[%s735 + $0x8] sm:$0xff]
        %v738 = vld [vmem:[%s735 + $0x10] sm:$0xff]
        %v739 = vld [vmem:[%s735 + $0x18] sm:$0xff]
        %740 = vmatpush.msra.mxu0 %v426
        %741 = vmatpush.msra.mxu0 %v422
        %742 = vmatpush.msra.mxu0 %v418
        %743 = vmatpush.msra.mxu0 %v414
        %744 = vmatpush.msra.mxu0 %v410
        %745 = vmatpush.msra.mxu0 %v406
        %746 = vmatpush.msra.mxu0 %v402
        %747 = vmatpush.msra.mxu0 %v398
        %748 = vmatpush.msra.mxu0 %v394
        %749 = vmatpush.msra.mxu0 %v390
        %750 = vmatpush.msra.mxu0 %v386
        %751 = vmatpush.msra.mxu0 %v382
        %752 = vmatpush.msra.mxu0 %v378
        %753 = vmatpush.msra.mxu0 %v374
        %754 = vmatpush.msra.mxu0 %v370
        %755 = vmatpush.msra.mxu0 %v366
        %756 = vmatmul.f32.gmra.mxu0 %v643
        %v757 = vpop.f32.mrf.mxu0
        %v758 = vadd.f32 0.0, %v757
        %759 = vdwg.mxu0
        %760 = vmatpush.msra.mxu0 %v427
        %761 = vmatpush.msra.mxu0 %v423
        %762 = vmatpush.msra.mxu0 %v419
        %763 = vmatpush.msra.mxu0 %v415
        %764 = vmatpush.msra.mxu0 %v411
        %765 = vmatpush.msra.mxu0 %v407
        %766 = vmatpush.msra.mxu0 %v403
        %767 = vmatpush.msra.mxu0 %v399
        %768 = vmatpush.msra.mxu0 %v395
        %769 = vmatpush.msra.mxu0 %v391
        %770 = vmatpush.msra.mxu0 %v387
        %771 = vmatpush.msra.mxu0 %v383
        %772 = vmatpush.msra.mxu0 %v379
        %773 = vmatpush.msra.mxu0 %v375
        %774 = vmatpush.msra.mxu0 %v371
        %775 = vmatpush.msra.mxu0 %v367
        %776 = vmatmul.f32.gmra.mxu0 %v643
        %v777 = vpop.f32.mrf.mxu0
        %v778 = vadd.f32 0.0, %v777
        %779 = vdwg.mxu0
        %780 = vmatpush.msra.mxu0 %v428
        %781 = vmatpush.msra.mxu0 %v424
        %782 = vmatpush.msra.mxu0 %v420
        %783 = vmatpush.msra.mxu0 %v416
        %784 = vmatpush.msra.mxu0 %v412
        %785 = vmatpush.msra.mxu0 %v408
        %786 = vmatpush.msra.mxu0 %v404
        %787 = vmatpush.msra.mxu0 %v400
        %788 = vmatpush.msra.mxu0 %v396
        %789 = vmatpush.msra.mxu0 %v392
        %790 = vmatpush.msra.mxu0 %v388
        %791 = vmatpush.msra.mxu0 %v384
        %792 = vmatpush.msra.mxu0 %v380
        %793 = vmatpush.msra.mxu0 %v376
        %794 = vmatpush.msra.mxu0 %v372
        %795 = vmatpush.msra.mxu0 %v368
        %796 = vmatmul.f32.gmra.mxu0 %v643
        %v797 = vpop.f32.mrf.mxu0
        %v798 = vadd.f32 0.0, %v797
        %799 = vdwg.mxu0
        %800 = vmatpush.msra.mxu0 %v429
        %801 = vmatpush.msra.mxu0 %v425
        %802 = vmatpush.msra.mxu0 %v421
        %803 = vmatpush.msra.mxu0 %v417
        %804 = vmatpush.msra.mxu0 %v413
        %805 = vmatpush.msra.mxu0 %v409
        %806 = vmatpush.msra.mxu0 %v405
        %807 = vmatpush.msra.mxu0 %v401
        %808 = vmatpush.msra.mxu0 %v397
        %809 = vmatpush.msra.mxu0 %v393
        %810 = vmatpush.msra.mxu0 %v389
        %811 = vmatpush.msra.mxu0 %v385
        %812 = vmatpush.msra.mxu0 %v381
        %813 = vmatpush.msra.mxu0 %v377
        %814 = vmatpush.msra.mxu0 %v373
        %815 = vmatpush.msra.mxu0 %v369
        %816 = vmatmul.f32.gmra.mxu0 %v643
        %v817 = vpop.f32.mrf.mxu0
        %v818 = vadd.f32 0.0, %v817
        %819 = vdwg.mxu0
        %v820 = vadd.f32 %v736, %v758
        %v821 = vadd.f32 %v737, %v778
        %v822 = vadd.f32 %v738, %v798
        %v823 = vadd.f32 %v739, %v818
        %v824 = vmul.f32 %v731, 0.5
        %v825 = vmul.f32 %v732, 0.5
        %v826 = vmul.f32 %v733, 0.5
        %v827 = vtanh.pop %v824
        %v828 = vtanh.pop %v825
        %v829 = vtanh.pop %v826
        %v830 = vadd.f32 %v827, 1.0
        %v831 = vadd.f32 %v828, 1.0
        %v832 = vadd.f32 %v829, 1.0
        %v833 = vmul.f32 %v830, 0.5
        %v834 = vmul.f32 %v831, 0.5
        %v835 = vmul.f32 %v832, 0.5
        %v836 = vtanh.pop %v734
        %v837 = vmul.f32 %v834, %v622
        %v838 = vmul.f32 %v833, %v836
        %v839 = vadd.f32 %v837, %v838
        %v840 = vtanh.pop %v839
        %v841 = vmul.f32 %v835, %v840
        %s842 = scalar_lea.vmem %s284, 8 [#allocation5]
        %843 = vst [vmem:[%s842] sm:$0xff] %v841
        %v844 = vmul.f32 %v820, 0.5
        %v845 = vmul.f32 %v821, 0.5
        %v846 = vmul.f32 %v822, 0.5
        %v847 = vtanh.pop %v844
        %v848 = vtanh.pop %v845
        %v849 = vtanh.pop %v846
        %v850 = vadd.f32 %v847, 1.0
        %v851 = vadd.f32 %v848, 1.0
        %v852 = vadd.f32 %v849, 1.0
        %v853 = vmul.f32 %v850, 0.5
        %v854 = vmul.f32 %v851, 0.5
        %v855 = vmul.f32 %v852, 0.5
        %v856 = vtanh.pop %v823
        %v857 = vmul.f32 %v854, %v641
        %v858 = vmul.f32 %v853, %v856
        %v859 = vadd.f32 %v857, %v858
        %v860 = vtanh.pop %v859
        %v861 = vmul.f32 %v855, %v860
        %s862 = scalar_lea.vmem %s284, 72 [#allocation5]
        %863 = vst [vmem:[%s862] sm:$0xff] %v861
        %s864 = scalar_lea.vmem %s267, 64 [#allocation4]
        %v865 = vld [vmem:[%s864] sm:$0xff]
        %v866 = vld [vmem:[%s864 + $0x8] sm:$0xff]
        %v867 = vld [vmem:[%s864 + $0x10] sm:$0xff]
        %v868 = vld [vmem:[%s864 + $0x18] sm:$0xff]
        %869 = vmatpush.msra.mxu0 %v361
        %870 = vmatpush.msra.mxu0 %v357
        %871 = vmatpush.msra.mxu0 %v353
        %872 = vmatpush.msra.mxu0 %v349
        %873 = vmatpush.msra.mxu0 %v345
        %874 = vmatpush.msra.mxu0 %v341
        %875 = vmatpush.msra.mxu0 %v337
        %876 = vmatpush.msra.mxu0 %v333
        %877 = vmatpush.msra.mxu0 %v329
        %878 = vmatpush.msra.mxu0 %v325
        %879 = vmatpush.msra.mxu0 %v321
        %880 = vmatpush.msra.mxu0 %v317
        %881 = vmatpush.msra.mxu0 %v313
        %882 = vmatpush.msra.mxu0 %v309
        %883 = vmatpush.msra.mxu0 %v305
        %884 = vmatpush.msra.mxu0 %v301
        %885 = vmatmul.f32.gmra.mxu0 %v841
        %v886 = vpop.f32.mrf.mxu0
        %v887 = vadd.f32 0.0, %v886
        %888 = vdwg.mxu0
        %889 = vmatpush.msra.mxu0 %v362
        %890 = vmatpush.msra.mxu0 %v358
        %891 = vmatpush.msra.mxu0 %v354
        %892 = vmatpush.msra.mxu0 %v350
        %893 = vmatpush.msra.mxu0 %v346
        %894 = vmatpush.msra.mxu0 %v342
        %895 = vmatpush.msra.mxu0 %v338
        %896 = vmatpush.msra.mxu0 %v334
        %897 = vmatpush.msra.mxu0 %v330
        %898 = vmatpush.msra.mxu0 %v326
        %899 = vmatpush.msra.mxu0 %v322
        %900 = vmatpush.msra.mxu0 %v318
        %901 = vmatpush.msra.mxu0 %v314
        %902 = vmatpush.msra.mxu0 %v310
        %903 = vmatpush.msra.mxu0 %v306
        %904 = vmatpush.msra.mxu0 %v302
        %905 = vmatmul.f32.gmra.mxu0 %v841
        %v906 = vpop.f32.mrf.mxu0
        %v907 = vadd.f32 0.0, %v906
        %908 = vdwg.mxu0
        %909 = vmatpush.msra.mxu0 %v363
        %910 = vmatpush.msra.mxu0 %v359
        %911 = vmatpush.msra.mxu0 %v355
        %912 = vmatpush.msra.mxu0 %v351
        %913 = vmatpush.msra.mxu0 %v347
        %914 = vmatpush.msra.mxu0 %v343
        %915 = vmatpush.msra.mxu0 %v339
        %916 = vmatpush.msra.mxu0 %v335
        %917 = vmatpush.msra.mxu0 %v331
        %918 = vmatpush.msra.mxu0 %v327
        %919 = vmatpush.msra.mxu0 %v323
        %920 = vmatpush.msra.mxu0 %v319
        %921 = vmatpush.msra.mxu0 %v315
        %922 = vmatpush.msra.mxu0 %v311
        %923 = vmatpush.msra.mxu0 %v307
        %924 = vmatpush.msra.mxu0 %v303
        %925 = vmatmul.f32.gmra.mxu0 %v841
        %v926 = vpop.f32.mrf.mxu0
        %v927 = vadd.f32 0.0, %v926
        %928 = vdwg.mxu0
        %929 = vmatpush.msra.mxu0 %v364
        %930 = vmatpush.msra.mxu0 %v360
        %931 = vmatpush.msra.mxu0 %v356
        %932 = vmatpush.msra.mxu0 %v352
        %933 = vmatpush.msra.mxu0 %v348
        %934 = vmatpush.msra.mxu0 %v344
        %935 = vmatpush.msra.mxu0 %v340
        %936 = vmatpush.msra.mxu0 %v336
        %937 = vmatpush.msra.mxu0 %v332
        %938 = vmatpush.msra.mxu0 %v328
        %939 = vmatpush.msra.mxu0 %v324
        %940 = vmatpush.msra.mxu0 %v320
        %941 = vmatpush.msra.mxu0 %v316
        %942 = vmatpush.msra.mxu0 %v312
        %943 = vmatpush.msra.mxu0 %v308
        %944 = vmatpush.msra.mxu0 %v304
        %945 = vmatmul.f32.gmra.mxu0 %v841
        %v946 = vpop.f32.mrf.mxu0
        %v947 = vadd.f32 0.0, %v946
        %948 = vdwg.mxu0
        %v949 = vadd.f32 %v865, %v887
        %v950 = vadd.f32 %v866, %v907
        %v951 = vadd.f32 %v867, %v927
        %v952 = vadd.f32 %v868, %v947
        %s953 = scalar_lea.vmem %s267, 320 [#allocation4]
        %v954 = vld [vmem:[%s953] sm:$0xff]
        %v955 = vld [vmem:[%s953 + $0x8] sm:$0xff]
        %v956 = vld [vmem:[%s953 + $0x10] sm:$0xff]
        %v957 = vld [vmem:[%s953 + $0x18] sm:$0xff]
        %958 = vmatpush.msra.mxu0 %v426
        %959 = vmatpush.msra.mxu0 %v422
        %960 = vmatpush.msra.mxu0 %v418
        %961 = vmatpush.msra.mxu0 %v414
        %962 = vmatpush.msra.mxu0 %v410
        %963 = vmatpush.msra.mxu0 %v406
        %964 = vmatpush.msra.mxu0 %v402
        %965 = vmatpush.msra.mxu0 %v398
        %966 = vmatpush.msra.mxu0 %v394
        %967 = vmatpush.msra.mxu0 %v390
        %968 = vmatpush.msra.mxu0 %v386
        %969 = vmatpush.msra.mxu0 %v382
        %970 = vmatpush.msra.mxu0 %v378
        %971 = vmatpush.msra.mxu0 %v374
        %972 = vmatpush.msra.mxu0 %v370
        %973 = vmatpush.msra.mxu0 %v366
        %974 = vmatmul.f32.gmra.mxu0 %v861
        %v975 = vpop.f32.mrf.mxu0
        %v976 = vadd.f32 0.0, %v975
        %977 = vdwg.mxu0
        %978 = vmatpush.msra.mxu0 %v427
        %979 = vmatpush.msra.mxu0 %v423
        %980 = vmatpush.msra.mxu0 %v419
        %981 = vmatpush.msra.mxu0 %v415
        %982 = vmatpush.msra.mxu0 %v411
        %983 = vmatpush.msra.mxu0 %v407
        %984 = vmatpush.msra.mxu0 %v403
        %985 = vmatpush.msra.mxu0 %v399
        %986 = vmatpush.msra.mxu0 %v395
        %987 = vmatpush.msra.mxu0 %v391
        %988 = vmatpush.msra.mxu0 %v387
        %989 = vmatpush.msra.mxu0 %v383
        %990 = vmatpush.msra.mxu0 %v379
        %991 = vmatpush.msra.mxu0 %v375
        %992 = vmatpush.msra.mxu0 %v371
        %993 = vmatpush.msra.mxu0 %v367
        %994 = vmatmul.f32.gmra.mxu0 %v861
        %v995 = vpop.f32.mrf.mxu0
        %v996 = vadd.f32 0.0, %v995
        %997 = vdwg.mxu0
        %998 = vmatpush.msra.mxu0 %v428
        %999 = vmatpush.msra.mxu0 %v424
        %1000 = vmatpush.msra.mxu0 %v420
        %1001 = vmatpush.msra.mxu0 %v416
        %1002 = vmatpush.msra.mxu0 %v412
        %1003 = vmatpush.msra.mxu0 %v408
        %1004 = vmatpush.msra.mxu0 %v404
        %1005 = vmatpush.msra.mxu0 %v400
        %1006 = vmatpush.msra.mxu0 %v396
        %1007 = vmatpush.msra.mxu0 %v392
        %1008 = vmatpush.msra.mxu0 %v388
        %1009 = vmatpush.msra.mxu0 %v384
        %1010 = vmatpush.msra.mxu0 %v380
        %1011 = vmatpush.msra.mxu0 %v376
        %1012 = vmatpush.msra.mxu0 %v372
        %1013 = vmatpush.msra.mxu0 %v368
        %1014 = vmatmul.f32.gmra.mxu0 %v861
        %v1015 = vpop.f32.mrf.mxu0
        %v1016 = vadd.f32 0.0, %v1015
        %1017 = vdwg.mxu0
        %1018 = vmatpush.msra.mxu0 %v429
        %1019 = vmatpush.msra.mxu0 %v425
        %1020 = vmatpush.msra.mxu0 %v421
        %1021 = vmatpush.msra.mxu0 %v417
        %1022 = vmatpush.msra.mxu0 %v413
        %1023 = vmatpush.msra.mxu0 %v409
        %1024 = vmatpush.msra.mxu0 %v405
        %1025 = vmatpush.msra.mxu0 %v401
        %1026 = vmatpush.msra.mxu0 %v397
        %1027 = vmatpush.msra.mxu0 %v393
        %1028 = vmatpush.msra.mxu0 %v389
        %1029 = vmatpush.msra.mxu0 %v385
        %1030 = vmatpush.msra.mxu0 %v381
        %1031 = vmatpush.msra.mxu0 %v377
        %1032 = vmatpush.msra.mxu0 %v373
        %1033 = vmatpush.msra.mxu0 %v369
        %1034 = vmatmul.f32.gmra.mxu0 %v861
        %v1035 = vpop.f32.mrf.mxu0
        %v1036 = vadd.f32 0.0, %v1035
        %1037 = vdwg.mxu0
        %v1038 = vadd.f32 %v954, %v976
        %v1039 = vadd.f32 %v955, %v996
        %v1040 = vadd.f32 %v956, %v1016
        %v1041 = vadd.f32 %v957, %v1036
        %v1042 = vmul.f32 %v949, 0.5
        %v1043 = vmul.f32 %v950, 0.5
        %v1044 = vmul.f32 %v951, 0.5
        %v1045 = vtanh.pop %v1042
        %v1046 = vtanh.pop %v1043
        %v1047 = vtanh.pop %v1044
        %v1048 = vadd.f32 %v1045, 1.0
        %v1049 = vadd.f32 %v1046, 1.0
        %v1050 = vadd.f32 %v1047, 1.0
        %v1051 = vmul.f32 %v1048, 0.5
        %v1052 = vmul.f32 %v1049, 0.5
        %v1053 = vmul.f32 %v1050, 0.5
        %v1054 = vtanh.pop %v952
        %v1055 = vmul.f32 %v1052, %v839
        %v1056 = vmul.f32 %v1051, %v1054
        %v1057 = vadd.f32 %v1055, %v1056
        %v1058 = vtanh.pop %v1057
        %v1059 = vmul.f32 %v1053, %v1058
        %s1060 = scalar_lea.vmem %s284, 16 [#allocation5]
        %1061 = vst [vmem:[%s1060] sm:$0xff] %v1059
        %v1062 = vmul.f32 %v1038, 0.5
        %v1063 = vmul.f32 %v1039, 0.5
        %v1064 = vmul.f32 %v1040, 0.5
        %v1065 = vtanh.pop %v1062
        %v1066 = vtanh.pop %v1063
        %v1067 = vtanh.pop %v1064
        %v1068 = vadd.f32 %v1065, 1.0
        %v1069 = vadd.f32 %v1066, 1.0
        %v1070 = vadd.f32 %v1067, 1.0
        %v1071 = vmul.f32 %v1068, 0.5
        %v1072 = vmul.f32 %v1069, 0.5
        %v1073 = vmul.f32 %v1070, 0.5
        %v1074 = vtanh.pop %v1041
        %v1075 = vmul.f32 %v1072, %v859
        %v1076 = vmul.f32 %v1071, %v1074
        %v1077 = vadd.f32 %v1075, %v1076
        %v1078 = vtanh.pop %v1077
        %v1079 = vmul.f32 %v1073, %v1078
        %s1080 = scalar_lea.vmem %s284, 80 [#allocation5]
        %1081 = vst [vmem:[%s1080] sm:$0xff] %v1079
        %s1082 = scalar_lea.vmem %s267, 96 [#allocation4]
        %v1083 = vld [vmem:[%s1082] sm:$0xff]
        %v1084 = vld [vmem:[%s1082 + $0x8] sm:$0xff]
        %v1085 = vld [vmem:[%s1082 + $0x10] sm:$0xff]
        %v1086 = vld [vmem:[%s1082 + $0x18] sm:$0xff]
        %1087 = vmatpush.msra.mxu0 %v361
        %1088 = vmatpush.msra.mxu0 %v357
        %1089 = vmatpush.msra.mxu0 %v353
        %1090 = vmatpush.msra.mxu0 %v349
        %1091 = vmatpush.msra.mxu0 %v345
        %1092 = vmatpush.msra.mxu0 %v341
        %1093 = vmatpush.msra.mxu0 %v337
        %1094 = vmatpush.msra.mxu0 %v333
        %1095 = vmatpush.msra.mxu0 %v329
        %1096 = vmatpush.msra.mxu0 %v325
        %1097 = vmatpush.msra.mxu0 %v321
        %1098 = vmatpush.msra.mxu0 %v317
        %1099 = vmatpush.msra.mxu0 %v313
        %1100 = vmatpush.msra.mxu0 %v309
        %1101 = vmatpush.msra.mxu0 %v305
        %1102 = vmatpush.msra.mxu0 %v301
        %1103 = vmatmul.f32.gmra.mxu0 %v1059
        %v1104 = vpop.f32.mrf.mxu0
        %v1105 = vadd.f32 0.0, %v1104
        %1106 = vdwg.mxu0
        %1107 = vmatpush.msra.mxu0 %v362
        %1108 = vmatpush.msra.mxu0 %v358
        %1109 = vmatpush.msra.mxu0 %v354
        %1110 = vmatpush.msra.mxu0 %v350
        %1111 = vmatpush.msra.mxu0 %v346
        %1112 = vmatpush.msra.mxu0 %v342
        %1113 = vmatpush.msra.mxu0 %v338
        %1114 = vmatpush.msra.mxu0 %v334
        %1115 = vmatpush.msra.mxu0 %v330
        %1116 = vmatpush.msra.mxu0 %v326
        %1117 = vmatpush.msra.mxu0 %v322
        %1118 = vmatpush.msra.mxu0 %v318
        %1119 = vmatpush.msra.mxu0 %v314
        %1120 = vmatpush.msra.mxu0 %v310
        %1121 = vmatpush.msra.mxu0 %v306
        %1122 = vmatpush.msra.mxu0 %v302
        %1123 = vmatmul.f32.gmra.mxu0 %v1059
        %v1124 = vpop.f32.mrf.mxu0
        %v1125 = vadd.f32 0.0, %v1124
        %1126 = vdwg.mxu0
        %1127 = vmatpush.msra.mxu0 %v363
        %1128 = vmatpush.msra.mxu0 %v359
        %1129 = vmatpush.msra.mxu0 %v355
        %1130 = vmatpush.msra.mxu0 %v351
        %1131 = vmatpush.msra.mxu0 %v347
        %1132 = vmatpush.msra.mxu0 %v343
        %1133 = vmatpush.msra.mxu0 %v339
        %1134 = vmatpush.msra.mxu0 %v335
        %1135 = vmatpush.msra.mxu0 %v331
        %1136 = vmatpush.msra.mxu0 %v327
        %1137 = vmatpush.msra.mxu0 %v323
        %1138 = vmatpush.msra.mxu0 %v319
        %1139 = vmatpush.msra.mxu0 %v315
        %1140 = vmatpush.msra.mxu0 %v311
        %1141 = vmatpush.msra.mxu0 %v307
        %1142 = vmatpush.msra.mxu0 %v303
        %1143 = vmatmul.f32.gmra.mxu0 %v1059
        %v1144 = vpop.f32.mrf.mxu0
        %v1145 = vadd.f32 0.0, %v1144
        %1146 = vdwg.mxu0
        %1147 = vmatpush.msra.mxu0 %v364
        %1148 = vmatpush.msra.mxu0 %v360
        %1149 = vmatpush.msra.mxu0 %v356
        %1150 = vmatpush.msra.mxu0 %v352
        %1151 = vmatpush.msra.mxu0 %v348
        %1152 = vmatpush.msra.mxu0 %v344
        %1153 = vmatpush.msra.mxu0 %v340
        %1154 = vmatpush.msra.mxu0 %v336
        %1155 = vmatpush.msra.mxu0 %v332
        %1156 = vmatpush.msra.mxu0 %v328
        %1157 = vmatpush.msra.mxu0 %v324
        %1158 = vmatpush.msra.mxu0 %v320
        %1159 = vmatpush.msra.mxu0 %v316
        %1160 = vmatpush.msra.mxu0 %v312
        %1161 = vmatpush.msra.mxu0 %v308
        %1162 = vmatpush.msra.mxu0 %v304
        %1163 = vmatmul.f32.gmra.mxu0 %v1059
        %v1164 = vpop.f32.mrf.mxu0
        %v1165 = vadd.f32 0.0, %v1164
        %1166 = vdwg.mxu0
        %v1167 = vadd.f32 %v1083, %v1105
        %v1168 = vadd.f32 %v1084, %v1125
        %v1169 = vadd.f32 %v1085, %v1145
        %v1170 = vadd.f32 %v1086, %v1165
        %s1171 = scalar_lea.vmem %s267, 352 [#allocation4]
        %v1172 = vld [vmem:[%s1171] sm:$0xff]
        %v1173 = vld [vmem:[%s1171 + $0x8] sm:$0xff]
        %v1174 = vld [vmem:[%s1171 + $0x10] sm:$0xff]
        %v1175 = vld [vmem:[%s1171 + $0x18] sm:$0xff]
        %1176 = vmatpush.msra.mxu0 %v426
        %1177 = vmatpush.msra.mxu0 %v422
        %1178 = vmatpush.msra.mxu0 %v418
        %1179 = vmatpush.msra.mxu0 %v414
        %1180 = vmatpush.msra.mxu0 %v410
        %1181 = vmatpush.msra.mxu0 %v406
        %1182 = vmatpush.msra.mxu0 %v402
        %1183 = vmatpush.msra.mxu0 %v398
        %1184 = vmatpush.msra.mxu0 %v394
        %1185 = vmatpush.msra.mxu0 %v390
        %1186 = vmatpush.msra.mxu0 %v386
        %1187 = vmatpush.msra.mxu0 %v382
        %1188 = vmatpush.msra.mxu0 %v378
        %1189 = vmatpush.msra.mxu0 %v374
        %1190 = vmatpush.msra.mxu0 %v370
        %1191 = vmatpush.msra.mxu0 %v366
        %1192 = vmatmul.f32.gmra.mxu0 %v1079
        %v1193 = vpop.f32.mrf.mxu0
        %v1194 = vadd.f32 0.0, %v1193
        %1195 = vdwg.mxu0
        %1196 = vmatpush.msra.mxu0 %v427
        %1197 = vmatpush.msra.mxu0 %v423
        %1198 = vmatpush.msra.mxu0 %v419
        %1199 = vmatpush.msra.mxu0 %v415
        %1200 = vmatpush.msra.mxu0 %v411
        %1201 = vmatpush.msra.mxu0 %v407
        %1202 = vmatpush.msra.mxu0 %v403
        %1203 = vmatpush.msra.mxu0 %v399
        %1204 = vmatpush.msra.mxu0 %v395
        %1205 = vmatpush.msra.mxu0 %v391
        %1206 = vmatpush.msra.mxu0 %v387
        %1207 = vmatpush.msra.mxu0 %v383
        %1208 = vmatpush.msra.mxu0 %v379
        %1209 = vmatpush.msra.mxu0 %v375
        %1210 = vmatpush.msra.mxu0 %v371
        %1211 = vmatpush.msra.mxu0 %v367
        %1212 = vmatmul.f32.gmra.mxu0 %v1079
        %v1213 = vpop.f32.mrf.mxu0
        %v1214 = vadd.f32 0.0, %v1213
        %1215 = vdwg.mxu0
        %1216 = vmatpush.msra.mxu0 %v428
        %1217 = vmatpush.msra.mxu0 %v424
        %1218 = vmatpush.msra.mxu0 %v420
        %1219 = vmatpush.msra.mxu0 %v416
        %1220 = vmatpush.msra.mxu0 %v412
        %1221 = vmatpush.msra.mxu0 %v408
        %1222 = vmatpush.msra.mxu0 %v404
        %1223 = vmatpush.msra.mxu0 %v400
        %1224 = vmatpush.msra.mxu0 %v396
        %1225 = vmatpush.msra.mxu0 %v392
        %1226 = vmatpush.msra.mxu0 %v388
        %1227 = vmatpush.msra.mxu0 %v384
        %1228 = vmatpush.msra.mxu0 %v380
        %1229 = vmatpush.msra.mxu0 %v376
        %1230 = vmatpush.msra.mxu0 %v372
        %1231 = vmatpush.msra.mxu0 %v368
        %1232 = vmatmul.f32.gmra.mxu0 %v1079
        %v1233 = vpop.f32.mrf.mxu0
        %v1234 = vadd.f32 0.0, %v1233
        %1235 = vdwg.mxu0
        %1236 = vmatpush.msra.mxu0 %v429
        %1237 = vmatpush.msra.mxu0 %v425
        %1238 = vmatpush.msra.mxu0 %v421
        %1239 = vmatpush.msra.mxu0 %v417
        %1240 = vmatpush.msra.mxu0 %v413
        %1241 = vmatpush.msra.mxu0 %v409
        %1242 = vmatpush.msra.mxu0 %v405
        %1243 = vmatpush.msra.mxu0 %v401
        %1244 = vmatpush.msra.mxu0 %v397
        %1245 = vmatpush.msra.mxu0 %v393
        %1246 = vmatpush.msra.mxu0 %v389
        %1247 = vmatpush.msra.mxu0 %v385
        %1248 = vmatpush.msra.mxu0 %v381
        %1249 = vmatpush.msra.mxu0 %v377
        %1250 = vmatpush.msra.mxu0 %v373
        %1251 = vmatpush.msra.mxu0 %v369
        %1252 = vmatmul.f32.gmra.mxu0 %v1079
        %v1253 = vpop.f32.mrf.mxu0
        %v1254 = vadd.f32 0.0, %v1253
        %1255 = vdwg.mxu0
        %v1256 = vadd.f32 %v1172, %v1194
        %v1257 = vadd.f32 %v1173, %v1214
        %v1258 = vadd.f32 %v1174, %v1234
        %v1259 = vadd.f32 %v1175, %v1254
        %v1260 = vmul.f32 %v1167, 0.5
        %v1261 = vmul.f32 %v1168, 0.5
        %v1262 = vmul.f32 %v1169, 0.5
        %v1263 = vtanh.pop %v1260
        %v1264 = vtanh.pop %v1261
        %v1265 = vtanh.pop %v1262
        %v1266 = vadd.f32 %v1263, 1.0
        %v1267 = vadd.f32 %v1264, 1.0
        %v1268 = vadd.f32 %v1265, 1.0
        %v1269 = vmul.f32 %v1266, 0.5
        %v1270 = vmul.f32 %v1267, 0.5
        %v1271 = vmul.f32 %v1268, 0.5
        %v1272 = vtanh.pop %v1170
        %v1273 = vmul.f32 %v1270, %v1057
        %v1274 = vmul.f32 %v1269, %v1272
        %v1275 = vadd.f32 %v1273, %v1274
        %v1276 = vtanh.pop %v1275
        %v1277 = vmul.f32 %v1271, %v1276
        %s1278 = scalar_lea.vmem %s284, 24 [#allocation5]
        %1279 = vst [vmem:[%s1278] sm:$0xff] %v1277
        %v1280 = vmul.f32 %v1256, 0.5
        %v1281 = vmul.f32 %v1257, 0.5
        %v1282 = vmul.f32 %v1258, 0.5
        %v1283 = vtanh.pop %v1280
        %v1284 = vtanh.pop %v1281
        %v1285 = vtanh.pop %v1282
        %v1286 = vadd.f32 %v1283, 1.0
        %v1287 = vadd.f32 %v1284, 1.0
        %v1288 = vadd.f32 %v1285, 1.0
        %v1289 = vmul.f32 %v1286, 0.5
        %v1290 = vmul.f32 %v1287, 0.5
        %v1291 = vmul.f32 %v1288, 0.5
        %v1292 = vtanh.pop %v1259
        %v1293 = vmul.f32 %v1290, %v1077
        %v1294 = vmul.f32 %v1289, %v1292
        %v1295 = vadd.f32 %v1293, %v1294
        %v1296 = vtanh.pop %v1295
        %v1297 = vmul.f32 %v1291, %v1296
        %s1298 = scalar_lea.vmem %s284, 88 [#allocation5]
        %1299 = vst [vmem:[%s1298] sm:$0xff] %v1297
        %s1300 = scalar_lea.vmem %s267, 128 [#allocation4]
        %v1301 = vld [vmem:[%s1300] sm:$0xff]
        %v1302 = vld [vmem:[%s1300 + $0x8] sm:$0xff]
        %v1303 = vld [vmem:[%s1300 + $0x10] sm:$0xff]
        %v1304 = vld [vmem:[%s1300 + $0x18] sm:$0xff]
        %1305 = vmatpush.msra.mxu0 %v361
        %1306 = vmatpush.msra.mxu0 %v357
        %1307 = vmatpush.msra.mxu0 %v353
        %1308 = vmatpush.msra.mxu0 %v349
        %1309 = vmatpush.msra.mxu0 %v345
        %1310 = vmatpush.msra.mxu0 %v341
        %1311 = vmatpush.msra.mxu0 %v337
        %1312 = vmatpush.msra.mxu0 %v333
        %1313 = vmatpush.msra.mxu0 %v329
        %1314 = vmatpush.msra.mxu0 %v325
        %1315 = vmatpush.msra.mxu0 %v321
        %1316 = vmatpush.msra.mxu0 %v317
        %1317 = vmatpush.msra.mxu0 %v313
        %1318 = vmatpush.msra.mxu0 %v309
        %1319 = vmatpush.msra.mxu0 %v305
        %1320 = vmatpush.msra.mxu0 %v301
        %1321 = vmatmul.f32.gmra.mxu0 %v1277
        %v1322 = vpop.f32.mrf.mxu0
        %v1323 = vadd.f32 0.0, %v1322
        %1324 = vdwg.mxu0
        %1325 = vmatpush.msra.mxu0 %v362
        %1326 = vmatpush.msra.mxu0 %v358
        %1327 = vmatpush.msra.mxu0 %v354
        %1328 = vmatpush.msra.mxu0 %v350
        %1329 = vmatpush.msra.mxu0 %v346
        %1330 = vmatpush.msra.mxu0 %v342
        %1331 = vmatpush.msra.mxu0 %v338
        %1332 = vmatpush.msra.mxu0 %v334
        %1333 = vmatpush.msra.mxu0 %v330
        %1334 = vmatpush.msra.mxu0 %v326
        %1335 = vmatpush.msra.mxu0 %v322
        %1336 = vmatpush.msra.mxu0 %v318
        %1337 = vmatpush.msra.mxu0 %v314
        %1338 = vmatpush.msra.mxu0 %v310
        %1339 = vmatpush.msra.mxu0 %v306
        %1340 = vmatpush.msra.mxu0 %v302
        %1341 = vmatmul.f32.gmra.mxu0 %v1277
        %v1342 = vpop.f32.mrf.mxu0
        %v1343 = vadd.f32 0.0, %v1342
        %1344 = vdwg.mxu0
        %1345 = vmatpush.msra.mxu0 %v363
        %1346 = vmatpush.msra.mxu0 %v359
        %1347 = vmatpush.msra.mxu0 %v355
        %1348 = vmatpush.msra.mxu0 %v351
        %1349 = vmatpush.msra.mxu0 %v347
        %1350 = vmatpush.msra.mxu0 %v343
        %1351 = vmatpush.msra.mxu0 %v339
        %1352 = vmatpush.msra.mxu0 %v335
        %1353 = vmatpush.msra.mxu0 %v331
        %1354 = vmatpush.msra.mxu0 %v327
        %1355 = vmatpush.msra.mxu0 %v323
        %1356 = vmatpush.msra.mxu0 %v319
        %1357 = vmatpush.msra.mxu0 %v315
        %1358 = vmatpush.msra.mxu0 %v311
        %1359 = vmatpush.msra.mxu0 %v307
        %1360 = vmatpush.msra.mxu0 %v303
        %1361 = vmatmul.f32.gmra.mxu0 %v1277
        %v1362 = vpop.f32.mrf.mxu0
        %v1363 = vadd.f32 0.0, %v1362
        %1364 = vdwg.mxu0
        %1365 = vmatpush.msra.mxu0 %v364
        %1366 = vmatpush.msra.mxu0 %v360
        %1367 = vmatpush.msra.mxu0 %v356
        %1368 = vmatpush.msra.mxu0 %v352
        %1369 = vmatpush.msra.mxu0 %v348
        %1370 = vmatpush.msra.mxu0 %v344
        %1371 = vmatpush.msra.mxu0 %v340
        %1372 = vmatpush.msra.mxu0 %v336
        %1373 = vmatpush.msra.mxu0 %v332
        %1374 = vmatpush.msra.mxu0 %v328
        %1375 = vmatpush.msra.mxu0 %v324
        %1376 = vmatpush.msra.mxu0 %v320
        %1377 = vmatpush.msra.mxu0 %v316
        %1378 = vmatpush.msra.mxu0 %v312
        %1379 = vmatpush.msra.mxu0 %v308
        %1380 = vmatpush.msra.mxu0 %v304
        %1381 = vmatmul.f32.gmra.mxu0 %v1277
        %v1382 = vpop.f32.mrf.mxu0
        %v1383 = vadd.f32 0.0, %v1382
        %1384 = vdwg.mxu0
        %v1385 = vadd.f32 %v1301, %v1323
        %v1386 = vadd.f32 %v1302, %v1343
        %v1387 = vadd.f32 %v1303, %v1363
        %v1388 = vadd.f32 %v1304, %v1383
        %s1389 = scalar_lea.vmem %s267, 384 [#allocation4]
        %v1390 = vld [vmem:[%s1389] sm:$0xff]
        %v1391 = vld [vmem:[%s1389 + $0x8] sm:$0xff]
        %v1392 = vld [vmem:[%s1389 + $0x10] sm:$0xff]
        %v1393 = vld [vmem:[%s1389 + $0x18] sm:$0xff]
        %1394 = vmatpush.msra.mxu0 %v426
        %1395 = vmatpush.msra.mxu0 %v422
        %1396 = vmatpush.msra.mxu0 %v418
        %1397 = vmatpush.msra.mxu0 %v414
        %1398 = vmatpush.msra.mxu0 %v410
        %1399 = vmatpush.msra.mxu0 %v406
        %1400 = vmatpush.msra.mxu0 %v402
        %1401 = vmatpush.msra.mxu0 %v398
        %1402 = vmatpush.msra.mxu0 %v394
        %1403 = vmatpush.msra.mxu0 %v390
        %1404 = vmatpush.msra.mxu0 %v386
        %1405 = vmatpush.msra.mxu0 %v382
        %1406 = vmatpush.msra.mxu0 %v378
        %1407 = vmatpush.msra.mxu0 %v374
        %1408 = vmatpush.msra.mxu0 %v370
        %1409 = vmatpush.msra.mxu0 %v366
        %1410 = vmatmul.f32.gmra.mxu0 %v1297
        %v1411 = vpop.f32.mrf.mxu0
        %v1412 = vadd.f32 0.0, %v1411
        %1413 = vdwg.mxu0
        %1414 = vmatpush.msra.mxu0 %v427
        %1415 = vmatpush.msra.mxu0 %v423
        %1416 = vmatpush.msra.mxu0 %v419
        %1417 = vmatpush.msra.mxu0 %v415
        %1418 = vmatpush.msra.mxu0 %v411
        %1419 = vmatpush.msra.mxu0 %v407
        %1420 = vmatpush.msra.mxu0 %v403
        %1421 = vmatpush.msra.mxu0 %v399
        %1422 = vmatpush.msra.mxu0 %v395
        %1423 = vmatpush.msra.mxu0 %v391
        %1424 = vmatpush.msra.mxu0 %v387
        %1425 = vmatpush.msra.mxu0 %v383
        %1426 = vmatpush.msra.mxu0 %v379
        %1427 = vmatpush.msra.mxu0 %v375
        %1428 = vmatpush.msra.mxu0 %v371
        %1429 = vmatpush.msra.mxu0 %v367
        %1430 = vmatmul.f32.gmra.mxu0 %v1297
        %v1431 = vpop.f32.mrf.mxu0
        %v1432 = vadd.f32 0.0, %v1431
        %1433 = vdwg.mxu0
        %1434 = vmatpush.msra.mxu0 %v428
        %1435 = vmatpush.msra.mxu0 %v424
        %1436 = vmatpush.msra.mxu0 %v420
        %1437 = vmatpush.msra.mxu0 %v416
        %1438 = vmatpush.msra.mxu0 %v412
        %1439 = vmatpush.msra.mxu0 %v408
        %1440 = vmatpush.msra.mxu0 %v404
        %1441 = vmatpush.msra.mxu0 %v400
        %1442 = vmatpush.msra.mxu0 %v396
        %1443 = vmatpush.msra.mxu0 %v392
        %1444 = vmatpush.msra.mxu0 %v388
        %1445 = vmatpush.msra.mxu0 %v384
        %1446 = vmatpush.msra.mxu0 %v380
        %1447 = vmatpush.msra.mxu0 %v376
        %1448 = vmatpush.msra.mxu0 %v372
        %1449 = vmatpush.msra.mxu0 %v368
        %1450 = vmatmul.f32.gmra.mxu0 %v1297
        %v1451 = vpop.f32.mrf.mxu0
        %v1452 = vadd.f32 0.0, %v1451
        %1453 = vdwg.mxu0
        %1454 = vmatpush.msra.mxu0 %v429
        %1455 = vmatpush.msra.mxu0 %v425
        %1456 = vmatpush.msra.mxu0 %v421
        %1457 = vmatpush.msra.mxu0 %v417
        %1458 = vmatpush.msra.mxu0 %v413
        %1459 = vmatpush.msra.mxu0 %v409
        %1460 = vmatpush.msra.mxu0 %v405
        %1461 = vmatpush.msra.mxu0 %v401
        %1462 = vmatpush.msra.mxu0 %v397
        %1463 = vmatpush.msra.mxu0 %v393
        %1464 = vmatpush.msra.mxu0 %v389
        %1465 = vmatpush.msra.mxu0 %v385
        %1466 = vmatpush.msra.mxu0 %v381
        %1467 = vmatpush.msra.mxu0 %v377
        %1468 = vmatpush.msra.mxu0 %v373
        %1469 = vmatpush.msra.mxu0 %v369
        %1470 = vmatmul.f32.gmra.mxu0 %v1297
        %v1471 = vpop.f32.mrf.mxu0
        %v1472 = vadd.f32 0.0, %v1471
        %1473 = vdwg.mxu0
        %v1474 = vadd.f32 %v1390, %v1412
        %v1475 = vadd.f32 %v1391, %v1432
        %v1476 = vadd.f32 %v1392, %v1452
        %v1477 = vadd.f32 %v1393, %v1472
        %v1478 = vmul.f32 %v1385, 0.5
        %v1479 = vmul.f32 %v1386, 0.5
        %v1480 = vmul.f32 %v1387, 0.5
        %v1481 = vtanh.pop %v1478
        %v1482 = vtanh.pop %v1479
        %v1483 = vtanh.pop %v1480
        %v1484 = vadd.f32 %v1481, 1.0
        %v1485 = vadd.f32 %v1482, 1.0
        %v1486 = vadd.f32 %v1483, 1.0
        %v1487 = vmul.f32 %v1484, 0.5
        %v1488 = vmul.f32 %v1485, 0.5
        %v1489 = vmul.f32 %v1486, 0.5
        %v1490 = vtanh.pop %v1388
        %v1491 = vmul.f32 %v1488, %v1275
        %v1492 = vmul.f32 %v1487, %v1490
        %v1493 = vadd.f32 %v1491, %v1492
        %v1494 = vtanh.pop %v1493
        %v1495 = vmul.f32 %v1489, %v1494
        %s1496 = scalar_lea.vmem %s284, 32 [#allocation5]
        %1497 = vst [vmem:[%s1496] sm:$0xff] %v1495
        %v1498 = vmul.f32 %v1474, 0.5
        %v1499 = vmul.f32 %v1475, 0.5
        %v1500 = vmul.f32 %v1476, 0.5
        %v1501 = vtanh.pop %v1498
        %v1502 = vtanh.pop %v1499
        %v1503 = vtanh.pop %v1500
        %v1504 = vadd.f32 %v1501, 1.0
        %v1505 = vadd.f32 %v1502, 1.0
        %v1506 = vadd.f32 %v1503, 1.0
        %v1507 = vmul.f32 %v1504, 0.5
        %v1508 = vmul.f32 %v1505, 0.5
        %v1509 = vmul.f32 %v1506, 0.5
        %v1510 = vtanh.pop %v1477
        %v1511 = vmul.f32 %v1508, %v1295
        %v1512 = vmul.f32 %v1507, %v1510
        %v1513 = vadd.f32 %v1511, %v1512
        %v1514 = vtanh.pop %v1513
        %v1515 = vmul.f32 %v1509, %v1514
        %s1516 = scalar_lea.vmem %s284, 96 [#allocation5]
        %1517 = vst [vmem:[%s1516] sm:$0xff] %v1515
        %s1518 = scalar_lea.vmem %s267, 160 [#allocation4]
        %v1519 = vld [vmem:[%s1518] sm:$0xff]
        %v1520 = vld [vmem:[%s1518 + $0x8] sm:$0xff]
        %v1521 = vld [vmem:[%s1518 + $0x10] sm:$0xff]
        %v1522 = vld [vmem:[%s1518 + $0x18] sm:$0xff]
        %1523 = vmatpush.msra.mxu0 %v361
        %1524 = vmatpush.msra.mxu0 %v357
        %1525 = vmatpush.msra.mxu0 %v353
        %1526 = vmatpush.msra.mxu0 %v349
        %1527 = vmatpush.msra.mxu0 %v345
        %1528 = vmatpush.msra.mxu0 %v341
        %1529 = vmatpush.msra.mxu0 %v337
        %1530 = vmatpush.msra.mxu0 %v333
        %1531 = vmatpush.msra.mxu0 %v329
        %1532 = vmatpush.msra.mxu0 %v325
        %1533 = vmatpush.msra.mxu0 %v321
        %1534 = vmatpush.msra.mxu0 %v317
        %1535 = vmatpush.msra.mxu0 %v313
        %1536 = vmatpush.msra.mxu0 %v309
        %1537 = vmatpush.msra.mxu0 %v305
        %1538 = vmatpush.msra.mxu0 %v301
        %1539 = vmatmul.f32.gmra.mxu0 %v1495
        %v1540 = vpop.f32.mrf.mxu0
        %v1541 = vadd.f32 0.0, %v1540
        %1542 = vdwg.mxu0
        %1543 = vmatpush.msra.mxu0 %v362
        %1544 = vmatpush.msra.mxu0 %v358
        %1545 = vmatpush.msra.mxu0 %v354
        %1546 = vmatpush.msra.mxu0 %v350
        %1547 = vmatpush.msra.mxu0 %v346
        %1548 = vmatpush.msra.mxu0 %v342
        %1549 = vmatpush.msra.mxu0 %v338
        %1550 = vmatpush.msra.mxu0 %v334
        %1551 = vmatpush.msra.mxu0 %v330
        %1552 = vmatpush.msra.mxu0 %v326
        %1553 = vmatpush.msra.mxu0 %v322
        %1554 = vmatpush.msra.mxu0 %v318
        %1555 = vmatpush.msra.mxu0 %v314
        %1556 = vmatpush.msra.mxu0 %v310
        %1557 = vmatpush.msra.mxu0 %v306
        %1558 = vmatpush.msra.mxu0 %v302
        %1559 = vmatmul.f32.gmra.mxu0 %v1495
        %v1560 = vpop.f32.mrf.mxu0
        %v1561 = vadd.f32 0.0, %v1560
        %1562 = vdwg.mxu0
        %1563 = vmatpush.msra.mxu0 %v363
        %1564 = vmatpush.msra.mxu0 %v359
        %1565 = vmatpush.msra.mxu0 %v355
        %1566 = vmatpush.msra.mxu0 %v351
        %1567 = vmatpush.msra.mxu0 %v347
        %1568 = vmatpush.msra.mxu0 %v343
        %1569 = vmatpush.msra.mxu0 %v339
        %1570 = vmatpush.msra.mxu0 %v335
        %1571 = vmatpush.msra.mxu0 %v331
        %1572 = vmatpush.msra.mxu0 %v327
        %1573 = vmatpush.msra.mxu0 %v323
        %1574 = vmatpush.msra.mxu0 %v319
        %1575 = vmatpush.msra.mxu0 %v315
        %1576 = vmatpush.msra.mxu0 %v311
        %1577 = vmatpush.msra.mxu0 %v307
        %1578 = vmatpush.msra.mxu0 %v303
        %1579 = vmatmul.f32.gmra.mxu0 %v1495
        %v1580 = vpop.f32.mrf.mxu0
        %v1581 = vadd.f32 0.0, %v1580
        %1582 = vdwg.mxu0
        %1583 = vmatpush.msra.mxu0 %v364
        %1584 = vmatpush.msra.mxu0 %v360
        %1585 = vmatpush.msra.mxu0 %v356
        %1586 = vmatpush.msra.mxu0 %v352
        %1587 = vmatpush.msra.mxu0 %v348
        %1588 = vmatpush.msra.mxu0 %v344
        %1589 = vmatpush.msra.mxu0 %v340
        %1590 = vmatpush.msra.mxu0 %v336
        %1591 = vmatpush.msra.mxu0 %v332
        %1592 = vmatpush.msra.mxu0 %v328
        %1593 = vmatpush.msra.mxu0 %v324
        %1594 = vmatpush.msra.mxu0 %v320
        %1595 = vmatpush.msra.mxu0 %v316
        %1596 = vmatpush.msra.mxu0 %v312
        %1597 = vmatpush.msra.mxu0 %v308
        %1598 = vmatpush.msra.mxu0 %v304
        %1599 = vmatmul.f32.gmra.mxu0 %v1495
        %v1600 = vpop.f32.mrf.mxu0
        %v1601 = vadd.f32 0.0, %v1600
        %1602 = vdwg.mxu0
        %v1603 = vadd.f32 %v1519, %v1541
        %v1604 = vadd.f32 %v1520, %v1561
        %v1605 = vadd.f32 %v1521, %v1581
        %v1606 = vadd.f32 %v1522, %v1601
        %s1607 = scalar_lea.vmem %s267, 416 [#allocation4]
        %v1608 = vld [vmem:[%s1607] sm:$0xff]
        %v1609 = vld [vmem:[%s1607 + $0x8] sm:$0xff]
        %v1610 = vld [vmem:[%s1607 + $0x10] sm:$0xff]
        %v1611 = vld [vmem:[%s1607 + $0x18] sm:$0xff]
        %1612 = vmatpush.msra.mxu0 %v426
        %1613 = vmatpush.msra.mxu0 %v422
        %1614 = vmatpush.msra.mxu0 %v418
        %1615 = vmatpush.msra.mxu0 %v414
        %1616 = vmatpush.msra.mxu0 %v410
        %1617 = vmatpush.msra.mxu0 %v406
        %1618 = vmatpush.msra.mxu0 %v402
        %1619 = vmatpush.msra.mxu0 %v398
        %1620 = vmatpush.msra.mxu0 %v394
        %1621 = vmatpush.msra.mxu0 %v390
        %1622 = vmatpush.msra.mxu0 %v386
        %1623 = vmatpush.msra.mxu0 %v382
        %1624 = vmatpush.msra.mxu0 %v378
        %1625 = vmatpush.msra.mxu0 %v374
        %1626 = vmatpush.msra.mxu0 %v370
        %1627 = vmatpush.msra.mxu0 %v366
        %1628 = vmatmul.f32.gmra.mxu0 %v1515
        %v1629 = vpop.f32.mrf.mxu0
        %v1630 = vadd.f32 0.0, %v1629
        %1631 = vdwg.mxu0
        %1632 = vmatpush.msra.mxu0 %v427
        %1633 = vmatpush.msra.mxu0 %v423
        %1634 = vmatpush.msra.mxu0 %v419
        %1635 = vmatpush.msra.mxu0 %v415
        %1636 = vmatpush.msra.mxu0 %v411
        %1637 = vmatpush.msra.mxu0 %v407
        %1638 = vmatpush.msra.mxu0 %v403
        %1639 = vmatpush.msra.mxu0 %v399
        %1640 = vmatpush.msra.mxu0 %v395
        %1641 = vmatpush.msra.mxu0 %v391
        %1642 = vmatpush.msra.mxu0 %v387
        %1643 = vmatpush.msra.mxu0 %v383
        %1644 = vmatpush.msra.mxu0 %v379
        %1645 = vmatpush.msra.mxu0 %v375
        %1646 = vmatpush.msra.mxu0 %v371
        %1647 = vmatpush.msra.mxu0 %v367
        %1648 = vmatmul.f32.gmra.mxu0 %v1515
        %v1649 = vpop.f32.mrf.mxu0
        %v1650 = vadd.f32 0.0, %v1649
        %1651 = vdwg.mxu0
        %1652 = vmatpush.msra.mxu0 %v428
        %1653 = vmatpush.msra.mxu0 %v424
        %1654 = vmatpush.msra.mxu0 %v420
        %1655 = vmatpush.msra.mxu0 %v416
        %1656 = vmatpush.msra.mxu0 %v412
        %1657 = vmatpush.msra.mxu0 %v408
        %1658 = vmatpush.msra.mxu0 %v404
        %1659 = vmatpush.msra.mxu0 %v400
        %1660 = vmatpush.msra.mxu0 %v396
        %1661 = vmatpush.msra.mxu0 %v392
        %1662 = vmatpush.msra.mxu0 %v388
        %1663 = vmatpush.msra.mxu0 %v384
        %1664 = vmatpush.msra.mxu0 %v380
        %1665 = vmatpush.msra.mxu0 %v376
        %1666 = vmatpush.msra.mxu0 %v372
        %1667 = vmatpush.msra.mxu0 %v368
        %1668 = vmatmul.f32.gmra.mxu0 %v1515
        %v1669 = vpop.f32.mrf.mxu0
        %v1670 = vadd.f32 0.0, %v1669
        %1671 = vdwg.mxu0
        %1672 = vmatpush.msra.mxu0 %v429
        %1673 = vmatpush.msra.mxu0 %v425
        %1674 = vmatpush.msra.mxu0 %v421
        %1675 = vmatpush.msra.mxu0 %v417
        %1676 = vmatpush.msra.mxu0 %v413
        %1677 = vmatpush.msra.mxu0 %v409
        %1678 = vmatpush.msra.mxu0 %v405
        %1679 = vmatpush.msra.mxu0 %v401
        %1680 = vmatpush.msra.mxu0 %v397
        %1681 = vmatpush.msra.mxu0 %v393
        %1682 = vmatpush.msra.mxu0 %v389
        %1683 = vmatpush.msra.mxu0 %v385
        %1684 = vmatpush.msra.mxu0 %v381
        %1685 = vmatpush.msra.mxu0 %v377
        %1686 = vmatpush.msra.mxu0 %v373
        %1687 = vmatpush.msra.mxu0 %v369
        %1688 = vmatmul.f32.gmra.mxu0 %v1515
        %v1689 = vpop.f32.mrf.mxu0
        %v1690 = vadd.f32 0.0, %v1689
        %1691 = vdwg.mxu0
        %v1692 = vadd.f32 %v1608, %v1630
        %v1693 = vadd.f32 %v1609, %v1650
        %v1694 = vadd.f32 %v1610, %v1670
        %v1695 = vadd.f32 %v1611, %v1690
        %v1696 = vmul.f32 %v1603, 0.5
        %v1697 = vmul.f32 %v1604, 0.5
        %v1698 = vmul.f32 %v1605, 0.5
        %v1699 = vtanh.pop %v1696
        %v1700 = vtanh.pop %v1697
        %v1701 = vtanh.pop %v1698
        %v1702 = vadd.f32 %v1699, 1.0
        %v1703 = vadd.f32 %v1700, 1.0
        %v1704 = vadd.f32 %v1701, 1.0
        %v1705 = vmul.f32 %v1702, 0.5
        %v1706 = vmul.f32 %v1703, 0.5
        %v1707 = vmul.f32 %v1704, 0.5
        %v1708 = vtanh.pop %v1606
        %v1709 = vmul.f32 %v1706, %v1493
        %v1710 = vmul.f32 %v1705, %v1708
        %v1711 = vadd.f32 %v1709, %v1710
        %v1712 = vtanh.pop %v1711
        %v1713 = vmul.f32 %v1707, %v1712
        %s1714 = scalar_lea.vmem %s284, 40 [#allocation5]
        %1715 = vst [vmem:[%s1714] sm:$0xff] %v1713
        %v1716 = vmul.f32 %v1692, 0.5
        %v1717 = vmul.f32 %v1693, 0.5
        %v1718 = vmul.f32 %v1694, 0.5
        %v1719 = vtanh.pop %v1716
        %v1720 = vtanh.pop %v1717
        %v1721 = vtanh.pop %v1718
        %v1722 = vadd.f32 %v1719, 1.0
        %v1723 = vadd.f32 %v1720, 1.0
        %v1724 = vadd.f32 %v1721, 1.0
        %v1725 = vmul.f32 %v1722, 0.5
        %v1726 = vmul.f32 %v1723, 0.5
        %v1727 = vmul.f32 %v1724, 0.5
        %v1728 = vtanh.pop %v1695
        %v1729 = vmul.f32 %v1726, %v1513
        %v1730 = vmul.f32 %v1725, %v1728
        %v1731 = vadd.f32 %v1729, %v1730
        %v1732 = vtanh.pop %v1731
        %v1733 = vmul.f32 %v1727, %v1732
        %s1734 = scalar_lea.vmem %s284, 104 [#allocation5]
        %1735 = vst [vmem:[%s1734] sm:$0xff] %v1733
        %s1736 = scalar_lea.vmem %s267, 192 [#allocation4]
        %v1737 = vld [vmem:[%s1736] sm:$0xff]
        %v1738 = vld [vmem:[%s1736 + $0x8] sm:$0xff]
        %v1739 = vld [vmem:[%s1736 + $0x10] sm:$0xff]
        %v1740 = vld [vmem:[%s1736 + $0x18] sm:$0xff]
        %1741 = vmatpush.msra.mxu0 %v361
        %1742 = vmatpush.msra.mxu0 %v357
        %1743 = vmatpush.msra.mxu0 %v353
        %1744 = vmatpush.msra.mxu0 %v349
        %1745 = vmatpush.msra.mxu0 %v345
        %1746 = vmatpush.msra.mxu0 %v341
        %1747 = vmatpush.msra.mxu0 %v337
        %1748 = vmatpush.msra.mxu0 %v333
        %1749 = vmatpush.msra.mxu0 %v329
        %1750 = vmatpush.msra.mxu0 %v325
        %1751 = vmatpush.msra.mxu0 %v321
        %1752 = vmatpush.msra.mxu0 %v317
        %1753 = vmatpush.msra.mxu0 %v313
        %1754 = vmatpush.msra.mxu0 %v309
        %1755 = vmatpush.msra.mxu0 %v305
        %1756 = vmatpush.msra.mxu0 %v301
        %1757 = vmatmul.f32.gmra.mxu0 %v1713
        %v1758 = vpop.f32.mrf.mxu0
        %v1759 = vadd.f32 0.0, %v1758
        %1760 = vdwg.mxu0
        %1761 = vmatpush.msra.mxu0 %v362
        %1762 = vmatpush.msra.mxu0 %v358
        %1763 = vmatpush.msra.mxu0 %v354
        %1764 = vmatpush.msra.mxu0 %v350
        %1765 = vmatpush.msra.mxu0 %v346
        %1766 = vmatpush.msra.mxu0 %v342
        %1767 = vmatpush.msra.mxu0 %v338
        %1768 = vmatpush.msra.mxu0 %v334
        %1769 = vmatpush.msra.mxu0 %v330
        %1770 = vmatpush.msra.mxu0 %v326
        %1771 = vmatpush.msra.mxu0 %v322
        %1772 = vmatpush.msra.mxu0 %v318
        %1773 = vmatpush.msra.mxu0 %v314
        %1774 = vmatpush.msra.mxu0 %v310
        %1775 = vmatpush.msra.mxu0 %v306
        %1776 = vmatpush.msra.mxu0 %v302
        %1777 = vmatmul.f32.gmra.mxu0 %v1713
        %v1778 = vpop.f32.mrf.mxu0
        %v1779 = vadd.f32 0.0, %v1778
        %1780 = vdwg.mxu0
        %1781 = vmatpush.msra.mxu0 %v363
        %1782 = vmatpush.msra.mxu0 %v359
        %1783 = vmatpush.msra.mxu0 %v355
        %1784 = vmatpush.msra.mxu0 %v351
        %1785 = vmatpush.msra.mxu0 %v347
        %1786 = vmatpush.msra.mxu0 %v343
        %1787 = vmatpush.msra.mxu0 %v339
        %1788 = vmatpush.msra.mxu0 %v335
        %1789 = vmatpush.msra.mxu0 %v331
        %1790 = vmatpush.msra.mxu0 %v327
        %1791 = vmatpush.msra.mxu0 %v323
        %1792 = vmatpush.msra.mxu0 %v319
        %1793 = vmatpush.msra.mxu0 %v315
        %1794 = vmatpush.msra.mxu0 %v311
        %1795 = vmatpush.msra.mxu0 %v307
        %1796 = vmatpush.msra.mxu0 %v303
        %1797 = vmatmul.f32.gmra.mxu0 %v1713
        %v1798 = vpop.f32.mrf.mxu0
        %v1799 = vadd.f32 0.0, %v1798
        %1800 = vdwg.mxu0
        %1801 = vmatpush.msra.mxu0 %v364
        %1802 = vmatpush.msra.mxu0 %v360
        %1803 = vmatpush.msra.mxu0 %v356
        %1804 = vmatpush.msra.mxu0 %v352
        %1805 = vmatpush.msra.mxu0 %v348
        %1806 = vmatpush.msra.mxu0 %v344
        %1807 = vmatpush.msra.mxu0 %v340
        %1808 = vmatpush.msra.mxu0 %v336
        %1809 = vmatpush.msra.mxu0 %v332
        %1810 = vmatpush.msra.mxu0 %v328
        %1811 = vmatpush.msra.mxu0 %v324
        %1812 = vmatpush.msra.mxu0 %v320
        %1813 = vmatpush.msra.mxu0 %v316
        %1814 = vmatpush.msra.mxu0 %v312
        %1815 = vmatpush.msra.mxu0 %v308
        %1816 = vmatpush.msra.mxu0 %v304
        %1817 = vmatmul.f32.gmra.mxu0 %v1713
        %v1818 = vpop.f32.mrf.mxu0
        %v1819 = vadd.f32 0.0, %v1818
        %1820 = vdwg.mxu0
        %v1821 = vadd.f32 %v1737, %v1759
        %v1822 = vadd.f32 %v1738, %v1779
        %v1823 = vadd.f32 %v1739, %v1799
        %v1824 = vadd.f32 %v1740, %v1819
        %s1825 = scalar_lea.vmem %s267, 448 [#allocation4]
        %v1826 = vld [vmem:[%s1825] sm:$0xff]
        %v1827 = vld [vmem:[%s1825 + $0x8] sm:$0xff]
        %v1828 = vld [vmem:[%s1825 + $0x10] sm:$0xff]
        %v1829 = vld [vmem:[%s1825 + $0x18] sm:$0xff]
        %1830 = vmatpush.msra.mxu0 %v426
        %1831 = vmatpush.msra.mxu0 %v422
        %1832 = vmatpush.msra.mxu0 %v418
        %1833 = vmatpush.msra.mxu0 %v414
        %1834 = vmatpush.msra.mxu0 %v410
        %1835 = vmatpush.msra.mxu0 %v406
        %1836 = vmatpush.msra.mxu0 %v402
        %1837 = vmatpush.msra.mxu0 %v398
        %1838 = vmatpush.msra.mxu0 %v394
        %1839 = vmatpush.msra.mxu0 %v390
        %1840 = vmatpush.msra.mxu0 %v386
        %1841 = vmatpush.msra.mxu0 %v382
        %1842 = vmatpush.msra.mxu0 %v378
        %1843 = vmatpush.msra.mxu0 %v374
        %1844 = vmatpush.msra.mxu0 %v370
        %1845 = vmatpush.msra.mxu0 %v366
        %1846 = vmatmul.f32.gmra.mxu0 %v1733
        %v1847 = vpop.f32.mrf.mxu0
        %v1848 = vadd.f32 0.0, %v1847
        %1849 = vdwg.mxu0
        %1850 = vmatpush.msra.mxu0 %v427
        %1851 = vmatpush.msra.mxu0 %v423
        %1852 = vmatpush.msra.mxu0 %v419
        %1853 = vmatpush.msra.mxu0 %v415
        %1854 = vmatpush.msra.mxu0 %v411
        %1855 = vmatpush.msra.mxu0 %v407
        %1856 = vmatpush.msra.mxu0 %v403
        %1857 = vmatpush.msra.mxu0 %v399
        %1858 = vmatpush.msra.mxu0 %v395
        %1859 = vmatpush.msra.mxu0 %v391
        %1860 = vmatpush.msra.mxu0 %v387
        %1861 = vmatpush.msra.mxu0 %v383
        %1862 = vmatpush.msra.mxu0 %v379
        %1863 = vmatpush.msra.mxu0 %v375
        %1864 = vmatpush.msra.mxu0 %v371
        %1865 = vmatpush.msra.mxu0 %v367
        %1866 = vmatmul.f32.gmra.mxu0 %v1733
        %v1867 = vpop.f32.mrf.mxu0
        %v1868 = vadd.f32 0.0, %v1867
        %1869 = vdwg.mxu0
        %1870 = vmatpush.msra.mxu0 %v428
        %1871 = vmatpush.msra.mxu0 %v424
        %1872 = vmatpush.msra.mxu0 %v420
        %1873 = vmatpush.msra.mxu0 %v416
        %1874 = vmatpush.msra.mxu0 %v412
        %1875 = vmatpush.msra.mxu0 %v408
        %1876 = vmatpush.msra.mxu0 %v404
        %1877 = vmatpush.msra.mxu0 %v400
        %1878 = vmatpush.msra.mxu0 %v396
        %1879 = vmatpush.msra.mxu0 %v392
        %1880 = vmatpush.msra.mxu0 %v388
        %1881 = vmatpush.msra.mxu0 %v384
        %1882 = vmatpush.msra.mxu0 %v380
        %1883 = vmatpush.msra.mxu0 %v376
        %1884 = vmatpush.msra.mxu0 %v372
        %1885 = vmatpush.msra.mxu0 %v368
        %1886 = vmatmul.f32.gmra.mxu0 %v1733
        %v1887 = vpop.f32.mrf.mxu0
        %v1888 = vadd.f32 0.0, %v1887
        %1889 = vdwg.mxu0
        %1890 = vmatpush.msra.mxu0 %v429
        %1891 = vmatpush.msra.mxu0 %v425
        %1892 = vmatpush.msra.mxu0 %v421
        %1893 = vmatpush.msra.mxu0 %v417
        %1894 = vmatpush.msra.mxu0 %v413
        %1895 = vmatpush.msra.mxu0 %v409
        %1896 = vmatpush.msra.mxu0 %v405
        %1897 = vmatpush.msra.mxu0 %v401
        %1898 = vmatpush.msra.mxu0 %v397
        %1899 = vmatpush.msra.mxu0 %v393
        %1900 = vmatpush.msra.mxu0 %v389
        %1901 = vmatpush.msra.mxu0 %v385
        %1902 = vmatpush.msra.mxu0 %v381
        %1903 = vmatpush.msra.mxu0 %v377
        %1904 = vmatpush.msra.mxu0 %v373
        %1905 = vmatpush.msra.mxu0 %v369
        %1906 = vmatmul.f32.gmra.mxu0 %v1733
        %v1907 = vpop.f32.mrf.mxu0
        %v1908 = vadd.f32 0.0, %v1907
        %1909 = vdwg.mxu0
        %v1910 = vadd.f32 %v1826, %v1848
        %v1911 = vadd.f32 %v1827, %v1868
        %v1912 = vadd.f32 %v1828, %v1888
        %v1913 = vadd.f32 %v1829, %v1908
        %v1914 = vmul.f32 %v1821, 0.5
        %v1915 = vmul.f32 %v1822, 0.5
        %v1916 = vmul.f32 %v1823, 0.5
        %v1917 = vtanh.pop %v1914
        %v1918 = vtanh.pop %v1915
        %v1919 = vtanh.pop %v1916
        %v1920 = vadd.f32 %v1917, 1.0
        %v1921 = vadd.f32 %v1918, 1.0
        %v1922 = vadd.f32 %v1919, 1.0
        %v1923 = vmul.f32 %v1920, 0.5
        %v1924 = vmul.f32 %v1921, 0.5
        %v1925 = vmul.f32 %v1922, 0.5
        %v1926 = vtanh.pop %v1824
        %v1927 = vmul.f32 %v1924, %v1711
        %v1928 = vmul.f32 %v1923, %v1926
        %v1929 = vadd.f32 %v1927, %v1928
        %v1930 = vtanh.pop %v1929
        %v1931 = vmul.f32 %v1925, %v1930
        %s1932 = scalar_lea.vmem %s284, 48 [#allocation5]
        %1933 = vst [vmem:[%s1932] sm:$0xff] %v1931
        %v1934 = vmul.f32 %v1910, 0.5
        %v1935 = vmul.f32 %v1911, 0.5
        %v1936 = vmul.f32 %v1912, 0.5
        %v1937 = vtanh.pop %v1934
        %v1938 = vtanh.pop %v1935
        %v1939 = vtanh.pop %v1936
        %v1940 = vadd.f32 %v1937, 1.0
        %v1941 = vadd.f32 %v1938, 1.0
        %v1942 = vadd.f32 %v1939, 1.0
        %v1943 = vmul.f32 %v1940, 0.5
        %v1944 = vmul.f32 %v1941, 0.5
        %v1945 = vmul.f32 %v1942, 0.5
        %v1946 = vtanh.pop %v1913
        %v1947 = vmul.f32 %v1944, %v1731
        %v1948 = vmul.f32 %v1943, %v1946
        %v1949 = vadd.f32 %v1947, %v1948
        %v1950 = vtanh.pop %v1949
        %v1951 = vmul.f32 %v1945, %v1950
        %s1952 = scalar_lea.vmem %s284, 112 [#allocation5]
        %1953 = vst [vmem:[%s1952] sm:$0xff] %v1951
        %s1954 = scalar_lea.vmem %s267, 224 [#allocation4]
        %v1955 = vld [vmem:[%s1954] sm:$0xff]
        %v1956 = vld [vmem:[%s1954 + $0x8] sm:$0xff]
        %v1957 = vld [vmem:[%s1954 + $0x10] sm:$0xff]
        %v1958 = vld [vmem:[%s1954 + $0x18] sm:$0xff]
        %1959 = vmatpush.msra.mxu0 %v361
        %1960 = vmatpush.msra.mxu0 %v357
        %1961 = vmatpush.msra.mxu0 %v353
        %1962 = vmatpush.msra.mxu0 %v349
        %1963 = vmatpush.msra.mxu0 %v345
        %1964 = vmatpush.msra.mxu0 %v341
        %1965 = vmatpush.msra.mxu0 %v337
        %1966 = vmatpush.msra.mxu0 %v333
        %1967 = vmatpush.msra.mxu0 %v329
        %1968 = vmatpush.msra.mxu0 %v325
        %1969 = vmatpush.msra.mxu0 %v321
        %1970 = vmatpush.msra.mxu0 %v317
        %1971 = vmatpush.msra.mxu0 %v313
        %1972 = vmatpush.msra.mxu0 %v309
        %1973 = vmatpush.msra.mxu0 %v305
        %1974 = vmatpush.msra.mxu0 %v301
        %1975 = vmatmul.f32.gmra.mxu0 %v1931
        %v1976 = vpop.f32.mrf.mxu0
        %v1977 = vadd.f32 0.0, %v1976
        %1978 = vdwg.mxu0
        %1979 = vmatpush.msra.mxu0 %v362
        %1980 = vmatpush.msra.mxu0 %v358
        %1981 = vmatpush.msra.mxu0 %v354
        %1982 = vmatpush.msra.mxu0 %v350
        %1983 = vmatpush.msra.mxu0 %v346
        %1984 = vmatpush.msra.mxu0 %v342
        %1985 = vmatpush.msra.mxu0 %v338
        %1986 = vmatpush.msra.mxu0 %v334
        %1987 = vmatpush.msra.mxu0 %v330
        %1988 = vmatpush.msra.mxu0 %v326
        %1989 = vmatpush.msra.mxu0 %v322
        %1990 = vmatpush.msra.mxu0 %v318
        %1991 = vmatpush.msra.mxu0 %v314
        %1992 = vmatpush.msra.mxu0 %v310
        %1993 = vmatpush.msra.mxu0 %v306
        %1994 = vmatpush.msra.mxu0 %v302
        %1995 = vmatmul.f32.gmra.mxu0 %v1931
        %v1996 = vpop.f32.mrf.mxu0
        %v1997 = vadd.f32 0.0, %v1996
        %1998 = vdwg.mxu0
        %1999 = vmatpush.msra.mxu0 %v363
        %2000 = vmatpush.msra.mxu0 %v359
        %2001 = vmatpush.msra.mxu0 %v355
        %2002 = vmatpush.msra.mxu0 %v351
        %2003 = vmatpush.msra.mxu0 %v347
        %2004 = vmatpush.msra.mxu0 %v343
        %2005 = vmatpush.msra.mxu0 %v339
        %2006 = vmatpush.msra.mxu0 %v335
        %2007 = vmatpush.msra.mxu0 %v331
        %2008 = vmatpush.msra.mxu0 %v327
        %2009 = vmatpush.msra.mxu0 %v323
        %2010 = vmatpush.msra.mxu0 %v319
        %2011 = vmatpush.msra.mxu0 %v315
        %2012 = vmatpush.msra.mxu0 %v311
        %2013 = vmatpush.msra.mxu0 %v307
        %2014 = vmatpush.msra.mxu0 %v303
        %2015 = vmatmul.f32.gmra.mxu0 %v1931
        %v2016 = vpop.f32.mrf.mxu0
        %v2017 = vadd.f32 0.0, %v2016
        %2018 = vdwg.mxu0
        %2019 = vmatpush.msra.mxu0 %v364
        %2020 = vmatpush.msra.mxu0 %v360
        %2021 = vmatpush.msra.mxu0 %v356
        %2022 = vmatpush.msra.mxu0 %v352
        %2023 = vmatpush.msra.mxu0 %v348
        %2024 = vmatpush.msra.mxu0 %v344
        %2025 = vmatpush.msra.mxu0 %v340
        %2026 = vmatpush.msra.mxu0 %v336
        %2027 = vmatpush.msra.mxu0 %v332
        %2028 = vmatpush.msra.mxu0 %v328
        %2029 = vmatpush.msra.mxu0 %v324
        %2030 = vmatpush.msra.mxu0 %v320
        %2031 = vmatpush.msra.mxu0 %v316
        %2032 = vmatpush.msra.mxu0 %v312
        %2033 = vmatpush.msra.mxu0 %v308
        %2034 = vmatpush.msra.mxu0 %v304
        %2035 = vmatmul.f32.gmra.mxu0 %v1931
        %v2036 = vpop.f32.mrf.mxu0
        %v2037 = vadd.f32 0.0, %v2036
        %2038 = vdwg.mxu0
        %v2039 = vadd.f32 %v1955, %v1977
        %v2040 = vadd.f32 %v1956, %v1997
        %v2041 = vadd.f32 %v1957, %v2017
        %v2042 = vadd.f32 %v1958, %v2037
        %s2043 = scalar_lea.vmem %s267, 480 [#allocation4]
        %v2044 = vld [vmem:[%s2043] sm:$0xff]
        %v2045 = vld [vmem:[%s2043 + $0x8] sm:$0xff]
        %v2046 = vld [vmem:[%s2043 + $0x10] sm:$0xff]
        %v2047 = vld [vmem:[%s2043 + $0x18] sm:$0xff]
        %2048 = vmatpush.msra.mxu0 %v426
        %2049 = vmatpush.msra.mxu0 %v422
        %2050 = vmatpush.msra.mxu0 %v418
        %2051 = vmatpush.msra.mxu0 %v414
        %2052 = vmatpush.msra.mxu0 %v410
        %2053 = vmatpush.msra.mxu0 %v406
        %2054 = vmatpush.msra.mxu0 %v402
        %2055 = vmatpush.msra.mxu0 %v398
        %2056 = vmatpush.msra.mxu0 %v394
        %2057 = vmatpush.msra.mxu0 %v390
        %2058 = vmatpush.msra.mxu0 %v386
        %2059 = vmatpush.msra.mxu0 %v382
        %2060 = vmatpush.msra.mxu0 %v378
        %2061 = vmatpush.msra.mxu0 %v374
        %2062 = vmatpush.msra.mxu0 %v370
        %2063 = vmatpush.msra.mxu0 %v366
        %2064 = vmatmul.f32.gmra.mxu0 %v1951
        %v2065 = vpop.f32.mrf.mxu0
        %v2066 = vadd.f32 0.0, %v2065
        %2067 = vdwg.mxu0
        %2068 = vmatpush.msra.mxu0 %v427
        %2069 = vmatpush.msra.mxu0 %v423
        %2070 = vmatpush.msra.mxu0 %v419
        %2071 = vmatpush.msra.mxu0 %v415
        %2072 = vmatpush.msra.mxu0 %v411
        %2073 = vmatpush.msra.mxu0 %v407
        %2074 = vmatpush.msra.mxu0 %v403
        %2075 = vmatpush.msra.mxu0 %v399
        %2076 = vmatpush.msra.mxu0 %v395
        %2077 = vmatpush.msra.mxu0 %v391
        %2078 = vmatpush.msra.mxu0 %v387
        %2079 = vmatpush.msra.mxu0 %v383
        %2080 = vmatpush.msra.mxu0 %v379
        %2081 = vmatpush.msra.mxu0 %v375
        %2082 = vmatpush.msra.mxu0 %v371
        %2083 = vmatpush.msra.mxu0 %v367
        %2084 = vmatmul.f32.gmra.mxu0 %v1951
        %v2085 = vpop.f32.mrf.mxu0
        %v2086 = vadd.f32 0.0, %v2085
        %2087 = vdwg.mxu0
        %2088 = vmatpush.msra.mxu0 %v428
        %2089 = vmatpush.msra.mxu0 %v424
        %2090 = vmatpush.msra.mxu0 %v420
        %2091 = vmatpush.msra.mxu0 %v416
        %2092 = vmatpush.msra.mxu0 %v412
        %2093 = vmatpush.msra.mxu0 %v408
        %2094 = vmatpush.msra.mxu0 %v404
        %2095 = vmatpush.msra.mxu0 %v400
        %2096 = vmatpush.msra.mxu0 %v396
        %2097 = vmatpush.msra.mxu0 %v392
        %2098 = vmatpush.msra.mxu0 %v388
        %2099 = vmatpush.msra.mxu0 %v384
        %2100 = vmatpush.msra.mxu0 %v380
        %2101 = vmatpush.msra.mxu0 %v376
        %2102 = vmatpush.msra.mxu0 %v372
        %2103 = vmatpush.msra.mxu0 %v368
        %2104 = vmatmul.f32.gmra.mxu0 %v1951
        %v2105 = vpop.f32.mrf.mxu0
        %v2106 = vadd.f32 0.0, %v2105
        %2107 = vdwg.mxu0
        %2108 = vmatpush.msra.mxu0 %v429
        %2109 = vmatpush.msra.mxu0 %v425
        %2110 = vmatpush.msra.mxu0 %v421
        %2111 = vmatpush.msra.mxu0 %v417
        %2112 = vmatpush.msra.mxu0 %v413
        %2113 = vmatpush.msra.mxu0 %v409
        %2114 = vmatpush.msra.mxu0 %v405
        %2115 = vmatpush.msra.mxu0 %v401
        %2116 = vmatpush.msra.mxu0 %v397
        %2117 = vmatpush.msra.mxu0 %v393
        %2118 = vmatpush.msra.mxu0 %v389
        %2119 = vmatpush.msra.mxu0 %v385
        %2120 = vmatpush.msra.mxu0 %v381
        %2121 = vmatpush.msra.mxu0 %v377
        %2122 = vmatpush.msra.mxu0 %v373
        %2123 = vmatpush.msra.mxu0 %v369
        %2124 = vmatmul.f32.gmra.mxu0 %v1951
        %v2125 = vpop.f32.mrf.mxu0
        %v2126 = vadd.f32 0.0, %v2125
        %2127 = vdwg.mxu0
        %v2128 = vadd.f32 %v2044, %v2066
        %v2129 = vadd.f32 %v2045, %v2086
        %v2130 = vadd.f32 %v2046, %v2106
        %v2131 = vadd.f32 %v2047, %v2126
        %v2132 = vmul.f32 %v2039, 0.5
        %v2133 = vmul.f32 %v2040, 0.5
        %v2134 = vmul.f32 %v2041, 0.5
        %v2135 = vtanh.pop %v2132
        %v2136 = vtanh.pop %v2133
        %v2137 = vtanh.pop %v2134
        %v2138 = vadd.f32 %v2135, 1.0
        %v2139 = vadd.f32 %v2136, 1.0
        %v2140 = vadd.f32 %v2137, 1.0
        %v2141 = vmul.f32 %v2138, 0.5
        %v2142 = vmul.f32 %v2139, 0.5
        %v2143 = vmul.f32 %v2140, 0.5
        %v2144 = vtanh.pop %v2042
        %v2145 = vmul.f32 %v2142, %v1929
        %v2146 = vmul.f32 %v2141, %v2144
        %v2147 = vadd.f32 %v2145, %v2146
        %v2148 = vtanh.pop %v2147
        %v2149 = vmul.f32 %v2143, %v2148
        %s2150 = scalar_lea.vmem %s284, 56 [#allocation5]
        %2151 = vst [vmem:[%s2150] sm:$0xff] %v2149
        %v2152 = vmul.f32 %v2128, 0.5
        %v2153 = vmul.f32 %v2129, 0.5
        %v2154 = vmul.f32 %v2130, 0.5
        %v2155 = vtanh.pop %v2152
        %v2156 = vtanh.pop %v2153
        %v2157 = vtanh.pop %v2154
        %v2158 = vadd.f32 %v2155, 1.0
        %v2159 = vadd.f32 %v2156, 1.0
        %v2160 = vadd.f32 %v2157, 1.0
        %v2161 = vmul.f32 %v2158, 0.5
        %v2162 = vmul.f32 %v2159, 0.5
        %v2163 = vmul.f32 %v2160, 0.5
        %v2164 = vtanh.pop %v2131
        %v2165 = vmul.f32 %v2162, %v1949
        %v2166 = vmul.f32 %v2161, %v2164
        %v2167 = vadd.f32 %v2165, %v2166
        %v2168 = vtanh.pop %v2167
        %v2169 = vmul.f32 %v2163, %v2168
        %s2170 = scalar_lea.vmem %s284, 120 [#allocation5]
        %2171 = vst [vmem:[%s2170] sm:$0xff] %v2169
        %2172 = vst [vmem:[#allocation2] sm:$0xff] %v2149
        %2173 = vst [vmem:[#allocation3] sm:$0xff] %v2147
        %2174 = vst [vmem:[%s297] sm:$0xff] %v2169
        %2175 = vst [vmem:[%s299] sm:$0xff] %v2167
        %s2176 = sand.u32 %s68, 1
        %s2177 = sand.u32 %s68, 1
        %s2178 = smul.addr %s2177, 128
        %s2179 = scalar_lea.vmem [#allocation5], %s2178
        // Predicated region
        $region56: #{bilstm_forward.1} parent=46 // pred_check
          %p2180 = pneg %p78
        $region57: #{bilstm_forward.1} parent=46 // pred_check_branch
          %2182 = sbr.rel (%p2180) target = $region59
        $region58: #{bilstm_forward.1} parent=46 // pred_region
          %s2183 = smul.u32 8, %s13
          %s2184 = smul.addr %s2183, 8
          %s2185 = scalar_lea.vmem %s2, %s2184
          // Predicated region
          $region60: #{bilstm_forward.1} parent=58 // pred_check
            _
          $region61: #{bilstm_forward.1} parent=58 // pred_check_branch
            %2187 = sbr.rel (0) target = $region63
          $region62: #{bilstm_forward.1} parent=58 // pred_region
            // Predicated region
            $region64: #{bilstm_forward.1} parent=62 // pred_check
              _
            $region65: #{bilstm_forward.1} parent=62 // pred_check_branch
              %2189 = sbr.rel (0) target = $region67
            $region66: #{bilstm_forward.1} parent=62 // pred_region
              // Predicated region
              $region79: #{bilstm_forward.1} parent=66 // pred_check
                _
              $region80: #{bilstm_forward.1} parent=66 // pred_check_branch
                %2235 = sbr.rel (0) target = $region82
              $region81: #{bilstm_forward.1} parent=66 // pred_region
                loop: start=0, step=1, limit=1
                $region83: #{bilstm_forward.1} parent=81 // loop_pre_header
                  _
                $region84: #{bilstm_forward.1} parent=81 // loop_header
                  %s2237 = sphi 0, %s2241
                  %p2238 = scmp.ge.s32.totalorder %s2237, 1
                  %s2242 = sphi %s2179, %s2179
                  %s2243 = sphi %s2185, %s2185
                $region85: #{bilstm_forward.1} parent=81 // loop_header_branch
                  %2240 = sbr.rel (%p2238) target = $region89
                $region86: #{bilstm_forward.1} parent=81 // loop_body
                  %v2244 = vld [vmem:[%s2242] sm:$0xff]
                  %2245 = vst [vmem:[%s2243] sm:$0xff] %v2244
                  %v2246 = vld [vmem:[%s2242 + $0x8] sm:$0xff]
                  %2247 = vst [vmem:[%s2243 + $0x8] sm:$0xff] %v2246
                  %v2248 = vld [vmem:[%s2242 + $0x10] sm:$0xff]
                  %2249 = vst [vmem:[%s2243 + $0x10] sm:$0xff] %v2248
                  %v2250 = vld [vmem:[%s2242 + $0x18] sm:$0xff]
                  %2251 = vst [vmem:[%s2243 + $0x18] sm:$0xff] %v2250
                  %v2252 = vld [vmem:[%s2242 + $0x20] sm:$0xff]
                  %2253 = vst [vmem:[%s2243 + $0x20] sm:$0xff] %v2252
                  %v2254 = vld [vmem:[%s2242 + $0x28] sm:$0xff]
                  %2255 = vst [vmem:[%s2243 + $0x28] sm:$0xff] %v2254
                  %v2256 = vld [vmem:[%s2242 + $0x30] sm:$0xff]
                  %2257 = vst [vmem:[%s2243 + $0x30] sm:$0xff] %v2256
                  %v2258 = vld [vmem:[%s2242 + $0x38] sm:$0xff]
                  %2259 = vst [vmem:[%s2243 + $0x38] sm:$0xff] %v2258
                  %v2260 = vld [vmem:[%s2242 + $0x40] sm:$0xff]
                  %2261 = vst [vmem:[%s2243 + $0x80] sm:$0xff] %v2260
                  %v2262 = vld [vmem:[%s2242 + $0x48] sm:$0xff]
                  %2263 = vst [vmem:[%s2243 + $0x88] sm:$0xff] %v2262
                  %v2264 = vld [vmem:[%s2242 + $0x50] sm:$0xff]
                  %2265 = vst [vmem:[%s2243 + $0x90] sm:$0xff] %v2264
                  %v2266 = vld [vmem:[%s2242 + $0x58] sm:$0xff]
                  %2267 = vst [vmem:[%s2243 + $0x98] sm:$0xff] %v2266
                  %v2268 = vld [vmem:[%s2242 + $0x60] sm:$0xff]
                  %2269 = vst [vmem:[%s2243 + $0xa0] sm:$0xff] %v2268
                  %v2270 = vld [vmem:[%s2242 + $0x68] sm:$0xff]
                  %2271 = vst [vmem:[%s2243 + $0xa8] sm:$0xff] %v2270
                  %v2272 = vld [vmem:[%s2242 + $0x70] sm:$0xff]
                  %2273 = vst [vmem:[%s2243 + $0xb0] sm:$0xff] %v2272
                  %v2274 = vld [vmem:[%s2242 + $0x78] sm:$0xff]
                  %2275 = vst [vmem:[%s2243 + $0xb8] sm:$0xff] %v2274
                $region87: #{bilstm_forward.1} parent=81 // loop_footer
                  %s2241 = sadd.s32 1, %s2237
                $region88: #{bilstm_forward.1} parent=81 // loop_footer_branch
                  %2236 = sbr.rel target = $region84
                $region89: #{bilstm_forward.1} parent=81 // loop_exit
                  _
              $region82: #{bilstm_forward.1} parent=66 // pred_fallthru
                _
              // Predicated region
              $region90: #{bilstm_forward.1} parent=66 // pred_check
                _
              $region91: #{bilstm_forward.1} parent=66 // pred_check_branch
                %2277 = sbr.rel target = $region93
              $region92: #{bilstm_forward.1} parent=66 // pred_region
                _
              $region93: #{bilstm_forward.1} parent=66 // pred_fallthru
                _
            $region67: #{bilstm_forward.1} parent=62 // pred_fallthru
              _
            // Predicated region
            $region68: #{bilstm_forward.1} parent=62 // pred_check
              _
            $region69: #{bilstm_forward.1} parent=62 // pred_check_branch
              %2191 = sbr.rel target = $region71
            $region70: #{bilstm_forward.1} parent=62 // pred_region
              %s2193 = ssub.s32 256, 1
              loop: start=0, step=1, limit=1
              $region72: #{bilstm_forward.1} parent=70 // loop_pre_header
                _
              $region73: #{bilstm_forward.1} parent=70 // loop_header
                %s2195 = sphi 0, %s2199
                %p2196 = scmp.ge.s32.totalorder %s2195, 1
                %s2200 = sphi %s2179, %s2179
                %s2201 = sphi %s2185, %s2185
              $region74: #{bilstm_forward.1} parent=70 // loop_header_branch
                %2198 = sbr.rel (%p2196) target = $region78
              $region75: #{bilstm_forward.1} parent=70 // loop_body
                %v2202 = vld [vmem:[%s2200] sm:%s2193]
                %2203 = vst [vmem:[%s2201] sm:%s2193] %v2202
                %v2204 = vld [vmem:[%s2200 + $0x8] sm:%s2193]
                %2205 = vst [vmem:[%s2201 + $0x8] sm:%s2193] %v2204
                %v2206 = vld [vmem:[%s2200 + $0x10] sm:%s2193]
                %2207 = vst [vmem:[%s2201 + $0x10] sm:%s2193] %v2206
                %v2208 = vld [vmem:[%s2200 + $0x18] sm:%s2193]
                %2209 = vst [vmem:[%s2201 + $0x18] sm:%s2193] %v2208
                %v2210 = vld [vmem:[%s2200 + $0x20] sm:%s2193]
                %2211 = vst [vmem:[%s2201 + $0x20] sm:%s2193] %v2210
                %v2212 = vld [vmem:[%s2200 + $0x28] sm:%s2193]
                %2213 = vst [vmem:[%s2201 + $0x28] sm:%s2193] %v2212
                %v2214 = vld [vmem:[%s2200 + $0x30] sm:%s2193]
                %2215 = vst [vmem:[%s2201 + $0x30] sm:%s2193] %v2214
                %v2216 = vld [vmem:[%s2200 + $0x38] sm:%s2193]
                %2217 = vst [vmem:[%s2201 + $0x38] sm:%s2193] %v2216
                %v2218 = vld [vmem:[%s2200 + $0x40] sm:%s2193]
                %2219 = vst [vmem:[%s2201 + $0x80] sm:%s2193] %v2218
                %v2220 = vld [vmem:[%s2200 + $0x48] sm:%s2193]
                %2221 = vst [vmem:[%s2201 + $0x88] sm:%s2193] %v2220
                %v2222 = vld [vmem:[%s2200 + $0x50] sm:%s2193]
                %2223 = vst [vmem:[%s2201 + $0x90] sm:%s2193] %v2222
                %v2224 = vld [vmem:[%s2200 + $0x58] sm:%s2193]
                %2225 = vst [vmem:[%s2201 + $0x98] sm:%s2193] %v2224
                %v2226 = vld [vmem:[%s2200 + $0x60] sm:%s2193]
                %2227 = vst [vmem:[%s2201 + $0xa0] sm:%s2193] %v2226
                %v2228 = vld [vmem:[%s2200 + $0x68] sm:%s2193]
                %2229 = vst [vmem:[%s2201 + $0xa8] sm:%s2193] %v2228
                %v2230 = vld [vmem:[%s2200 + $0x70] sm:%s2193]
                %2231 = vst [vmem:[%s2201 + $0xb0] sm:%s2193] %v2230
                %v2232 = vld [vmem:[%s2200 + $0x78] sm:%s2193]
                %2233 = vst [vmem:[%s2201 + $0xb8] sm:%s2193] %v2232
              $region76: #{bilstm_forward.1} parent=70 // loop_footer
                %s2199 = sadd.s32 1, %s2195
              $region77: #{bilstm_forward.1} parent=70 // loop_footer_branch
                %2194 = sbr.rel target = $region73
              $region78: #{bilstm_forward.1} parent=70 // loop_exit
                _
            $region71: #{bilstm_forward.1} parent=62 // pred_fallthru
              _
          $region63: #{bilstm_forward.1} parent=58 // pred_fallthru
            _
          %2278 = vnop
        $region59: #{bilstm_forward.1} parent=46 // pred_fallthru
          _
      $region47: #{bilstm_forward.1} parent=5 // pred_fallthru
        _
      %p2279 = scmp.le.s32.totalorder 2, %s8
      // Predicated region
      $region94: #{bilstm_forward.1} parent=5 // pred_check
        %p2280 = pneg %p2279
      $region95: #{bilstm_forward.1} parent=5 // pred_check_branch
        %2282 = sbr.rel (%p2280) target = $region97
      $region96: #{bilstm_forward.1} parent=5 // pred_region
        %s2283 = ssub.s32 %s8, 2
        // Predicated region
        $region98: #{bilstm_forward.1} parent=96 // pred_check
          %p2284 = pneg %p84
        $region99: #{bilstm_forward.1} parent=96 // pred_check_branch
          %2286 = sbr.rel (%p2284) target = $region101
        $region100: #{bilstm_forward.1} parent=96 // pred_region
          %s2287 = sand.u32 %s69, 1
          %s2288 = sand.u32 %s69, 1
          %s2289 = smul.addr %s2288, 128
          %s2290 = scalar_lea.vmem [#allocation5], %s2289
        $region101: #{bilstm_forward.1} parent=96 // pred_fallthru
          _
      $region97: #{bilstm_forward.1} parent=5 // pred_fallthru
        _
    $region6: #{bilstm_forward.1} parent=1 // loop_footer
      %s12 = sadd.s32 1, %s8
    $region7: #{bilstm_forward.1} parent=1 // loop_footer_branch
      %7 = sbr.rel target = $region3
    $region8: #{bilstm_forward.1} parent=1 // loop_exit
      _

</llo_original>
